<compile_context>
chip_gen: v7x
topology: tpu7x:2x2x1
jax: 0.10.0
libtpu: 0.0.40
codegen_flags: <defaults>
</compile_context>

<pallas_src>
import jax
import jax.numpy as jnp
from jax.experimental import pallas as pl
from jax.experimental.pallas import tpu as pltpu

LN_EPS = 1e-5          # nn.LayerNorm default eps
LRELU_SLOPE = 0.02     # nn.LeakyReLU(0.02)

IN_DIM = 784           # true feature widths
HID_DIM = 200
OUT_DIM = 1

IN_PAD = 896           # 7 * 128  (lane-padded widths)
HID_PAD = 256          # 2 * 128
OUT_PAD = 128          # 1 * 128


def _round_up(n, m):
    return ((n + m - 1) // m) * m


def _discriminator_kernel(x_ref, w1_ref, b1_ref, gamma_ref, beta_ref,
                          w2_ref, b2_ref, o_ref):
    # ---- Linear(784 -> 200), bf16 inputs, f32 accumulation on the MXU ----
    h = jnp.dot(x_ref[...], w1_ref[...],
                preferred_element_type=jnp.float32) + b1_ref[...]

    # ---- LeakyReLU(0.02) (f32, VPU) ----
    h = jnp.where(h > 0, h, LRELU_SLOPE * h)

    # ---- LayerNorm(200) over a 256-wide padded lane dim ----
    # Padded lanes of h are exactly 0 (zero-padded W1 cols / b1), so sums over
    # the padded width equal sums over the true width; divide by 200 explicitly.
    inv_n = 1.0 / float(HID_DIM)
    s = jnp.sum(h, axis=-1, keepdims=True)
    ss = jnp.sum(h * h, axis=-1, keepdims=True)
    mean = s * inv_n
    var = jnp.maximum(ss * inv_n - mean * mean, 0.0)
    hn = (h - mean) * jax.lax.rsqrt(var + LN_EPS)
    # Padded gamma/beta are 0 -> padded lanes of hn become exactly 0 here.
    hn = hn * gamma_ref[...] + beta_ref[...]

    # ---- Linear(200 -> 1) (padded to 128 output lanes), bf16 in / f32 acc ----
    y = jnp.dot(hn.astype(jnp.bfloat16), w2_ref[...],
                preferred_element_type=jnp.float32) + b2_ref[...]

    # ---- Sigmoid (f32 epilogue), lane-dense unmasked store ----
    o_ref[...] = jax.nn.sigmoid(y)


def discriminator_forward(x, w1, b1, gamma, beta, w2, b2,
                          *, batch_tile=256):
    """x: (B, 784) f32 -> (B, 1) f32.

    w1: (784, 200), b1: (200,), gamma/beta: (200,), w2: (200, 1), b2: (1,)
    """
    B = x.shape[0]
    # Batch tile: multiple of 8, capped at `batch_tile` (256 default for
    # v6e/v7x; pass 128 on v5e).  Pad B up to a multiple of the tile.
    tb = min(batch_tile, _round_up(max(B, 1), 8))
    b_pad = _round_up(B, tb)

    # ---- Pad + cast operands (zero padding keeps the math exact) ----
    xp = jnp.zeros((b_pad, IN_PAD), jnp.bfloat16)
    xp = xp.at[:B, :IN_DIM].set(x.astype(jnp.bfloat16))

    w1p = jnp.zeros((IN_PAD, HID_PAD), jnp.bfloat16)
    w1p = w1p.at[:IN_DIM, :HID_DIM].set(w1.astype(jnp.bfloat16))
    b1p = jnp.zeros((1, HID_PAD), jnp.float32).at[0, :HID_DIM].set(b1.reshape(-1))
    gp = jnp.zeros((1, HID_PAD), jnp.float32).at[0, :HID_DIM].set(gamma.reshape(-1))
    bp = jnp.zeros((1, HID_PAD), jnp.float32).at[0, :HID_DIM].set(beta.reshape(-1))

    w2p = jnp.zeros((HID_PAD, OUT_PAD), jnp.bfloat16)
    w2p = w2p.at[:HID_DIM, :OUT_DIM].set(w2.astype(jnp.bfloat16))
    b2p = jnp.zeros((1, OUT_PAD), jnp.float32).at[0, :OUT_DIM].set(b2.reshape(-1))

    grid = (b_pad // tb,)

    out = pl.pallas_call(
        _discriminator_kernel,
        out_shape=jax.ShapeDtypeStruct((b_pad, OUT_PAD), jnp.float32),
        grid=grid,
        in_specs=[
            # x: batch-tiled
            pl.BlockSpec((tb, IN_PAD), lambda i: (i, 0)),
            # weights / biases / LN affine: constant block -> VMEM-resident
            pl.BlockSpec((IN_PAD, HID_PAD), lambda i: (0, 0)),
            pl.BlockSpec((1, HID_PAD), lambda i: (0, 0)),
            pl.BlockSpec((1, HID_PAD), lambda i: (0, 0)),
            pl.BlockSpec((1, HID_PAD), lambda i: (0, 0)),
            pl.BlockSpec((HID_PAD, OUT_PAD), lambda i: (0, 0)),
            pl.BlockSpec((1, OUT_PAD), lambda i: (0, 0)),
        ],
        out_specs=pl.BlockSpec((tb, OUT_PAD), lambda i: (i, 0)),
        compiler_params=pltpu.CompilerParams(
            dimension_semantics=("parallel",),
            # Tiny working set (< 3 MiB with double buffering); a 32 MiB scoped
            # limit is safe on v5e/v6e (128 MiB) and v7x (64 MiB) alike.
            vmem_limit_bytes=32 * 1024 * 1024,
        ),
    )(xp, w1p, b1p, gp, bp, w2p, b2p)

    return out[:B, :OUT_DIM]


def init_discriminator_params(key):
    """Deterministic synthetic parameters matching the torch module's shapes."""
    k1, k2, k3, k4, k5, k6 = jax.random.split(key, 6)
    # Linear(784, 200): torch weight (200, 784) -> stored transposed (784, 200)
    w1 = jax.random.normal(k1, (IN_DIM, HID_DIM), jnp.float32) * 0.05
    b1 = jax.random.normal(k2, (HID_DIM,), jnp.float32) * 0.05
    # LayerNorm(200) affine (perturbed so the affine path is exercised)
    gamma = 1.0 + 0.1 * jax.random.normal(k3, (HID_DIM,), jnp.float32)
    beta = 0.1 * jax.random.normal(k4, (HID_DIM,), jnp.float32)
    # Linear(200, 1): torch weight (1, 200) -> stored transposed (200, 1)
    w2 = jax.random.normal(k5, (HID_DIM, OUT_DIM), jnp.float32) * 0.1
    b2 = jax.random.normal(k6, (OUT_DIM,), jnp.float32) * 0.1
    return w1, b1, gamma, beta, w2, b2


def _reference_forward(x, w1, b1, gamma, beta, w2, b2):
    """Plain-JAX f32 reference of the torch semantics."""
    h = x @ w1 + b1
    h = jnp.where(h > 0, h, LRELU_SLOPE * h)
    mean = jnp.mean(h, axis=-1, keepdims=True)
    var = jnp.mean((h - mean) ** 2, axis=-1, keepdims=True)
    hn = (h - mean) / jnp.sqrt(var + LN_EPS) * gamma + beta
    return jax.nn.sigmoid(hn @ w2 + b2)


# TODO(synk): training utilities of the torch class (BCELoss, Adam step,
# progress plotting) are host-side training code, not part of the forward
# pass, and are intentionally not implemented as kernels.

if __name__ == "__main__":
    key = jax.random.PRNGKey(0)
    kx, kp = jax.random.split(key)

    # Small batch chosen to exercise multi-tile + partial-last-tile padding
    # (B=300 with tile 256 -> grid of 2, last tile padded).
    B = 300
    x = jax.random.normal(kx, (B, IN_DIM), jnp.float32)
    params = init_discriminator_params(kp)

    out = discriminator_forward(x, *params)
    out = jax.block_until_ready(out)

    ref = _reference_forward(x, *params)
    assert out.shape == (B, OUT_DIM), out.shape
    # bf16 matmul inputs (f32 accumulation) vs f32 reference: loose-ish atol.
    assert jnp.allclose(out, ref, atol=2e-2, rtol=0.0), float(
        jnp.max(jnp.abs(out - ref)))

    print("KERNEL_OK")
</pallas_src>

<mosaic_0001>
module attributes {stable_mosaic.version = 11 : i64} {
  func.func @_discriminator_kernel(%arg0: i32, %arg1: memref<256x896xbf16, #tpu.memory_space<vmem>>, %arg2: memref<896x256xbf16, #tpu.memory_space<vmem>>, %arg3: memref<1x256xf32, #tpu.memory_space<vmem>>, %arg4: memref<1x256xf32, #tpu.memory_space<vmem>>, %arg5: memref<1x256xf32, #tpu.memory_space<vmem>>, %arg6: memref<256x128xbf16, #tpu.memory_space<vmem>>, %arg7: memref<1x128xf32, #tpu.memory_space<vmem>>, %arg8: memref<256x128xf32, #tpu.memory_space<vmem>>) attributes {dimension_semantics = [#tpu.dimension_semantics<parallel>], iteration_bounds = array<i64: 2>, scalar_prefetch = 0 : i64, scratch_operands = 0 : i64, tpu.core_type = #tpu.core_type<tc>, window_params = [{transform_indices = @transform_0, window_bounds = array<i64: 256, 896>}, {pipeline_mode = #tpu.pipeline_mode<synchronous>, transform_indices = @transform_1, window_bounds = array<i64: 896, 256>}, {pipeline_mode = #tpu.pipeline_mode<synchronous>, transform_indices = @transform_2, window_bounds = array<i64: 1, 256>}, {pipeline_mode = #tpu.pipeline_mode<synchronous>, transform_indices = @transform_3, window_bounds = array<i64: 1, 256>}, {pipeline_mode = #tpu.pipeline_mode<synchronous>, transform_indices = @transform_4, window_bounds = array<i64: 1, 256>}, {pipeline_mode = #tpu.pipeline_mode<synchronous>, transform_indices = @transform_5, window_bounds = array<i64: 256, 128>}, {pipeline_mode = #tpu.pipeline_mode<synchronous>, transform_indices = @transform_6, window_bounds = array<i64: 1, 128>}, {transform_indices = @transform_7, window_bounds = array<i64: 256, 128>}]} {
    %c0 = arith.constant 0 : index
    %c0_0 = arith.constant 0 : index
    %0 = vector.load %arg1[%c0, %c0_0] : memref<256x896xbf16, #tpu.memory_space<vmem>>, vector<256x896xbf16>
    %c0_1 = arith.constant 0 : index
    %c0_2 = arith.constant 0 : index
    %1 = vector.load %arg2[%c0_1, %c0_2] : memref<896x256xbf16, #tpu.memory_space<vmem>>, vector<896x256xbf16>
    %cst = arith.constant dense<0.000000e+00> : vector<256x256xf32>
    %2 = tpu.matmul %0, %1, %cst {dimension_numbers = #tpu.dot_dimension_numbers<[1], [0], [0], [1], [0, 0, 1, 1], [], []>} : vector<256x896xbf16>, vector<896x256xbf16>, vector<256x256xf32> -> vector<256x256xf32>
    %c0_3 = arith.constant 0 : index
    %c0_4 = arith.constant 0 : index
    %3 = vector.load %arg3[%c0_3, %c0_4] : memref<1x256xf32, #tpu.memory_space<vmem>>, vector<1x256xf32>
    %4 = vector.broadcast %3 : vector<1x256xf32> to vector<256x256xf32>
    %5 = arith.addf %2, %4 : vector<256x256xf32>
    %cst_5 = arith.constant 0.000000e+00 : f32
    %6 = vector.broadcast %cst_5 : f32 to vector<256x256xf32>
    %7 = arith.cmpf ogt, %5, %6 : vector<256x256xf32>
    %cst_6 = arith.constant 2.000000e-02 : f32
    %8 = vector.broadcast %cst_6 : f32 to vector<256x256xf32>
    %9 = arith.mulf %8, %5 : vector<256x256xf32>
    %10 = arith.select %7, %5, %9 : vector<256x256xi1>, vector<256x256xf32>
    %cst_7 = arith.constant dense<0.000000e+00> : vector<256xf32>
    %11 = vector.multi_reduction <add>, %10, %cst_7 [1] : vector<256x256xf32> to vector<256xf32>
    %12 = vector.shape_cast %11 : vector<256xf32> to vector<256x1xf32>
    %13 = arith.mulf %10, %10 : vector<256x256xf32>
    %cst_8 = arith.constant dense<0.000000e+00> : vector<256xf32>
    %14 = vector.multi_reduction <add>, %13, %cst_8 [1] : vector<256x256xf32> to vector<256xf32>
    %15 = vector.shape_cast %14 : vector<256xf32> to vector<256x1xf32>
    %cst_9 = arith.constant 5.000000e-03 : f32
    %16 = vector.broadcast %cst_9 : f32 to vector<256x1xf32>
    %17 = arith.mulf %12, %16 : vector<256x1xf32>
    %cst_10 = arith.constant 5.000000e-03 : f32
    %18 = vector.broadcast %cst_10 : f32 to vector<256x1xf32>
    %19 = arith.mulf %15, %18 : vector<256x1xf32>
    %20 = arith.mulf %17, %17 : vector<256x1xf32>
    %21 = arith.subf %19, %20 : vector<256x1xf32>
    %cst_11 = arith.constant 0.000000e+00 : f32
    %22 = vector.broadcast %cst_11 : f32 to vector<256x1xf32>
    %23 = arith.maximumf %21, %22 : vector<256x1xf32>
    %24 = vector.broadcast %17 : vector<256x1xf32> to vector<256x256xf32>
    %25 = arith.subf %10, %24 : vector<256x256xf32>
    %cst_12 = arith.constant 9.99999974E-6 : f32
    %26 = vector.broadcast %cst_12 : f32 to vector<256x1xf32>
    %27 = arith.addf %23, %26 : vector<256x1xf32>
    %28 = math.rsqrt %27 : vector<256x1xf32>
    %29 = vector.broadcast %28 : vector<256x1xf32> to vector<256x256xf32>
    %30 = arith.mulf %25, %29 : vector<256x256xf32>
    %c0_13 = arith.constant 0 : index
    %c0_14 = arith.constant 0 : index
    %31 = vector.load %arg4[%c0_13, %c0_14] : memref<1x256xf32, #tpu.memory_space<vmem>>, vector<1x256xf32>
    %32 = vector.broadcast %31 : vector<1x256xf32> to vector<256x256xf32>
    %33 = arith.mulf %30, %32 : vector<256x256xf32>
    %c0_15 = arith.constant 0 : index
    %c0_16 = arith.constant 0 : index
    %34 = vector.load %arg5[%c0_15, %c0_16] : memref<1x256xf32, #tpu.memory_space<vmem>>, vector<1x256xf32>
    %35 = vector.broadcast %34 : vector<1x256xf32> to vector<256x256xf32>
    %36 = arith.addf %33, %35 : vector<256x256xf32>
    %37 = arith.truncf %36 : vector<256x256xf32> to vector<256x256xbf16>
    %c0_17 = arith.constant 0 : index
    %c0_18 = arith.constant 0 : index
    %38 = vector.load %arg6[%c0_17, %c0_18] : memref<256x128xbf16, #tpu.memory_space<vmem>>, vector<256x128xbf16>
    %cst_19 = arith.constant dense<0.000000e+00> : vector<256x128xf32>
    %39 = tpu.matmul %37, %38, %cst_19 {dimension_numbers = #tpu.dot_dimension_numbers<[1], [0], [0], [1], [0, 0, 1, 1], [], []>} : vector<256x256xbf16>, vector<256x128xbf16>, vector<256x128xf32> -> vector<256x128xf32>
    %c0_20 = arith.constant 0 : index
    %c0_21 = arith.constant 0 : index
    %40 = vector.load %arg7[%c0_20, %c0_21] : memref<1x128xf32, #tpu.memory_space<vmem>>, vector<1x128xf32>
    %41 = vector.broadcast %40 : vector<1x128xf32> to vector<256x128xf32>
    %42 = arith.addf %39, %41 : vector<256x128xf32>
    %43 = arith.negf %42 : vector<256x128xf32>
    %44 = math.exp %43 : vector<256x128xf32>
    %cst_22 = arith.constant 1.000000e+00 : f32
    %45 = vector.broadcast %cst_22 : f32 to vector<256x128xf32>
    %46 = arith.addf %45, %44 : vector<256x128xf32>
    %47 = arith.divf %45, %46 : vector<256x128xf32>
    %c0_23 = arith.constant 0 : index
    %c0_24 = arith.constant 0 : index
    %48 = vector.load %arg8[%c0_23, %c0_24] : memref<256x128xf32, #tpu.memory_space<vmem>>, vector<256x128xf32>
    tpu.vector_store %arg8[%c0_23, %c0_24], %47 {strides = array<i32>} : memref<256x128xf32, #tpu.memory_space<vmem>>, vector<256x128xf32>,
    return
  }
  func.func @transform_0(%arg0: i32) -> (i32, i32) {
    %c0_i32 = arith.constant 0 : i32
    %c0_i32_0 = arith.constant 0 : i32
    return %arg0, %c0_i32 : i32, i32
  }
  func.func @transform_1(%arg0: i32) -> (i32, i32) {
    %c0_i32 = arith.constant 0 : i32
    %c0_i32_0 = arith.constant 0 : i32
    %c0_i32_1 = arith.constant 0 : i32
    return %c0_i32, %c0_i32_0 : i32, i32
  }
  func.func @transform_2(%arg0: i32) -> (i32, i32) {
    %c0_i32 = arith.constant 0 : i32
    %c0_i32_0 = arith.constant 0 : i32
    %c0_i32_1 = arith.constant 0 : i32
    return %c0_i32, %c0_i32_0 : i32, i32
  }
  func.func @transform_3(%arg0: i32) -> (i32, i32) {
    %c0_i32 = arith.constant 0 : i32
    %c0_i32_0 = arith.constant 0 : i32
    %c0_i32_1 = arith.constant 0 : i32
    return %c0_i32, %c0_i32_0 : i32, i32
  }
  func.func @transform_4(%arg0: i32) -> (i32, i32) {
    %c0_i32 = arith.constant 0 : i32
    %c0_i32_0 = arith.constant 0 : i32
    %c0_i32_1 = arith.constant 0 : i32
    return %c0_i32, %c0_i32_0 : i32, i32
  }
  func.func @transform_5(%arg0: i32) -> (i32, i32) {
    %c0_i32 = arith.constant 0 : i32
    %c0_i32_0 = arith.constant 0 : i32
    %c0_i32_1 = arith.constant 0 : i32
    return %c0_i32, %c0_i32_0 : i32, i32
  }
  func.func @transform_6(%arg0: i32) -> (i32, i32) {
    %c0_i32 = arith.constant 0 : i32
    %c0_i32_0 = arith.constant 0 : i32
    %c0_i32_1 = arith.constant 0 : i32
    return %c0_i32, %c0_i32_0 : i32, i32
  }
  func.func @transform_7(%arg0: i32) -> (i32, i32) {
    %c0_i32 = arith.constant 0 : i32
    %c0_i32_0 = arith.constant 0 : i32
    return %arg0, %c0_i32 : i32, i32
  }
}

</mosaic_0001>

<llo_original>
// kernel: tpu_custom_call.1
$region0: #{tpu_custom_call.1}
  #allocation0 [shape = 'u32[]', space=smem, size = 0x4, offset = 0x4, fixed_abs, tag = 'smem constant byte address 0x4 - core index']
  #allocation1 [shape = 'u32[144,128]{1,0:T(1,128)}', space=vmem, size = 0x12000, scoped, tag = 'internal scratch']
  %s0 = inlined_call_operand.hbm [shape: bf16[512,896], index: 0, kind: input, shape index: {}]
  %s1 = inlined_call_operand.hbm [shape: bf16[896,256], index: 1, kind: input, shape index: {}]
  %s2 = inlined_call_operand.vmem [shape: f32[1,256], index: 2, kind: input, shape index: {}]
  %s3 = inlined_call_operand.vmem [shape: f32[1,256], index: 3, kind: input, shape index: {}]
  %s4 = inlined_call_operand.vmem [shape: f32[1,256], index: 4, kind: input, shape index: {}]
  %s5 = inlined_call_operand.hbm [shape: bf16[256,128], index: 5, kind: input, shape index: {}]
  %s6 = inlined_call_operand.vmem [shape: f32[1,128], index: 6, kind: input, shape index: {}]
  %s7 = inlined_call_operand.hbm [shape: f32[512,128], index: 7, kind: output, shape index: {}]
  %s8 = sld [smem:[#allocation0]]
  $region73: #{tpu_custom_call.1} parent=0
    _
  %s10 = ssub.s32 1, %s8
  %s11 = scalar_select 0, %s10, %s8
  $region1: #{tpu_custom_call.1} parent=0
    #allocation2 [shape = 'u8[917504]{0}', space=vmem, size = 0xe0000, scoped, tag = 'input window, operand 0']
    #allocation3 [shape = 's32[2]{0}', space=sflag, size = 0x8, scoped, tag = 'scoped memory for tpu_custom_call.1']
    #allocation4 [shape = 's32[2]{0}', space=sflag, size = 0x8, scoped, tag = 'scoped memory for tpu_custom_call.1']
    #allocation5 [shape = 'u8[458752]{0}', space=vmem, size = 0x70000, scoped, tag = 'input window, operand 1, single buffered']
    #allocation6 [shape = 's32[1]{0}', space=sflag, size = 0x4, scoped, tag = 'scoped memory for tpu_custom_call.1']
    #allocation7 [shape = 'u8[65536]{0}', space=vmem, size = 0x10000, scoped, tag = 'input window, operand 5, single buffered']
    #allocation8 [shape = 'u8[262144]{0}', space=vmem, size = 0x40000, scoped, tag = 'output window, operand 0']
    %12 = vsyncpa [#allocation3], 0
    %s13 = scalar_lea.sflag [#allocation3], 1
    %14 = vsyncpa %s13, 0
    %15 = vsyncpa [#allocation6], 0
    %16 = vsyncpa [#allocation4], 0
    %s17 = scalar_lea.sflag [#allocation4], 1
    %18 = vsyncpa %s17, 0
    loop: start=0, step=1, limit=4
    $region2: #{tpu_custom_call.1} parent=1 // loop_pre_header
      _
    $region3: #{tpu_custom_call.1} parent=1 // loop_header
      %s20 = sphi 0, %s24
      %p21 = scmp.ge.s32.totalorder %s20, 4
      %s30 = sphi 0, %s32
      %s33 = sphi 0, %s30
      %s34 = sphi 0, %s33
      %s50 = sphi 0, %s34
      %s54 = sphi 0, %s54
      %s56 = sphi 0, %s54
      %s57 = sphi 0, %s56
      %s71 = sphi 0, %s57
      %s75 = sphi 0, %s75
      %s77 = sphi 0, %s75
      %s78 = sphi 0, %s77
      %s92 = sphi 0, %s78
      %s96 = sphi 0, %s96
      %s98 = sphi 0, %s96
      %s99 = sphi 0, %s98
      %s113 = sphi 0, %s99
      %s117 = sphi 0, %s117
      %s119 = sphi 0, %s117
      %s120 = sphi 0, %s119
      %s134 = sphi 0, %s120
      %s138 = sphi 0, %s138
      %s140 = sphi 0, %s138
      %s141 = sphi 0, %s140
      %s155 = sphi 0, %s141
      %s159 = sphi 0, %s159
      %s161 = sphi 0, %s159
      %s162 = sphi 0, %s161
      %s176 = sphi 0, %s162
      %s182 = sphi 0, %s184
      %s185 = sphi 0, %s182
      %s186 = sphi 0, %s185
      %s202 = sphi 0, %s186
    $region4: #{tpu_custom_call.1} parent=1 // loop_header_branch
      %23 = sbr.rel (%p21) target = $region8
    $region5: #{tpu_custom_call.1} parent=1 // loop_body
      %s25 = ssub.s32 %s20, 1
      %s26 = ssub.s32 %s20, 2
      %s27 = sadd.s32 %s20, 1
      %s28 = ssub.s32 %s20, %s27
      %p29 = scmp.eq.s32.totalorder %s28, 0
      %s31 = sadd.s32 %s30, 1
      %s32 = scalar_select %p29, %s30, %s31
      %p35 = pneg %p29
      %p36 = scmp.eq.s32.totalorder %s20, 1
      %p37 = por %p35, %p36
      %p38 = scmp.ne.s32.totalorder %s30, %s33
      %p39 = scmp.eq.s32.totalorder %s20, 0
      %p40 = por %p38, %p39
      %p41 = scmp.ne.s32.totalorder %s30, %s33
      %p42 = scmp.eq.s32.totalorder %s25, 1
      %p43 = por %p41, %p42
      %p44 = scmp.ne.s32.totalorder %s33, %s34
      %p45 = scmp.eq.s32.totalorder %s25, 0
      %p46 = por %p44, %p45
      %p47 = scmp.ne.s32.totalorder %s33, %s34
      %p48 = scmp.eq.s32.totalorder %s26, 1
      %p49 = por %p47, %p48
      %p51 = scmp.ne.s32.totalorder %s34, %s50
      %p52 = scmp.eq.s32.totalorder %s26, 0
      %p53 = por %p51, %p52
      %s55 = sadd.s32 %s54, 1
      %p58 = scmp.eq.s32.totalorder %s20, 1
      %p59 = scmp.ne.s32.totalorder %s54, %s56
      %p60 = scmp.eq.s32.totalorder %s20, 0
      %p61 = por %p59, %p60
      %p62 = scmp.ne.s32.totalorder %s54, %s56
      %p63 = scmp.eq.s32.totalorder %s25, 1
      %p64 = por %p62, %p63
      %p65 = scmp.ne.s32.totalorder %s56, %s57
      %p66 = scmp.eq.s32.totalorder %s25, 0
      %p67 = por %p65, %p66
      %p68 = scmp.ne.s32.totalorder %s56, %s57
      %p69 = scmp.eq.s32.totalorder %s26, 1
      %p70 = por %p68, %p69
      %p72 = scmp.ne.s32.totalorder %s57, %s71
      %p73 = scmp.eq.s32.totalorder %s26, 0
      %p74 = por %p72, %p73
      %s76 = sadd.s32 %s75, 1
      %p79 = scmp.eq.s32.totalorder %s20, 1
      %p80 = scmp.ne.s32.totalorder %s75, %s77
      %p81 = scmp.eq.s32.totalorder %s20, 0
      %p82 = por %p80, %p81
      %p83 = scmp.ne.s32.totalorder %s75, %s77
      %p84 = scmp.eq.s32.totalorder %s25, 1
      %p85 = por %p83, %p84
      %p86 = scmp.ne.s32.totalorder %s77, %s78
      %p87 = scmp.eq.s32.totalorder %s25, 0
      %p88 = por %p86, %p87
      %p89 = scmp.ne.s32.totalorder %s77, %s78
      %p90 = scmp.eq.s32.totalorder %s26, 1
      %p91 = por %p89, %p90
      %p93 = scmp.ne.s32.totalorder %s78, %s92
      %p94 = scmp.eq.s32.totalorder %s26, 0
      %p95 = por %p93, %p94
      %s97 = sadd.s32 %s96, 1
      %p100 = scmp.eq.s32.totalorder %s20, 1
      %p101 = scmp.ne.s32.totalorder %s96, %s98
      %p102 = scmp.eq.s32.totalorder %s20, 0
      %p103 = por %p101, %p102
      %p104 = scmp.ne.s32.totalorder %s96, %s98
      %p105 = scmp.eq.s32.totalorder %s25, 1
      %p106 = por %p104, %p105
      %p107 = scmp.ne.s32.totalorder %s98, %s99
      %p108 = scmp.eq.s32.totalorder %s25, 0
      %p109 = por %p107, %p108
      %p110 = scmp.ne.s32.totalorder %s98, %s99
      %p111 = scmp.eq.s32.totalorder %s26, 1
      %p112 = por %p110, %p111
      %p114 = scmp.ne.s32.totalorder %s99, %s113
      %p115 = scmp.eq.s32.totalorder %s26, 0
      %p116 = por %p114, %p115
      %s118 = sadd.s32 %s117, 1
      %p121 = scmp.eq.s32.totalorder %s20, 1
      %p122 = scmp.ne.s32.totalorder %s117, %s119
      %p123 = scmp.eq.s32.totalorder %s20, 0
      %p124 = por %p122, %p123
      %p125 = scmp.ne.s32.totalorder %s117, %s119
      %p126 = scmp.eq.s32.totalorder %s25, 1
      %p127 = por %p125, %p126
      %p128 = scmp.ne.s32.totalorder %s119, %s120
      %p129 = scmp.eq.s32.totalorder %s25, 0
      %p130 = por %p128, %p129
      %p131 = scmp.ne.s32.totalorder %s119, %s120
      %p132 = scmp.eq.s32.totalorder %s26, 1
      %p133 = por %p131, %p132
      %p135 = scmp.ne.s32.totalorder %s120, %s134
      %p136 = scmp.eq.s32.totalorder %s26, 0
      %p137 = por %p135, %p136
      %s139 = sadd.s32 %s138, 1
      %p142 = scmp.eq.s32.totalorder %s20, 1
      %p143 = scmp.ne.s32.totalorder %s138, %s140
      %p144 = scmp.eq.s32.totalorder %s20, 0
      %p145 = por %p143, %p144
      %p146 = scmp.ne.s32.totalorder %s138, %s140
      %p147 = scmp.eq.s32.totalorder %s25, 1
      %p148 = por %p146, %p147
      %p149 = scmp.ne.s32.totalorder %s140, %s141
      %p150 = scmp.eq.s32.totalorder %s25, 0
      %p151 = por %p149, %p150
      %p152 = scmp.ne.s32.totalorder %s140, %s141
      %p153 = scmp.eq.s32.totalorder %s26, 1
      %p154 = por %p152, %p153
      %p156 = scmp.ne.s32.totalorder %s141, %s155
      %p157 = scmp.eq.s32.totalorder %s26, 0
      %p158 = por %p156, %p157
      %s160 = sadd.s32 %s159, 1
      %p163 = scmp.eq.s32.totalorder %s20, 1
      %p164 = scmp.ne.s32.totalorder %s159, %s161
      %p165 = scmp.eq.s32.totalorder %s20, 0
      %p166 = por %p164, %p165
      %p167 = scmp.ne.s32.totalorder %s159, %s161
      %p168 = scmp.eq.s32.totalorder %s25, 1
      %p169 = por %p167, %p168
      %p170 = scmp.ne.s32.totalorder %s161, %s162
      %p171 = scmp.eq.s32.totalorder %s25, 0
      %p172 = por %p170, %p171
      %p173 = scmp.ne.s32.totalorder %s161, %s162
      %p174 = scmp.eq.s32.totalorder %s26, 1
      %p175 = por %p173, %p174
      %p177 = scmp.ne.s32.totalorder %s162, %s176
      %p178 = scmp.eq.s32.totalorder %s26, 0
      %p179 = por %p177, %p178
      %s180 = ssub.s32 %s20, %s27
      %p181 = scmp.eq.s32.totalorder %s180, 0
      %s183 = sadd.s32 %s182, 1
      %s184 = scalar_select %p181, %s182, %s183
      %p187 = pneg %p181
      %p188 = scmp.eq.s32.totalorder %s20, 1
      %p189 = por %p187, %p188
      %p190 = scmp.ne.s32.totalorder %s182, %s185
      %p191 = scmp.eq.s32.totalorder %s20, 0
      %p192 = por %p190, %p191
      %p193 = scmp.ne.s32.totalorder %s182, %s185
      %p194 = scmp.eq.s32.totalorder %s25, 1
      %p195 = por %p193, %p194
      %p196 = scmp.ne.s32.totalorder %s185, %s186
      %p197 = scmp.eq.s32.totalorder %s25, 0
      %p198 = por %p196, %p197
      %p199 = scmp.ne.s32.totalorder %s185, %s186
      %p200 = scmp.eq.s32.totalorder %s26, 1
      %p201 = por %p199, %p200
      %p203 = scmp.ne.s32.totalorder %s186, %s202
      %p204 = scmp.eq.s32.totalorder %s26, 0
      %p205 = por %p203, %p204
      %p206 = scmp.le.s32.totalorder 1, %s20
      %p207 = scmp.lt.s32.totalorder %s20, 3
      %p208 = pnand %p206, %p207
      %p209 = pneg %p208
      // Predicated region
      $region9: #{tpu_custom_call.1} parent=5 // pred_check
        _
      $region10: #{tpu_custom_call.1} parent=5 // pred_check_branch
        %211 = sbr.rel (%p208) target = $region12
      $region11: #{tpu_custom_call.1} parent=5 // pred_region
        %s212 = ssub.s32 %s20, 1
        // Predicated region
        $region13: #{tpu_custom_call.1} parent=11 // pred_check
          %p213 = pneg %p67
        $region14: #{tpu_custom_call.1} parent=11 // pred_check_branch
          %215 = sbr.rel (%p213) target = $region16
        $region15: #{tpu_custom_call.1} parent=11 // pred_region
          %s217 = ssub.s32 14336, 14336
          %218 = vsyncadd [#allocation6], %s217
          %s219 = sshll.u32 [#allocation5], 4
          %s220 = int_to_ptr.vmem [resolvable:$true] %s219
          %225 = dma.hbm_to_vmem [thread:$0]  %s1, 14336, %s220, [#allocation6], 128, 128, 8
        $region16: #{tpu_custom_call.1} parent=11 // pred_fallthru
          _
        // Predicated region
        $region17: #{tpu_custom_call.1} parent=11 // pred_check
          %p226 = pneg %p88
        $region18: #{tpu_custom_call.1} parent=11 // pred_check_branch
          %228 = sbr.rel (%p226) target = $region20
        $region19: #{tpu_custom_call.1} parent=11 // pred_region
          _
        $region20: #{tpu_custom_call.1} parent=11 // pred_fallthru
          _
        // Predicated region
        $region21: #{tpu_custom_call.1} parent=11 // pred_check
          %p229 = pneg %p109
        $region22: #{tpu_custom_call.1} parent=11 // pred_check_branch
          %231 = sbr.rel (%p229) target = $region24
        $region23: #{tpu_custom_call.1} parent=11 // pred_region
          _
        $region24: #{tpu_custom_call.1} parent=11 // pred_fallthru
          _
        // Predicated region
        $region25: #{tpu_custom_call.1} parent=11 // pred_check
          %p232 = pneg %p130
        $region26: #{tpu_custom_call.1} parent=11 // pred_check_branch
          %234 = sbr.rel (%p232) target = $region28
        $region27: #{tpu_custom_call.1} parent=11 // pred_region
          _
        $region28: #{tpu_custom_call.1} parent=11 // pred_fallthru
          _
        // Predicated region
        $region29: #{tpu_custom_call.1} parent=11 // pred_check
          %p235 = pneg %p151
        $region30: #{tpu_custom_call.1} parent=11 // pred_check_branch
          %237 = sbr.rel (%p235) target = $region32
        $region31: #{tpu_custom_call.1} parent=11 // pred_region
          %s239 = ssub.s32 2048, 2048
          %240 = vsyncadd [#allocation6], %s239
          %s241 = sshll.u32 [#allocation7], 4
          %s242 = int_to_ptr.vmem [resolvable:$true] %s241
          %247 = dma.hbm_to_vmem [thread:$0]  %s5, 2048, %s242, [#allocation6], 64, 64, 4
        $region32: #{tpu_custom_call.1} parent=11 // pred_fallthru
          _
        // Predicated region
        $region33: #{tpu_custom_call.1} parent=11 // pred_check
          %p248 = pneg %p172
        $region34: #{tpu_custom_call.1} parent=11 // pred_check_branch
          %250 = sbr.rel (%p248) target = $region36
        $region35: #{tpu_custom_call.1} parent=11 // pred_region
          _
        $region36: #{tpu_custom_call.1} parent=11 // pred_fallthru
          _
      $region12: #{tpu_custom_call.1} parent=5 // pred_fallthru
        _
      %p251 = scmp.lt.s32.totalorder %s20, 2
      // Predicated region
      $region37: #{tpu_custom_call.1} parent=5 // pred_check
        %p252 = pneg %p251
      $region38: #{tpu_custom_call.1} parent=5 // pred_check_branch
        %254 = sbr.rel (%p252) target = $region40
      $region39: #{tpu_custom_call.1} parent=5 // pred_region
        // Predicated region
        $region41: #{tpu_custom_call.1} parent=39 // pred_check
          %p255 = pneg %p40
        $region42: #{tpu_custom_call.1} parent=39 // pred_check_branch
          %257 = sbr.rel (%p255) target = $region44
        $region43: #{tpu_custom_call.1} parent=39 // pred_region
          %s258 = sand.u32 %s30, 1
          %s259 = scalar_lea.sflag [#allocation3], %s258
          %s260 = sand.u32 %s30, 1
          %s261 = smul.addr %s260, 896
          %s262 = scalar_lea.vmem [#allocation2], %s261
          %s263 = smul.u32 32, %s20
          %s265 = ssub.s32 14336, 14336
          %266 = vsyncadd %s259, %s265
          %s267 = smul.addr %s263, 7
          %s268 = smul.addr %s267, 64
          %s269 = scalar_lea.hbm %s0, %s268
          %s270 = sshll.u32 %s262, 4
          %s271 = int_to_ptr.vmem [resolvable:$true] %s270
          %276 = dma.hbm_to_vmem [thread:$0]  %s269, 14336, %s271, %s259, 448, 448, 28
        $region44: #{tpu_custom_call.1} parent=39 // pred_fallthru
          _
      $region40: #{tpu_custom_call.1} parent=5 // pred_fallthru
        _
      %p277 = scmp.le.s32.totalorder 1, %s20
      %p278 = scmp.lt.s32.totalorder %s20, 3
      %p279 = pnand %p277, %p278
      %p280 = pneg %p279
      // Predicated region
      $region45: #{tpu_custom_call.1} parent=5 // pred_check
        _
      $region46: #{tpu_custom_call.1} parent=5 // pred_check_branch
        %282 = sbr.rel (%p279) target = $region48
      $region47: #{tpu_custom_call.1} parent=5 // pred_region
        %s283 = ssub.s32 %s20, 1
        %s284 = sand.u32 %s33, 1
        %s285 = scalar_lea.sflag [#allocation3], %s284
        %s286 = sand.u32 %s33, 1
        %s287 = smul.addr %s286, 896
        %s288 = scalar_lea.vmem [#allocation2], %s287
        // Predicated region
        $region49: #{tpu_custom_call.1} parent=47 // pred_check
          %p289 = pneg %p46
        $region50: #{tpu_custom_call.1} parent=47 // pred_check_branch
          %291 = sbr.rel (%p289) target = $region52
        $region51: #{tpu_custom_call.1} parent=47 // pred_region
          %292 = dma.done %s285, 14336
        $region52: #{tpu_custom_call.1} parent=47 // pred_fallthru
          _
        // Predicated region
        $region53: #{tpu_custom_call.1} parent=47 // pred_check
          %p293 = pneg %p67
        $region54: #{tpu_custom_call.1} parent=47 // pred_check_branch
          %295 = sbr.rel (%p293) target = $region56
        $region55: #{tpu_custom_call.1} parent=47 // pred_region
          %296 = dma.done [#allocation6], 14336
        $region56: #{tpu_custom_call.1} parent=47 // pred_fallthru
          _
        // Predicated region
        $region57: #{tpu_custom_call.1} parent=47 // pred_check
          %p297 = pneg %p151
        $region58: #{tpu_custom_call.1} parent=47 // pred_check_branch
          %299 = sbr.rel (%p297) target = $region60
        $region59: #{tpu_custom_call.1} parent=47 // pred_region
          %300 = dma.done [#allocation6], 2048
        $region60: #{tpu_custom_call.1} parent=47 // pred_fallthru
          _
        %s301 = sand.u32 %s33, 1
        %s302 = scalar_lea.sflag [#allocation3], %s301
        %s303 = sand.u32 %s33, 1
        %s304 = smul.addr %s303, 896
        %s305 = scalar_lea.vmem [#allocation2], %s304
        %p306 = pneg %p46
        %p307 = pneg %p43
        %p308 = pneg %p67
        %p309 = pneg %p64
        %p310 = pneg %p88
        %p311 = pneg %p85
        %p312 = pneg %p109
        %p313 = pneg %p106
        %p314 = pneg %p130
        %p315 = pneg %p127
        %p316 = pneg %p151
        %p317 = pneg %p148
        %p318 = pneg %p172
        %p319 = pneg %p169
        %p320 = pneg %p198
        %p321 = pneg %p195
        %s322 = sand.u32 %s185, 1
        %s323 = scalar_lea.sflag [#allocation4], %s322
        %s324 = sand.u32 %s185, 1
        %s325 = smul.addr %s324, 256
        %s326 = scalar_lea.vmem [#allocation8], %s325
        %s327 = smul.u32 32, %s25
        %s328 = smul.u32 32, %s25
        %v330 = vld [vmem:[%s288] sm:$0xff]
        %v331 = vld [vmem:[%s288 + $0x8] sm:$0xff]
        %v332 = vld [vmem:[%s288 + $0x10] sm:$0xff]
        %v333 = vld [vmem:[%s288 + $0x18] sm:$0xf]
        %v334 = vld [vmem:[%s288 + $0x1c] sm:$0xff]
        %v335 = vld [vmem:[%s288 + $0x24] sm:$0xff]
        %v336 = vld [vmem:[%s288 + $0x2c] sm:$0xff]
        %v337 = vld [vmem:[%s288 + $0x34] sm:$0xf]
        %v338 = vld [vmem:[%s288 + $0x38] sm:$0xff]
        %v339 = vld [vmem:[%s288 + $0x40] sm:$0xff]
        %v340 = vld [vmem:[%s288 + $0x48] sm:$0xff]
        %v341 = vld [vmem:[%s288 + $0x50] sm:$0xf]
        %v342 = vld [vmem:[%s288 + $0x54] sm:$0xff]
        %v343 = vld [vmem:[%s288 + $0x5c] sm:$0xff]
        %v344 = vld [vmem:[%s288 + $0x64] sm:$0xff]
        %v345 = vld [vmem:[%s288 + $0x6c] sm:$0xf]
        %v346 = vld [vmem:[%s288 + $0x70] sm:$0xff]
        %v347 = vld [vmem:[%s288 + $0x78] sm:$0xff]
        %v348 = vld [vmem:[%s288 + $0x80] sm:$0xff]
        %v349 = vld [vmem:[%s288 + $0x88] sm:$0xf]
        %v350 = vld [vmem:[%s288 + $0x8c] sm:$0xff]
        %v351 = vld [vmem:[%s288 + $0x94] sm:$0xff]
        %v352 = vld [vmem:[%s288 + $0x9c] sm:$0xff]
        %v353 = vld [vmem:[%s288 + $0xa4] sm:$0xf]
        %v354 = vld [vmem:[%s288 + $0xa8] sm:$0xff]
        %v355 = vld [vmem:[%s288 + $0xb0] sm:$0xff]
        %v356 = vld [vmem:[%s288 + $0xb8] sm:$0xff]
        %v357 = vld [vmem:[%s288 + $0xc0] sm:$0xf]
        %v358 = vld [vmem:[%s288 + $0xc4] sm:$0xff]
        %v359 = vld [vmem:[%s288 + $0xcc] sm:$0xff]
        %v360 = vld [vmem:[%s288 + $0xd4] sm:$0xff]
        %v361 = vld [vmem:[%s288 + $0xdc] sm:$0xf]
        %v362 = vld [vmem:[%s288 + $0xe0] sm:$0xff]
        %v363 = vld [vmem:[%s288 + $0xe8] sm:$0xff]
        %v364 = vld [vmem:[%s288 + $0xf0] sm:$0xff]
        %v365 = vld [vmem:[%s288 + $0xf8] sm:$0xf]
        %v366 = vld [vmem:[%s288 + $0xfc] sm:$0xff]
        %v367 = vld [vmem:[%s288 + $0x104] sm:$0xff]
        %v368 = vld [vmem:[%s288 + $0x10c] sm:$0xff]
        %v369 = vld [vmem:[%s288 + $0x114] sm:$0xf]
        %v370 = vld [vmem:[%s288 + $0x118] sm:$0xff]
        %v371 = vld [vmem:[%s288 + $0x120] sm:$0xff]
        %v372 = vld [vmem:[%s288 + $0x128] sm:$0xff]
        %v373 = vld [vmem:[%s288 + $0x130] sm:$0xf]
        %v374 = vld [vmem:[%s288 + $0x134] sm:$0xff]
        %v375 = vld [vmem:[%s288 + $0x13c] sm:$0xff]
        %v376 = vld [vmem:[%s288 + $0x144] sm:$0xff]
        %v377 = vld [vmem:[%s288 + $0x14c] sm:$0xf]
        %v378 = vld [vmem:[%s288 + $0x150] sm:$0xff]
        %v379 = vld [vmem:[%s288 + $0x158] sm:$0xff]
        %v380 = vld [vmem:[%s288 + $0x160] sm:$0xff]
        %v381 = vld [vmem:[%s288 + $0x168] sm:$0xf]
        %v382 = vld [vmem:[%s288 + $0x16c] sm:$0xff]
        %v383 = vld [vmem:[%s288 + $0x174] sm:$0xff]
        %v384 = vld [vmem:[%s288 + $0x17c] sm:$0xff]
        %v385 = vld [vmem:[%s288 + $0x184] sm:$0xf]
        %v386 = vld [vmem:[%s288 + $0x188] sm:$0xff]
        %v387 = vld [vmem:[%s288 + $0x190] sm:$0xff]
        %v388 = vld [vmem:[%s288 + $0x198] sm:$0xff]
        %v389 = vld [vmem:[%s288 + $0x1a0] sm:$0xf]
        %v390 = vld [vmem:[%s288 + $0x1a4] sm:$0xff]
        %v391 = vld [vmem:[%s288 + $0x1ac] sm:$0xff]
        %v392 = vld [vmem:[%s288 + $0x1b4] sm:$0xff]
        %v393 = vld [vmem:[%s288 + $0x1bc] sm:$0xf]
        %v394 = vld [vmem:[%s288 + $0x1c0] sm:$0xff]
        %v395 = vld [vmem:[%s288 + $0x1c8] sm:$0xff]
        %v396 = vld [vmem:[%s288 + $0x1d0] sm:$0xff]
        %v397 = vld [vmem:[%s288 + $0x1d8] sm:$0xf]
        %v398 = vld [vmem:[%s288 + $0x1dc] sm:$0xff]
        %v399 = vld [vmem:[%s288 + $0x1e4] sm:$0xff]
        %v400 = vld [vmem:[%s288 + $0x1ec] sm:$0xff]
        %v401 = vld [vmem:[%s288 + $0x1f4] sm:$0xf]
        %v402 = vld [vmem:[%s288 + $0x1f8] sm:$0xff]
        %v403 = vld [vmem:[%s288 + $0x200] sm:$0xff]
        %v404 = vld [vmem:[%s288 + $0x208] sm:$0xff]
        %v405 = vld [vmem:[%s288 + $0x210] sm:$0xf]
        %v406 = vld [vmem:[%s288 + $0x214] sm:$0xff]
        %v407 = vld [vmem:[%s288 + $0x21c] sm:$0xff]
        %v408 = vld [vmem:[%s288 + $0x224] sm:$0xff]
        %v409 = vld [vmem:[%s288 + $0x22c] sm:$0xf]
        %v410 = vld [vmem:[%s288 + $0x230] sm:$0xff]
        %v411 = vld [vmem:[%s288 + $0x238] sm:$0xff]
        %v412 = vld [vmem:[%s288 + $0x240] sm:$0xff]
        %v413 = vld [vmem:[%s288 + $0x248] sm:$0xf]
        %v414 = vld [vmem:[%s288 + $0x24c] sm:$0xff]
        %v415 = vld [vmem:[%s288 + $0x254] sm:$0xff]
        %v416 = vld [vmem:[%s288 + $0x25c] sm:$0xff]
        %v417 = vld [vmem:[%s288 + $0x264] sm:$0xf]
        %v418 = vld [vmem:[%s288 + $0x268] sm:$0xff]
        %v419 = vld [vmem:[%s288 + $0x270] sm:$0xff]
        %v420 = vld [vmem:[%s288 + $0x278] sm:$0xff]
        %v421 = vld [vmem:[%s288 + $0x280] sm:$0xf]
        %v422 = vld [vmem:[%s288 + $0x284] sm:$0xff]
        %v423 = vld [vmem:[%s288 + $0x28c] sm:$0xff]
        %v424 = vld [vmem:[%s288 + $0x294] sm:$0xff]
        %v425 = vld [vmem:[%s288 + $0x29c] sm:$0xf]
        %v426 = vld [vmem:[%s288 + $0x2a0] sm:$0xff]
        %v427 = vld [vmem:[%s288 + $0x2a8] sm:$0xff]
        %v428 = vld [vmem:[%s288 + $0x2b0] sm:$0xff]
        %v429 = vld [vmem:[%s288 + $0x2b8] sm:$0xf]
        %v430 = vld [vmem:[%s288 + $0x2bc] sm:$0xff]
        %v431 = vld [vmem:[%s288 + $0x2c4] sm:$0xff]
        %v432 = vld [vmem:[%s288 + $0x2cc] sm:$0xff]
        %v433 = vld [vmem:[%s288 + $0x2d4] sm:$0xf]
        %v434 = vld [vmem:[%s288 + $0x2d8] sm:$0xff]
        %v435 = vld [vmem:[%s288 + $0x2e0] sm:$0xff]
        %v436 = vld [vmem:[%s288 + $0x2e8] sm:$0xff]
        %v437 = vld [vmem:[%s288 + $0x2f0] sm:$0xf]
        %v438 = vld [vmem:[%s288 + $0x2f4] sm:$0xff]
        %v439 = vld [vmem:[%s288 + $0x2fc] sm:$0xff]
        %v440 = vld [vmem:[%s288 + $0x304] sm:$0xff]
        %v441 = vld [vmem:[%s288 + $0x30c] sm:$0xf]
        %v442 = vld [vmem:[%s288 + $0x310] sm:$0xff]
        %v443 = vld [vmem:[%s288 + $0x318] sm:$0xff]
        %v444 = vld [vmem:[%s288 + $0x320] sm:$0xff]
        %v445 = vld [vmem:[%s288 + $0x328] sm:$0xf]
        %v446 = vld [vmem:[%s288 + $0x32c] sm:$0xff]
        %v447 = vld [vmem:[%s288 + $0x334] sm:$0xff]
        %v448 = vld [vmem:[%s288 + $0x33c] sm:$0xff]
        %v449 = vld [vmem:[%s288 + $0x344] sm:$0xf]
        %v450 = vld [vmem:[%s288 + $0x348] sm:$0xff]
        %v451 = vld [vmem:[%s288 + $0x350] sm:$0xff]
        %v452 = vld [vmem:[%s288 + $0x358] sm:$0xff]
        %v453 = vld [vmem:[%s288 + $0x360] sm:$0xf]
        %v454 = vld [vmem:[%s288 + $0x364] sm:$0xff]
        %v455 = vld [vmem:[%s288 + $0x36c] sm:$0xff]
        %v456 = vld [vmem:[%s288 + $0x374] sm:$0xff]
        %v457 = vld [vmem:[%s288 + $0x37c] sm:$0xf]
        %v458 = vld [vmem:[#allocation5] sm:$0xff]
        %v459 = vld [vmem:[#allocation5 + $0x8] sm:$0xff]
        %v460 = vld [vmem:[#allocation5 + $0x10] sm:$0xff]
        %v461 = vld [vmem:[#allocation5 + $0x18] sm:$0xff]
        %v462 = vld [vmem:[#allocation5 + $0x20] sm:$0xff]
        %v463 = vld [vmem:[#allocation5 + $0x28] sm:$0xff]
        %v464 = vld [vmem:[#allocation5 + $0x30] sm:$0xff]
        %v465 = vld [vmem:[#allocation5 + $0x38] sm:$0xff]
        %v466 = vld [vmem:[#allocation5 + $0x40] sm:$0xff]
        %v467 = vld [vmem:[#allocation5 + $0x48] sm:$0xff]
        %v468 = vld [vmem:[#allocation5 + $0x50] sm:$0xff]
        %v469 = vld [vmem:[#allocation5 + $0x58] sm:$0xff]
        %v470 = vld [vmem:[#allocation5 + $0x60] sm:$0xff]
        %v471 = vld [vmem:[#allocation5 + $0x68] sm:$0xff]
        %v472 = vld [vmem:[#allocation5 + $0x70] sm:$0xff]
        %v473 = vld [vmem:[#allocation5 + $0x78] sm:$0xff]
        %v474 = vld [vmem:[#allocation5 + $0x80] sm:$0xff]
        %v475 = vld [vmem:[#allocation5 + $0x88] sm:$0xff]
        %v476 = vld [vmem:[#allocation5 + $0x90] sm:$0xff]
        %v477 = vld [vmem:[#allocation5 + $0x98] sm:$0xff]
        %v478 = vld [vmem:[#allocation5 + $0xa0] sm:$0xff]
        %v479 = vld [vmem:[#allocation5 + $0xa8] sm:$0xff]
        %v480 = vld [vmem:[#allocation5 + $0xb0] sm:$0xff]
        %v481 = vld [vmem:[#allocation5 + $0xb8] sm:$0xff]
        %v482 = vld [vmem:[#allocation5 + $0xc0] sm:$0xff]
        %v483 = vld [vmem:[#allocation5 + $0xc8] sm:$0xff]
        %v484 = vld [vmem:[#allocation5 + $0xd0] sm:$0xff]
        %v485 = vld [vmem:[#allocation5 + $0xd8] sm:$0xff]
        %v486 = vld [vmem:[#allocation5 + $0xe0] sm:$0xff]
        %v487 = vld [vmem:[#allocation5 + $0xe8] sm:$0xff]
        %v488 = vld [vmem:[#allocation5 + $0xf0] sm:$0xff]
        %v489 = vld [vmem:[#allocation5 + $0xf8] sm:$0xff]
        %v490 = vld [vmem:[#allocation5 + $0x100] sm:$0xff]
        %v491 = vld [vmem:[#allocation5 + $0x108] sm:$0xff]
        %v492 = vld [vmem:[#allocation5 + $0x110] sm:$0xff]
        %v493 = vld [vmem:[#allocation5 + $0x118] sm:$0xff]
        %v494 = vld [vmem:[#allocation5 + $0x120] sm:$0xff]
        %v495 = vld [vmem:[#allocation5 + $0x128] sm:$0xff]
        %v496 = vld [vmem:[#allocation5 + $0x130] sm:$0xff]
        %v497 = vld [vmem:[#allocation5 + $0x138] sm:$0xff]
        %v498 = vld [vmem:[#allocation5 + $0x140] sm:$0xff]
        %v499 = vld [vmem:[#allocation5 + $0x148] sm:$0xff]
        %v500 = vld [vmem:[#allocation5 + $0x150] sm:$0xff]
        %v501 = vld [vmem:[#allocation5 + $0x158] sm:$0xff]
        %v502 = vld [vmem:[#allocation5 + $0x160] sm:$0xff]
        %v503 = vld [vmem:[#allocation5 + $0x168] sm:$0xff]
        %v504 = vld [vmem:[#allocation5 + $0x170] sm:$0xff]
        %v505 = vld [vmem:[#allocation5 + $0x178] sm:$0xff]
        %v506 = vld [vmem:[#allocation5 + $0x180] sm:$0xff]
        %v507 = vld [vmem:[#allocation5 + $0x188] sm:$0xff]
        %v508 = vld [vmem:[#allocation5 + $0x190] sm:$0xff]
        %v509 = vld [vmem:[#allocation5 + $0x198] sm:$0xff]
        %v510 = vld [vmem:[#allocation5 + $0x1a0] sm:$0xff]
        %v511 = vld [vmem:[#allocation5 + $0x1a8] sm:$0xff]
        %v512 = vld [vmem:[#allocation5 + $0x1b0] sm:$0xff]
        %v513 = vld [vmem:[#allocation5 + $0x1b8] sm:$0xff]
        %v514 = vld [vmem:[#allocation5 + $0x1c0] sm:$0xff]
        %v515 = vld [vmem:[#allocation5 + $0x1c8] sm:$0xff]
        %v516 = vld [vmem:[#allocation5 + $0x1d0] sm:$0xff]
        %v517 = vld [vmem:[#allocation5 + $0x1d8] sm:$0xff]
        %v518 = vld [vmem:[#allocation5 + $0x1e0] sm:$0xff]
        %v519 = vld [vmem:[#allocation5 + $0x1e8] sm:$0xff]
        %v520 = vld [vmem:[#allocation5 + $0x1f0] sm:$0xff]
        %v521 = vld [vmem:[#allocation5 + $0x1f8] sm:$0xff]
        %v522 = vld [vmem:[#allocation5 + $0x200] sm:$0xff]
        %v523 = vld [vmem:[#allocation5 + $0x208] sm:$0xff]
        %v524 = vld [vmem:[#allocation5 + $0x210] sm:$0xff]
        %v525 = vld [vmem:[#allocation5 + $0x218] sm:$0xff]
        %v526 = vld [vmem:[#allocation5 + $0x220] sm:$0xff]
        %v527 = vld [vmem:[#allocation5 + $0x228] sm:$0xff]
        %v528 = vld [vmem:[#allocation5 + $0x230] sm:$0xff]
        %v529 = vld [vmem:[#allocation5 + $0x238] sm:$0xff]
        %v530 = vld [vmem:[#allocation5 + $0x240] sm:$0xff]
        %v531 = vld [vmem:[#allocation5 + $0x248] sm:$0xff]
        %v532 = vld [vmem:[#allocation5 + $0x250] sm:$0xff]
        %v533 = vld [vmem:[#allocation5 + $0x258] sm:$0xff]
        %v534 = vld [vmem:[#allocation5 + $0x260] sm:$0xff]
        %v535 = vld [vmem:[#allocation5 + $0x268] sm:$0xff]
        %v536 = vld [vmem:[#allocation5 + $0x270] sm:$0xff]
        %v537 = vld [vmem:[#allocation5 + $0x278] sm:$0xff]
        %v538 = vld [vmem:[#allocation5 + $0x280] sm:$0xff]
        %v539 = vld [vmem:[#allocation5 + $0x288] sm:$0xff]
        %v540 = vld [vmem:[#allocation5 + $0x290] sm:$0xff]
        %v541 = vld [vmem:[#allocation5 + $0x298] sm:$0xff]
        %v542 = vld [vmem:[#allocation5 + $0x2a0] sm:$0xff]
        %v543 = vld [vmem:[#allocation5 + $0x2a8] sm:$0xff]
        %v544 = vld [vmem:[#allocation5 + $0x2b0] sm:$0xff]
        %v545 = vld [vmem:[#allocation5 + $0x2b8] sm:$0xff]
        %v546 = vld [vmem:[#allocation5 + $0x2c0] sm:$0xff]
        %v547 = vld [vmem:[#allocation5 + $0x2c8] sm:$0xff]
        %v548 = vld [vmem:[#allocation5 + $0x2d0] sm:$0xff]
        %v549 = vld [vmem:[#allocation5 + $0x2d8] sm:$0xff]
        %v550 = vld [vmem:[#allocation5 + $0x2e0] sm:$0xff]
        %v551 = vld [vmem:[#allocation5 + $0x2e8] sm:$0xff]
        %v552 = vld [vmem:[#allocation5 + $0x2f0] sm:$0xff]
        %v553 = vld [vmem:[#allocation5 + $0x2f8] sm:$0xff]
        %v554 = vld [vmem:[#allocation5 + $0x300] sm:$0xff]
        %v555 = vld [vmem:[#allocation5 + $0x308] sm:$0xff]
        %v556 = vld [vmem:[#allocation5 + $0x310] sm:$0xff]
        %v557 = vld [vmem:[#allocation5 + $0x318] sm:$0xff]
        %v558 = vld [vmem:[#allocation5 + $0x320] sm:$0xff]
        %v559 = vld [vmem:[#allocation5 + $0x328] sm:$0xff]
        %v560 = vld [vmem:[#allocation5 + $0x330] sm:$0xff]
        %v561 = vld [vmem:[#allocation5 + $0x338] sm:$0xff]
        %v562 = vld [vmem:[#allocation5 + $0x340] sm:$0xff]
        %v563 = vld [vmem:[#allocation5 + $0x348] sm:$0xff]
        %v564 = vld [vmem:[#allocation5 + $0x350] sm:$0xff]
        %v565 = vld [vmem:[#allocation5 + $0x358] sm:$0xff]
        %v566 = vld [vmem:[#allocation5 + $0x360] sm:$0xff]
        %v567 = vld [vmem:[#allocation5 + $0x368] sm:$0xff]
        %v568 = vld [vmem:[#allocation5 + $0x370] sm:$0xff]
        %v569 = vld [vmem:[#allocation5 + $0x378] sm:$0xff]
        %v570 = vld [vmem:[%s2] sm:$0x3]
        %v572 = vlaneseq
        %v573 = vshrl.u32 %v572, 7
        %v574 = vsub.s32 0, %v573
        %v575 = vrot.slane %v570, %v574
        %v576 = vlaneseq
        %v577 = vshrl.u32 %v576, 7
        %v578 = vsub.s32 1, %v577
        %v579 = vrot.slane %v570, %v578
        %v710 = vunpack.c.l.b16 %v330
        %v711 = vunpack.c.h.b16 %v330
        %v712 = vunpack.c.l.b16 %v331
        %v713 = vunpack.c.h.b16 %v331
        %v714 = vunpack.c.l.b16 %v332
        %v715 = vunpack.c.h.b16 %v332
        %v716 = vunpack.c.l.b16 %v333
        %v717 = vunpack.c.l.b16 %v334
        %v718 = vunpack.c.h.b16 %v334
        %v719 = vunpack.c.l.b16 %v335
        %v720 = vunpack.c.h.b16 %v335
        %v721 = vunpack.c.l.b16 %v336
        %v722 = vunpack.c.h.b16 %v336
        %v723 = vunpack.c.l.b16 %v337
        %v724 = vunpack.c.l.b16 %v338
        %v725 = vunpack.c.h.b16 %v338
        %v726 = vunpack.c.l.b16 %v339
        %v727 = vunpack.c.h.b16 %v339
        %v728 = vunpack.c.l.b16 %v340
        %v729 = vunpack.c.h.b16 %v340
        %v730 = vunpack.c.l.b16 %v341
        %v731 = vunpack.c.l.b16 %v342
        %v732 = vunpack.c.h.b16 %v342
        %v733 = vunpack.c.l.b16 %v343
        %v734 = vunpack.c.h.b16 %v343
        %v735 = vunpack.c.l.b16 %v344
        %v736 = vunpack.c.h.b16 %v344
        %v737 = vunpack.c.l.b16 %v345
        %v738 = vunpack.c.l.b16 %v346
        %v739 = vunpack.c.h.b16 %v346
        %v740 = vunpack.c.l.b16 %v347
        %v741 = vunpack.c.h.b16 %v347
        %v742 = vunpack.c.l.b16 %v348
        %v743 = vunpack.c.h.b16 %v348
        %v744 = vunpack.c.l.b16 %v349
        %v745 = vunpack.c.l.b16 %v350
        %v746 = vunpack.c.h.b16 %v350
        %v747 = vunpack.c.l.b16 %v351
        %v748 = vunpack.c.h.b16 %v351
        %v749 = vunpack.c.l.b16 %v352
        %v750 = vunpack.c.h.b16 %v352
        %v751 = vunpack.c.l.b16 %v353
        %v752 = vunpack.c.l.b16 %v354
        %v753 = vunpack.c.h.b16 %v354
        %v754 = vunpack.c.l.b16 %v355
        %v755 = vunpack.c.h.b16 %v355
        %v756 = vunpack.c.l.b16 %v356
        %v757 = vunpack.c.h.b16 %v356
        %v758 = vunpack.c.l.b16 %v357
        %v759 = vunpack.c.l.b16 %v358
        %v760 = vunpack.c.h.b16 %v358
        %v761 = vunpack.c.l.b16 %v359
        %v762 = vunpack.c.h.b16 %v359
        %v763 = vunpack.c.l.b16 %v360
        %v764 = vunpack.c.h.b16 %v360
        %v765 = vunpack.c.l.b16 %v361
        %v766 = vunpack.c.l.b16 %v362
        %v767 = vunpack.c.h.b16 %v362
        %v768 = vunpack.c.l.b16 %v363
        %v769 = vunpack.c.h.b16 %v363
        %v770 = vunpack.c.l.b16 %v364
        %v771 = vunpack.c.h.b16 %v364
        %v772 = vunpack.c.l.b16 %v365
        %v773 = vunpack.c.l.b16 %v366
        %v774 = vunpack.c.h.b16 %v366
        %v775 = vunpack.c.l.b16 %v367
        %v776 = vunpack.c.h.b16 %v367
        %v777 = vunpack.c.l.b16 %v368
        %v778 = vunpack.c.h.b16 %v368
        %v779 = vunpack.c.l.b16 %v369
        %v780 = vunpack.c.l.b16 %v370
        %v781 = vunpack.c.h.b16 %v370
        %v782 = vunpack.c.l.b16 %v371
        %v783 = vunpack.c.h.b16 %v371
        %v784 = vunpack.c.l.b16 %v372
        %v785 = vunpack.c.h.b16 %v372
        %v786 = vunpack.c.l.b16 %v373
        %v787 = vunpack.c.l.b16 %v374
        %v788 = vunpack.c.h.b16 %v374
        %v789 = vunpack.c.l.b16 %v375
        %v790 = vunpack.c.h.b16 %v375
        %v791 = vunpack.c.l.b16 %v376
        %v792 = vunpack.c.h.b16 %v376
        %v793 = vunpack.c.l.b16 %v377
        %v794 = vunpack.c.l.b16 %v378
        %v795 = vunpack.c.h.b16 %v378
        %v796 = vunpack.c.l.b16 %v379
        %v797 = vunpack.c.h.b16 %v379
        %v798 = vunpack.c.l.b16 %v380
        %v799 = vunpack.c.h.b16 %v380
        %v800 = vunpack.c.l.b16 %v381
        %v801 = vunpack.c.l.b16 %v382
        %v802 = vunpack.c.h.b16 %v382
        %v803 = vunpack.c.l.b16 %v383
        %v804 = vunpack.c.h.b16 %v383
        %v805 = vunpack.c.l.b16 %v384
        %v806 = vunpack.c.h.b16 %v384
        %v807 = vunpack.c.l.b16 %v385
        %v808 = vunpack.c.l.b16 %v386
        %v809 = vunpack.c.h.b16 %v386
        %v810 = vunpack.c.l.b16 %v387
        %v811 = vunpack.c.h.b16 %v387
        %v812 = vunpack.c.l.b16 %v388
        %v813 = vunpack.c.h.b16 %v388
        %v814 = vunpack.c.l.b16 %v389
        %v815 = vunpack.c.l.b16 %v390
        %v816 = vunpack.c.h.b16 %v390
        %v817 = vunpack.c.l.b16 %v391
        %v818 = vunpack.c.h.b16 %v391
        %v819 = vunpack.c.l.b16 %v392
        %v820 = vunpack.c.h.b16 %v392
        %v821 = vunpack.c.l.b16 %v393
        %v822 = vunpack.c.l.b16 %v394
        %v823 = vunpack.c.h.b16 %v394
        %v824 = vunpack.c.l.b16 %v395
        %v825 = vunpack.c.h.b16 %v395
        %v826 = vunpack.c.l.b16 %v396
        %v827 = vunpack.c.h.b16 %v396
        %v828 = vunpack.c.l.b16 %v397
        %v829 = vunpack.c.l.b16 %v398
        %v830 = vunpack.c.h.b16 %v398
        %v831 = vunpack.c.l.b16 %v399
        %v832 = vunpack.c.h.b16 %v399
        %v833 = vunpack.c.l.b16 %v400
        %v834 = vunpack.c.h.b16 %v400
        %v835 = vunpack.c.l.b16 %v401
        %v836 = vunpack.c.l.b16 %v402
        %v837 = vunpack.c.h.b16 %v402
        %v838 = vunpack.c.l.b16 %v403
        %v839 = vunpack.c.h.b16 %v403
        %v840 = vunpack.c.l.b16 %v404
        %v841 = vunpack.c.h.b16 %v404
        %v842 = vunpack.c.l.b16 %v405
        %v843 = vunpack.c.l.b16 %v406
        %v844 = vunpack.c.h.b16 %v406
        %v845 = vunpack.c.l.b16 %v407
        %v846 = vunpack.c.h.b16 %v407
        %v847 = vunpack.c.l.b16 %v408
        %v848 = vunpack.c.h.b16 %v408
        %v849 = vunpack.c.l.b16 %v409
        %v850 = vunpack.c.l.b16 %v410
        %v851 = vunpack.c.h.b16 %v410
        %v852 = vunpack.c.l.b16 %v411
        %v853 = vunpack.c.h.b16 %v411
        %v854 = vunpack.c.l.b16 %v412
        %v855 = vunpack.c.h.b16 %v412
        %v856 = vunpack.c.l.b16 %v413
        %v857 = vunpack.c.l.b16 %v414
        %v858 = vunpack.c.h.b16 %v414
        %v859 = vunpack.c.l.b16 %v415
        %v860 = vunpack.c.h.b16 %v415
        %v861 = vunpack.c.l.b16 %v416
        %v862 = vunpack.c.h.b16 %v416
        %v863 = vunpack.c.l.b16 %v417
        %v864 = vunpack.c.l.b16 %v418
        %v865 = vunpack.c.h.b16 %v418
        %v866 = vunpack.c.l.b16 %v419
        %v867 = vunpack.c.h.b16 %v419
        %v868 = vunpack.c.l.b16 %v420
        %v869 = vunpack.c.h.b16 %v420
        %v870 = vunpack.c.l.b16 %v421
        %v871 = vunpack.c.l.b16 %v422
        %v872 = vunpack.c.h.b16 %v422
        %v873 = vunpack.c.l.b16 %v423
        %v874 = vunpack.c.h.b16 %v423
        %v875 = vunpack.c.l.b16 %v424
        %v876 = vunpack.c.h.b16 %v424
        %v877 = vunpack.c.l.b16 %v425
        %v878 = vunpack.c.l.b16 %v426
        %v879 = vunpack.c.h.b16 %v426
        %v880 = vunpack.c.l.b16 %v427
        %v881 = vunpack.c.h.b16 %v427
        %v882 = vunpack.c.l.b16 %v428
        %v883 = vunpack.c.h.b16 %v428
        %v884 = vunpack.c.l.b16 %v429
        %v885 = vunpack.c.l.b16 %v430
        %v886 = vunpack.c.h.b16 %v430
        %v887 = vunpack.c.l.b16 %v431
        %v888 = vunpack.c.h.b16 %v431
        %v889 = vunpack.c.l.b16 %v432
        %v890 = vunpack.c.h.b16 %v432
        %v891 = vunpack.c.l.b16 %v433
        %v892 = vunpack.c.l.b16 %v434
        %v893 = vunpack.c.h.b16 %v434
        %v894 = vunpack.c.l.b16 %v435
        %v895 = vunpack.c.h.b16 %v435
        %v896 = vunpack.c.l.b16 %v436
        %v897 = vunpack.c.h.b16 %v436
        %v898 = vunpack.c.l.b16 %v437
        %v899 = vunpack.c.l.b16 %v438
        %v900 = vunpack.c.h.b16 %v438
        %v901 = vunpack.c.l.b16 %v439
        %v902 = vunpack.c.h.b16 %v439
        %v903 = vunpack.c.l.b16 %v440
        %v904 = vunpack.c.h.b16 %v440
        %v905 = vunpack.c.l.b16 %v441
        %v906 = vunpack.c.l.b16 %v442
        %v907 = vunpack.c.h.b16 %v442
        %v908 = vunpack.c.l.b16 %v443
        %v909 = vunpack.c.h.b16 %v443
        %v910 = vunpack.c.l.b16 %v444
        %v911 = vunpack.c.h.b16 %v444
        %v912 = vunpack.c.l.b16 %v445
        %v913 = vunpack.c.l.b16 %v446
        %v914 = vunpack.c.h.b16 %v446
        %v915 = vunpack.c.l.b16 %v447
        %v916 = vunpack.c.h.b16 %v447
        %v917 = vunpack.c.l.b16 %v448
        %v918 = vunpack.c.h.b16 %v448
        %v919 = vunpack.c.l.b16 %v449
        %v920 = vunpack.c.l.b16 %v450
        %v921 = vunpack.c.h.b16 %v450
        %v922 = vunpack.c.l.b16 %v451
        %v923 = vunpack.c.h.b16 %v451
        %v924 = vunpack.c.l.b16 %v452
        %v925 = vunpack.c.h.b16 %v452
        %v926 = vunpack.c.l.b16 %v453
        %v927 = vunpack.c.l.b16 %v454
        %v928 = vunpack.c.h.b16 %v454
        %v929 = vunpack.c.l.b16 %v455
        %v930 = vunpack.c.h.b16 %v455
        %v931 = vunpack.c.l.b16 %v456
        %v932 = vunpack.c.h.b16 %v456
        %v933 = vunpack.c.l.b16 %v457
        %v934 = vpack.c.b16 %v717, %v710
        %v935 = vpack.c.b16 %v718, %v711
        %v936 = vpack.c.b16 %v719, %v712
        %v937 = vpack.c.b16 %v720, %v713
        %v938 = vpack.c.b16 %v721, %v714
        %v939 = vpack.c.b16 %v722, %v715
        %v940 = vpack.c.b16 %v723, %v716
        %v941 = vpack.c.b16 %v731, %v724
        %v942 = vpack.c.b16 %v732, %v725
        %v943 = vpack.c.b16 %v733, %v726
        %v944 = vpack.c.b16 %v734, %v727
        %v945 = vpack.c.b16 %v735, %v728
        %v946 = vpack.c.b16 %v736, %v729
        %v947 = vpack.c.b16 %v737, %v730
        %v948 = vpack.c.b16 %v745, %v738
        %v949 = vpack.c.b16 %v746, %v739
        %v950 = vpack.c.b16 %v747, %v740
        %v951 = vpack.c.b16 %v748, %v741
        %v952 = vpack.c.b16 %v749, %v742
        %v953 = vpack.c.b16 %v750, %v743
        %v954 = vpack.c.b16 %v751, %v744
        %v955 = vpack.c.b16 %v759, %v752
        %v956 = vpack.c.b16 %v760, %v753
        %v957 = vpack.c.b16 %v761, %v754
        %v958 = vpack.c.b16 %v762, %v755
        %v959 = vpack.c.b16 %v763, %v756
        %v960 = vpack.c.b16 %v764, %v757
        %v961 = vpack.c.b16 %v765, %v758
        %v962 = vpack.c.b16 %v773, %v766
        %v963 = vpack.c.b16 %v774, %v767
        %v964 = vpack.c.b16 %v775, %v768
        %v965 = vpack.c.b16 %v776, %v769
        %v966 = vpack.c.b16 %v777, %v770
        %v967 = vpack.c.b16 %v778, %v771
        %v968 = vpack.c.b16 %v779, %v772
        %v969 = vpack.c.b16 %v787, %v780
        %v970 = vpack.c.b16 %v788, %v781
        %v971 = vpack.c.b16 %v789, %v782
        %v972 = vpack.c.b16 %v790, %v783
        %v973 = vpack.c.b16 %v791, %v784
        %v974 = vpack.c.b16 %v792, %v785
        %v975 = vpack.c.b16 %v793, %v786
        %v976 = vpack.c.b16 %v801, %v794
        %v977 = vpack.c.b16 %v802, %v795
        %v978 = vpack.c.b16 %v803, %v796
        %v979 = vpack.c.b16 %v804, %v797
        %v980 = vpack.c.b16 %v805, %v798
        %v981 = vpack.c.b16 %v806, %v799
        %v982 = vpack.c.b16 %v807, %v800
        %v983 = vpack.c.b16 %v815, %v808
        %v984 = vpack.c.b16 %v816, %v809
        %v985 = vpack.c.b16 %v817, %v810
        %v986 = vpack.c.b16 %v818, %v811
        %v987 = vpack.c.b16 %v819, %v812
        %v988 = vpack.c.b16 %v820, %v813
        %v989 = vpack.c.b16 %v821, %v814
        %v990 = vpack.c.b16 %v829, %v822
        %v991 = vpack.c.b16 %v830, %v823
        %v992 = vpack.c.b16 %v831, %v824
        %v993 = vpack.c.b16 %v832, %v825
        %v994 = vpack.c.b16 %v833, %v826
        %v995 = vpack.c.b16 %v834, %v827
        %v996 = vpack.c.b16 %v835, %v828
        %v997 = vpack.c.b16 %v843, %v836
        %v998 = vpack.c.b16 %v844, %v837
        %v999 = vpack.c.b16 %v845, %v838
        %v1000 = vpack.c.b16 %v846, %v839
        %v1001 = vpack.c.b16 %v847, %v840
        %v1002 = vpack.c.b16 %v848, %v841
        %v1003 = vpack.c.b16 %v849, %v842
        %v1004 = vpack.c.b16 %v857, %v850
        %v1005 = vpack.c.b16 %v858, %v851
        %v1006 = vpack.c.b16 %v859, %v852
        %v1007 = vpack.c.b16 %v860, %v853
        %v1008 = vpack.c.b16 %v861, %v854
        %v1009 = vpack.c.b16 %v862, %v855
        %v1010 = vpack.c.b16 %v863, %v856
        %v1011 = vpack.c.b16 %v871, %v864
        %v1012 = vpack.c.b16 %v872, %v865
        %v1013 = vpack.c.b16 %v873, %v866
        %v1014 = vpack.c.b16 %v874, %v867
        %v1015 = vpack.c.b16 %v875, %v868
        %v1016 = vpack.c.b16 %v876, %v869
        %v1017 = vpack.c.b16 %v877, %v870
        %v1018 = vpack.c.b16 %v885, %v878
        %v1019 = vpack.c.b16 %v886, %v879
        %v1020 = vpack.c.b16 %v887, %v880
        %v1021 = vpack.c.b16 %v888, %v881
        %v1022 = vpack.c.b16 %v889, %v882
        %v1023 = vpack.c.b16 %v890, %v883
        %v1024 = vpack.c.b16 %v891, %v884
        %v1025 = vpack.c.b16 %v899, %v892
        %v1026 = vpack.c.b16 %v900, %v893
        %v1027 = vpack.c.b16 %v901, %v894
        %v1028 = vpack.c.b16 %v902, %v895
        %v1029 = vpack.c.b16 %v903, %v896
        %v1030 = vpack.c.b16 %v904, %v897
        %v1031 = vpack.c.b16 %v905, %v898
        %v1032 = vpack.c.b16 %v913, %v906
        %v1033 = vpack.c.b16 %v914, %v907
        %v1034 = vpack.c.b16 %v915, %v908
        %v1035 = vpack.c.b16 %v916, %v909
        %v1036 = vpack.c.b16 %v917, %v910
        %v1037 = vpack.c.b16 %v918, %v911
        %v1038 = vpack.c.b16 %v919, %v912
        %v1039 = vpack.c.b16 %v927, %v920
        %v1040 = vpack.c.b16 %v928, %v921
        %v1041 = vpack.c.b16 %v929, %v922
        %v1042 = vpack.c.b16 %v930, %v923
        %v1043 = vpack.c.b16 %v931, %v924
        %v1044 = vpack.c.b16 %v932, %v925
        %v1045 = vpack.c.b16 %v933, %v926
        %v1270 = vunpack.c.l.b16 %v458
        %v1271 = vunpack.c.h.b16 %v458
        %v1272 = vunpack.c.l.b16 %v459
        %v1273 = vunpack.c.h.b16 %v459
        %v1274 = vunpack.c.l.b16 %v460
        %v1275 = vunpack.c.h.b16 %v460
        %v1276 = vunpack.c.l.b16 %v461
        %v1277 = vunpack.c.h.b16 %v461
        %v1278 = vunpack.c.l.b16 %v462
        %v1279 = vunpack.c.h.b16 %v462
        %v1280 = vunpack.c.l.b16 %v463
        %v1281 = vunpack.c.h.b16 %v463
        %v1282 = vunpack.c.l.b16 %v464
        %v1283 = vunpack.c.h.b16 %v464
        %v1284 = vunpack.c.l.b16 %v465
        %v1285 = vunpack.c.h.b16 %v465
        %v1286 = vunpack.c.l.b16 %v466
        %v1287 = vunpack.c.h.b16 %v466
        %v1288 = vunpack.c.l.b16 %v467
        %v1289 = vunpack.c.h.b16 %v467
        %v1290 = vunpack.c.l.b16 %v468
        %v1291 = vunpack.c.h.b16 %v468
        %v1292 = vunpack.c.l.b16 %v469
        %v1293 = vunpack.c.h.b16 %v469
        %v1294 = vunpack.c.l.b16 %v470
        %v1295 = vunpack.c.h.b16 %v470
        %v1296 = vunpack.c.l.b16 %v471
        %v1297 = vunpack.c.h.b16 %v471
        %v1298 = vunpack.c.l.b16 %v472
        %v1299 = vunpack.c.h.b16 %v472
        %v1300 = vunpack.c.l.b16 %v473
        %v1301 = vunpack.c.h.b16 %v473
        %v1302 = vunpack.c.l.b16 %v474
        %v1303 = vunpack.c.h.b16 %v474
        %v1304 = vunpack.c.l.b16 %v475
        %v1305 = vunpack.c.h.b16 %v475
        %v1306 = vunpack.c.l.b16 %v476
        %v1307 = vunpack.c.h.b16 %v476
        %v1308 = vunpack.c.l.b16 %v477
        %v1309 = vunpack.c.h.b16 %v477
        %v1310 = vunpack.c.l.b16 %v478
        %v1311 = vunpack.c.h.b16 %v478
        %v1312 = vunpack.c.l.b16 %v479
        %v1313 = vunpack.c.h.b16 %v479
        %v1314 = vunpack.c.l.b16 %v480
        %v1315 = vunpack.c.h.b16 %v480
        %v1316 = vunpack.c.l.b16 %v481
        %v1317 = vunpack.c.h.b16 %v481
        %v1318 = vunpack.c.l.b16 %v482
        %v1319 = vunpack.c.h.b16 %v482
        %v1320 = vunpack.c.l.b16 %v483
        %v1321 = vunpack.c.h.b16 %v483
        %v1322 = vunpack.c.l.b16 %v484
        %v1323 = vunpack.c.h.b16 %v484
        %v1324 = vunpack.c.l.b16 %v485
        %v1325 = vunpack.c.h.b16 %v485
        %v1326 = vunpack.c.l.b16 %v486
        %v1327 = vunpack.c.h.b16 %v486
        %v1328 = vunpack.c.l.b16 %v487
        %v1329 = vunpack.c.h.b16 %v487
        %v1330 = vunpack.c.l.b16 %v488
        %v1331 = vunpack.c.h.b16 %v488
        %v1332 = vunpack.c.l.b16 %v489
        %v1333 = vunpack.c.h.b16 %v489
        %v1334 = vunpack.c.l.b16 %v490
        %v1335 = vunpack.c.h.b16 %v490
        %v1336 = vunpack.c.l.b16 %v491
        %v1337 = vunpack.c.h.b16 %v491
        %v1338 = vunpack.c.l.b16 %v492
        %v1339 = vunpack.c.h.b16 %v492
        %v1340 = vunpack.c.l.b16 %v493
        %v1341 = vunpack.c.h.b16 %v493
        %v1342 = vunpack.c.l.b16 %v494
        %v1343 = vunpack.c.h.b16 %v494
        %v1344 = vunpack.c.l.b16 %v495
        %v1345 = vunpack.c.h.b16 %v495
        %v1346 = vunpack.c.l.b16 %v496
        %v1347 = vunpack.c.h.b16 %v496
        %v1348 = vunpack.c.l.b16 %v497
        %v1349 = vunpack.c.h.b16 %v497
        %v1350 = vunpack.c.l.b16 %v498
        %v1351 = vunpack.c.h.b16 %v498
        %v1352 = vunpack.c.l.b16 %v499
        %v1353 = vunpack.c.h.b16 %v499
        %v1354 = vunpack.c.l.b16 %v500
        %v1355 = vunpack.c.h.b16 %v500
        %v1356 = vunpack.c.l.b16 %v501
        %v1357 = vunpack.c.h.b16 %v501
        %v1358 = vunpack.c.l.b16 %v502
        %v1359 = vunpack.c.h.b16 %v502
        %v1360 = vunpack.c.l.b16 %v503
        %v1361 = vunpack.c.h.b16 %v503
        %v1362 = vunpack.c.l.b16 %v504
        %v1363 = vunpack.c.h.b16 %v504
        %v1364 = vunpack.c.l.b16 %v505
        %v1365 = vunpack.c.h.b16 %v505
        %v1366 = vunpack.c.l.b16 %v506
        %v1367 = vunpack.c.h.b16 %v506
        %v1368 = vunpack.c.l.b16 %v507
        %v1369 = vunpack.c.h.b16 %v507
        %v1370 = vunpack.c.l.b16 %v508
        %v1371 = vunpack.c.h.b16 %v508
        %v1372 = vunpack.c.l.b16 %v509
        %v1373 = vunpack.c.h.b16 %v509
        %v1374 = vunpack.c.l.b16 %v510
        %v1375 = vunpack.c.h.b16 %v510
        %v1376 = vunpack.c.l.b16 %v511
        %v1377 = vunpack.c.h.b16 %v511
        %v1378 = vunpack.c.l.b16 %v512
        %v1379 = vunpack.c.h.b16 %v512
        %v1380 = vunpack.c.l.b16 %v513
        %v1381 = vunpack.c.h.b16 %v513
        %v1382 = vunpack.c.l.b16 %v514
        %v1383 = vunpack.c.h.b16 %v514
        %v1384 = vunpack.c.l.b16 %v515
        %v1385 = vunpack.c.h.b16 %v515
        %v1386 = vunpack.c.l.b16 %v516
        %v1387 = vunpack.c.h.b16 %v516
        %v1388 = vunpack.c.l.b16 %v517
        %v1389 = vunpack.c.h.b16 %v517
        %v1390 = vunpack.c.l.b16 %v518
        %v1391 = vunpack.c.h.b16 %v518
        %v1392 = vunpack.c.l.b16 %v519
        %v1393 = vunpack.c.h.b16 %v519
        %v1394 = vunpack.c.l.b16 %v520
        %v1395 = vunpack.c.h.b16 %v520
        %v1396 = vunpack.c.l.b16 %v521
        %v1397 = vunpack.c.h.b16 %v521
        %v1398 = vunpack.c.l.b16 %v522
        %v1399 = vunpack.c.h.b16 %v522
        %v1400 = vunpack.c.l.b16 %v523
        %v1401 = vunpack.c.h.b16 %v523
        %v1402 = vunpack.c.l.b16 %v524
        %v1403 = vunpack.c.h.b16 %v524
        %v1404 = vunpack.c.l.b16 %v525
        %v1405 = vunpack.c.h.b16 %v525
        %v1406 = vunpack.c.l.b16 %v526
        %v1407 = vunpack.c.h.b16 %v526
        %v1408 = vunpack.c.l.b16 %v527
        %v1409 = vunpack.c.h.b16 %v527
        %v1410 = vunpack.c.l.b16 %v528
        %v1411 = vunpack.c.h.b16 %v528
        %v1412 = vunpack.c.l.b16 %v529
        %v1413 = vunpack.c.h.b16 %v529
        %v1414 = vunpack.c.l.b16 %v530
        %v1415 = vunpack.c.h.b16 %v530
        %v1416 = vunpack.c.l.b16 %v531
        %v1417 = vunpack.c.h.b16 %v531
        %v1418 = vunpack.c.l.b16 %v532
        %v1419 = vunpack.c.h.b16 %v532
        %v1420 = vunpack.c.l.b16 %v533
        %v1421 = vunpack.c.h.b16 %v533
        %v1422 = vunpack.c.l.b16 %v534
        %v1423 = vunpack.c.h.b16 %v534
        %v1424 = vunpack.c.l.b16 %v535
        %v1425 = vunpack.c.h.b16 %v535
        %v1426 = vunpack.c.l.b16 %v536
        %v1427 = vunpack.c.h.b16 %v536
        %v1428 = vunpack.c.l.b16 %v537
        %v1429 = vunpack.c.h.b16 %v537
        %v1430 = vunpack.c.l.b16 %v538
        %v1431 = vunpack.c.h.b16 %v538
        %v1432 = vunpack.c.l.b16 %v539
        %v1433 = vunpack.c.h.b16 %v539
        %v1434 = vunpack.c.l.b16 %v540
        %v1435 = vunpack.c.h.b16 %v540
        %v1436 = vunpack.c.l.b16 %v541
        %v1437 = vunpack.c.h.b16 %v541
        %v1438 = vunpack.c.l.b16 %v542
        %v1439 = vunpack.c.h.b16 %v542
        %v1440 = vunpack.c.l.b16 %v543
        %v1441 = vunpack.c.h.b16 %v543
        %v1442 = vunpack.c.l.b16 %v544
        %v1443 = vunpack.c.h.b16 %v544
        %v1444 = vunpack.c.l.b16 %v545
        %v1445 = vunpack.c.h.b16 %v545
        %v1446 = vunpack.c.l.b16 %v546
        %v1447 = vunpack.c.h.b16 %v546
        %v1448 = vunpack.c.l.b16 %v547
        %v1449 = vunpack.c.h.b16 %v547
        %v1450 = vunpack.c.l.b16 %v548
        %v1451 = vunpack.c.h.b16 %v548
        %v1452 = vunpack.c.l.b16 %v549
        %v1453 = vunpack.c.h.b16 %v549
        %v1454 = vunpack.c.l.b16 %v550
        %v1455 = vunpack.c.h.b16 %v550
        %v1456 = vunpack.c.l.b16 %v551
        %v1457 = vunpack.c.h.b16 %v551
        %v1458 = vunpack.c.l.b16 %v552
        %v1459 = vunpack.c.h.b16 %v552
        %v1460 = vunpack.c.l.b16 %v553
        %v1461 = vunpack.c.h.b16 %v553
        %v1462 = vunpack.c.l.b16 %v554
        %v1463 = vunpack.c.h.b16 %v554
        %v1464 = vunpack.c.l.b16 %v555
        %v1465 = vunpack.c.h.b16 %v555
        %v1466 = vunpack.c.l.b16 %v556
        %v1467 = vunpack.c.h.b16 %v556
        %v1468 = vunpack.c.l.b16 %v557
        %v1469 = vunpack.c.h.b16 %v557
        %v1470 = vunpack.c.l.b16 %v558
        %v1471 = vunpack.c.h.b16 %v558
        %v1472 = vunpack.c.l.b16 %v559
        %v1473 = vunpack.c.h.b16 %v559
        %v1474 = vunpack.c.l.b16 %v560
        %v1475 = vunpack.c.h.b16 %v560
        %v1476 = vunpack.c.l.b16 %v561
        %v1477 = vunpack.c.h.b16 %v561
        %v1478 = vunpack.c.l.b16 %v562
        %v1479 = vunpack.c.h.b16 %v562
        %v1480 = vunpack.c.l.b16 %v563
        %v1481 = vunpack.c.h.b16 %v563
        %v1482 = vunpack.c.l.b16 %v564
        %v1483 = vunpack.c.h.b16 %v564
        %v1484 = vunpack.c.l.b16 %v565
        %v1485 = vunpack.c.h.b16 %v565
        %v1486 = vunpack.c.l.b16 %v566
        %v1487 = vunpack.c.h.b16 %v566
        %v1488 = vunpack.c.l.b16 %v567
        %v1489 = vunpack.c.h.b16 %v567
        %v1490 = vunpack.c.l.b16 %v568
        %v1491 = vunpack.c.h.b16 %v568
        %v1492 = vunpack.c.l.b16 %v569
        %v1493 = vunpack.c.h.b16 %v569
        %v1494 = vpack.c.b16 %v1272, %v1270
        %v1495 = vpack.c.b16 %v1273, %v1271
        %v1496 = vpack.c.b16 %v1276, %v1274
        %v1497 = vpack.c.b16 %v1277, %v1275
        %v1498 = vpack.c.b16 %v1280, %v1278
        %v1499 = vpack.c.b16 %v1281, %v1279
        %v1500 = vpack.c.b16 %v1284, %v1282
        %v1501 = vpack.c.b16 %v1285, %v1283
        %v1502 = vpack.c.b16 %v1288, %v1286
        %v1503 = vpack.c.b16 %v1289, %v1287
        %v1504 = vpack.c.b16 %v1292, %v1290
        %v1505 = vpack.c.b16 %v1293, %v1291
        %v1506 = vpack.c.b16 %v1296, %v1294
        %v1507 = vpack.c.b16 %v1297, %v1295
        %v1508 = vpack.c.b16 %v1300, %v1298
        %v1509 = vpack.c.b16 %v1301, %v1299
        %v1510 = vpack.c.b16 %v1304, %v1302
        %v1511 = vpack.c.b16 %v1305, %v1303
        %v1512 = vpack.c.b16 %v1308, %v1306
        %v1513 = vpack.c.b16 %v1309, %v1307
        %v1514 = vpack.c.b16 %v1312, %v1310
        %v1515 = vpack.c.b16 %v1313, %v1311
        %v1516 = vpack.c.b16 %v1316, %v1314
        %v1517 = vpack.c.b16 %v1317, %v1315
        %v1518 = vpack.c.b16 %v1320, %v1318
        %v1519 = vpack.c.b16 %v1321, %v1319
        %v1520 = vpack.c.b16 %v1324, %v1322
        %v1521 = vpack.c.b16 %v1325, %v1323
        %v1522 = vpack.c.b16 %v1328, %v1326
        %v1523 = vpack.c.b16 %v1329, %v1327
        %v1524 = vpack.c.b16 %v1332, %v1330
        %v1525 = vpack.c.b16 %v1333, %v1331
        %v1526 = vpack.c.b16 %v1336, %v1334
        %v1527 = vpack.c.b16 %v1337, %v1335
        %v1528 = vpack.c.b16 %v1340, %v1338
        %v1529 = vpack.c.b16 %v1341, %v1339
        %v1530 = vpack.c.b16 %v1344, %v1342
        %v1531 = vpack.c.b16 %v1345, %v1343
        %v1532 = vpack.c.b16 %v1348, %v1346
        %v1533 = vpack.c.b16 %v1349, %v1347
        %v1534 = vpack.c.b16 %v1352, %v1350
        %v1535 = vpack.c.b16 %v1353, %v1351
        %v1536 = vpack.c.b16 %v1356, %v1354
        %v1537 = vpack.c.b16 %v1357, %v1355
        %v1538 = vpack.c.b16 %v1360, %v1358
        %v1539 = vpack.c.b16 %v1361, %v1359
        %v1540 = vpack.c.b16 %v1364, %v1362
        %v1541 = vpack.c.b16 %v1365, %v1363
        %v1542 = vpack.c.b16 %v1368, %v1366
        %v1543 = vpack.c.b16 %v1369, %v1367
        %v1544 = vpack.c.b16 %v1372, %v1370
        %v1545 = vpack.c.b16 %v1373, %v1371
        %v1546 = vpack.c.b16 %v1376, %v1374
        %v1547 = vpack.c.b16 %v1377, %v1375
        %v1548 = vpack.c.b16 %v1380, %v1378
        %v1549 = vpack.c.b16 %v1381, %v1379
        %v1550 = vpack.c.b16 %v1384, %v1382
        %v1551 = vpack.c.b16 %v1385, %v1383
        %v1552 = vpack.c.b16 %v1388, %v1386
        %v1553 = vpack.c.b16 %v1389, %v1387
        %v1554 = vpack.c.b16 %v1392, %v1390
        %v1555 = vpack.c.b16 %v1393, %v1391
        %v1556 = vpack.c.b16 %v1396, %v1394
        %v1557 = vpack.c.b16 %v1397, %v1395
        %v1558 = vpack.c.b16 %v1400, %v1398
        %v1559 = vpack.c.b16 %v1401, %v1399
        %v1560 = vpack.c.b16 %v1404, %v1402
        %v1561 = vpack.c.b16 %v1405, %v1403
        %v1562 = vpack.c.b16 %v1408, %v1406
        %v1563 = vpack.c.b16 %v1409, %v1407
        %v1564 = vpack.c.b16 %v1412, %v1410
        %v1565 = vpack.c.b16 %v1413, %v1411
        %v1566 = vpack.c.b16 %v1416, %v1414
        %v1567 = vpack.c.b16 %v1417, %v1415
        %v1568 = vpack.c.b16 %v1420, %v1418
        %v1569 = vpack.c.b16 %v1421, %v1419
        %v1570 = vpack.c.b16 %v1424, %v1422
        %v1571 = vpack.c.b16 %v1425, %v1423
        %v1572 = vpack.c.b16 %v1428, %v1426
        %v1573 = vpack.c.b16 %v1429, %v1427
        %v1574 = vpack.c.b16 %v1432, %v1430
        %v1575 = vpack.c.b16 %v1433, %v1431
        %v1576 = vpack.c.b16 %v1436, %v1434
        %v1577 = vpack.c.b16 %v1437, %v1435
        %v1578 = vpack.c.b16 %v1440, %v1438
        %v1579 = vpack.c.b16 %v1441, %v1439
        %v1580 = vpack.c.b16 %v1444, %v1442
        %v1581 = vpack.c.b16 %v1445, %v1443
        %v1582 = vpack.c.b16 %v1448, %v1446
        %v1583 = vpack.c.b16 %v1449, %v1447
        %v1584 = vpack.c.b16 %v1452, %v1450
        %v1585 = vpack.c.b16 %v1453, %v1451
        %v1586 = vpack.c.b16 %v1456, %v1454
        %v1587 = vpack.c.b16 %v1457, %v1455
        %v1588 = vpack.c.b16 %v1460, %v1458
        %v1589 = vpack.c.b16 %v1461, %v1459
        %v1590 = vpack.c.b16 %v1464, %v1462
        %v1591 = vpack.c.b16 %v1465, %v1463
        %v1592 = vpack.c.b16 %v1468, %v1466
        %v1593 = vpack.c.b16 %v1469, %v1467
        %v1594 = vpack.c.b16 %v1472, %v1470
        %v1595 = vpack.c.b16 %v1473, %v1471
        %v1596 = vpack.c.b16 %v1476, %v1474
        %v1597 = vpack.c.b16 %v1477, %v1475
        %v1598 = vpack.c.b16 %v1480, %v1478
        %v1599 = vpack.c.b16 %v1481, %v1479
        %v1600 = vpack.c.b16 %v1484, %v1482
        %v1601 = vpack.c.b16 %v1485, %v1483
        %v1602 = vpack.c.b16 %v1488, %v1486
        %v1603 = vpack.c.b16 %v1489, %v1487
        %v1604 = vpack.c.b16 %v1492, %v1490
        %v1605 = vpack.c.b16 %v1493, %v1491
        %1718 = vmatprep.subr.bf16.mxu0 %v1495
        %1719 = vmatpush1.bf16.msra.mxu0 %v1494
        %1720 = vmatprep.subr.bf16.mxu0 %v1497
        %1721 = vmatpush1.bf16.msra.mxu0 %v1496
        %1722 = vmatprep.subr.bf16.mxu0 %v1499
        %1723 = vmatpush1.bf16.msra.mxu0 %v1498
        %1724 = vmatprep.subr.bf16.mxu0 %v1501
        %1725 = vmatpush1.bf16.msra.mxu0 %v1500
        %1726 = vmatprep.subr.bf16.mxu0 %v1503
        %1727 = vmatpush1.bf16.msra.mxu0 %v1502
        %1728 = vmatprep.subr.bf16.mxu0 %v1505
        %1729 = vmatpush1.bf16.msra.mxu0 %v1504
        %1730 = vmatprep.subr.bf16.mxu0 %v1507
        %1731 = vmatpush1.bf16.msra.mxu0 %v1506
        %1732 = vmatprep.subr.bf16.mxu0 %v1509
        %1733 = vmatpush1.bf16.msra.mxu0 %v1508
        %1734 = vmatprep.subr.bf16.mxu0 %v1511
        %1735 = vmatpush1.bf16.msra.mxu0 %v1510
        %1736 = vmatprep.subr.bf16.mxu0 %v1513
        %1737 = vmatpush1.bf16.msra.mxu0 %v1512
        %1738 = vmatprep.subr.bf16.mxu0 %v1515
        %1739 = vmatpush1.bf16.msra.mxu0 %v1514
        %1740 = vmatprep.subr.bf16.mxu0 %v1517
        %1741 = vmatpush1.bf16.msra.mxu0 %v1516
        %1742 = vmatprep.subr.bf16.mxu0 %v1519
        %1743 = vmatpush1.bf16.msra.mxu0 %v1518
        %1744 = vmatprep.subr.bf16.mxu0 %v1521
        %1745 = vmatpush1.bf16.msra.mxu0 %v1520
        %1746 = vmatprep.subr.bf16.mxu0 %v1523
        %1747 = vmatpush1.bf16.msra.mxu0 %v1522
        %1748 = vmatprep.subr.bf16.mxu0 %v1525
        %1749 = vmatpush1.bf16.msra.mxu0 %v1524
        %1750 = vmatprep.mubr.bf16.mxu0 %v935
        %1751 = vmatmul.mubr.bf16.gmra.mrb[0].mxu0 %v934
        %v1752 = vpop.f32.mrb[0].mxu0
        %v1753 = vadd.f32 %v575, %v1752
        %v1754 = vpop.f32.mrb[0].mxu0
        %v1755 = vadd.f32 %v579, %v1754
        %v1756 = vpop.f32.mrb[0].mxu0
        %v1757 = vadd.f32 %v575, %v1756
        %v1758 = vpop.f32.mrb[0].mxu0
        %v1759 = vadd.f32 %v579, %v1758
        %1760 = vmatprep.mubr.bf16.mxu0 %v942
        %1761 = vmatmul.mubr.bf16.gmra.mrb[0].mxu0 %v941
        %v1762 = vpop.f32.mrb[0].mxu0
        %v1763 = vadd.f32 %v575, %v1762
        %v1764 = vpop.f32.mrb[0].mxu0
        %v1765 = vadd.f32 %v579, %v1764
        %v1766 = vpop.f32.mrb[0].mxu0
        %v1767 = vadd.f32 %v575, %v1766
        %v1768 = vpop.f32.mrb[0].mxu0
        %v1769 = vadd.f32 %v579, %v1768
        %1770 = vmatprep.mubr.bf16.mxu0 %v949
        %1771 = vmatmul.mubr.bf16.gmra.mrb[0].mxu0 %v948
        %v1772 = vpop.f32.mrb[0].mxu0
        %v1773 = vadd.f32 %v575, %v1772
        %v1774 = vpop.f32.mrb[0].mxu0
        %v1775 = vadd.f32 %v579, %v1774
        %v1776 = vpop.f32.mrb[0].mxu0
        %v1777 = vadd.f32 %v575, %v1776
        %v1778 = vpop.f32.mrb[0].mxu0
        %v1779 = vadd.f32 %v579, %v1778
        %1780 = vmatprep.mubr.bf16.mxu0 %v956
        %1781 = vmatmul.mubr.bf16.gmra.mrb[0].mxu0 %v955
        %v1782 = vpop.f32.mrb[0].mxu0
        %v1783 = vadd.f32 %v575, %v1782
        %v1784 = vpop.f32.mrb[0].mxu0
        %v1785 = vadd.f32 %v579, %v1784
        %v1786 = vpop.f32.mrb[0].mxu0
        %v1787 = vadd.f32 %v575, %v1786
        %v1788 = vpop.f32.mrb[0].mxu0
        %v1789 = vadd.f32 %v579, %v1788
        %1790 = vmatprep.mubr.bf16.mxu0 %v963
        %1791 = vmatmul.mubr.bf16.gmra.mrb[0].mxu0 %v962
        %v1792 = vpop.f32.mrb[0].mxu0
        %v1793 = vadd.f32 %v575, %v1792
        %v1794 = vpop.f32.mrb[0].mxu0
        %v1795 = vadd.f32 %v579, %v1794
        %v1796 = vpop.f32.mrb[0].mxu0
        %v1797 = vadd.f32 %v575, %v1796
        %v1798 = vpop.f32.mrb[0].mxu0
        %v1799 = vadd.f32 %v579, %v1798
        %1800 = vmatprep.mubr.bf16.mxu0 %v970
        %1801 = vmatmul.mubr.bf16.gmra.mrb[0].mxu0 %v969
        %v1802 = vpop.f32.mrb[0].mxu0
        %v1803 = vadd.f32 %v575, %v1802
        %v1804 = vpop.f32.mrb[0].mxu0
        %v1805 = vadd.f32 %v579, %v1804
        %v1806 = vpop.f32.mrb[0].mxu0
        %v1807 = vadd.f32 %v575, %v1806
        %v1808 = vpop.f32.mrb[0].mxu0
        %v1809 = vadd.f32 %v579, %v1808
        %1810 = vmatprep.mubr.bf16.mxu0 %v977
        %1811 = vmatmul.mubr.bf16.gmra.mrb[0].mxu0 %v976
        %v1812 = vpop.f32.mrb[0].mxu0
        %v1813 = vadd.f32 %v575, %v1812
        %v1814 = vpop.f32.mrb[0].mxu0
        %v1815 = vadd.f32 %v579, %v1814
        %v1816 = vpop.f32.mrb[0].mxu0
        %v1817 = vadd.f32 %v575, %v1816
        %v1818 = vpop.f32.mrb[0].mxu0
        %v1819 = vadd.f32 %v579, %v1818
        %1820 = vmatprep.mubr.bf16.mxu0 %v984
        %1821 = vmatmul.mubr.bf16.gmra.mrb[0].mxu0 %v983
        %v1822 = vpop.f32.mrb[0].mxu0
        %v1823 = vadd.f32 %v575, %v1822
        %v1824 = vpop.f32.mrb[0].mxu0
        %v1825 = vadd.f32 %v579, %v1824
        %v1826 = vpop.f32.mrb[0].mxu0
        %v1827 = vadd.f32 %v575, %v1826
        %v1828 = vpop.f32.mrb[0].mxu0
        %v1829 = vadd.f32 %v579, %v1828
        %1830 = vmatprep.mubr.bf16.mxu0 %v991
        %1831 = vmatmul.mubr.bf16.gmra.mrb[0].mxu0 %v990
        %v1832 = vpop.f32.mrb[0].mxu0
        %v1833 = vadd.f32 %v575, %v1832
        %v1834 = vpop.f32.mrb[0].mxu0
        %v1835 = vadd.f32 %v579, %v1834
        %v1836 = vpop.f32.mrb[0].mxu0
        %v1837 = vadd.f32 %v575, %v1836
        %v1838 = vpop.f32.mrb[0].mxu0
        %v1839 = vadd.f32 %v579, %v1838
        %1840 = vmatprep.mubr.bf16.mxu0 %v998
        %1841 = vmatmul.mubr.bf16.gmra.mrb[0].mxu0 %v997
        %v1842 = vpop.f32.mrb[0].mxu0
        %v1843 = vadd.f32 %v575, %v1842
        %v1844 = vpop.f32.mrb[0].mxu0
        %v1845 = vadd.f32 %v579, %v1844
        %v1846 = vpop.f32.mrb[0].mxu0
        %v1847 = vadd.f32 %v575, %v1846
        %v1848 = vpop.f32.mrb[0].mxu0
        %v1849 = vadd.f32 %v579, %v1848
        %1850 = vmatprep.mubr.bf16.mxu0 %v1005
        %1851 = vmatmul.mubr.bf16.gmra.mrb[0].mxu0 %v1004
        %v1852 = vpop.f32.mrb[0].mxu0
        %v1853 = vadd.f32 %v575, %v1852
        %v1854 = vpop.f32.mrb[0].mxu0
        %v1855 = vadd.f32 %v579, %v1854
        %v1856 = vpop.f32.mrb[0].mxu0
        %v1857 = vadd.f32 %v575, %v1856
        %v1858 = vpop.f32.mrb[0].mxu0
        %v1859 = vadd.f32 %v579, %v1858
        %1860 = vmatprep.mubr.bf16.mxu0 %v1012
        %1861 = vmatmul.mubr.bf16.gmra.mrb[0].mxu0 %v1011
        %v1862 = vpop.f32.mrb[0].mxu0
        %v1863 = vadd.f32 %v575, %v1862
        %v1864 = vpop.f32.mrb[0].mxu0
        %v1865 = vadd.f32 %v579, %v1864
        %v1866 = vpop.f32.mrb[0].mxu0
        %v1867 = vadd.f32 %v575, %v1866
        %v1868 = vpop.f32.mrb[0].mxu0
        %v1869 = vadd.f32 %v579, %v1868
        %1870 = vmatprep.mubr.bf16.mxu0 %v1019
        %1871 = vmatmul.mubr.bf16.gmra.mrb[0].mxu0 %v1018
        %v1872 = vpop.f32.mrb[0].mxu0
        %v1873 = vadd.f32 %v575, %v1872
        %v1874 = vpop.f32.mrb[0].mxu0
        %v1875 = vadd.f32 %v579, %v1874
        %v1876 = vpop.f32.mrb[0].mxu0
        %v1877 = vadd.f32 %v575, %v1876
        %v1878 = vpop.f32.mrb[0].mxu0
        %v1879 = vadd.f32 %v579, %v1878
        %1880 = vmatprep.mubr.bf16.mxu0 %v1026
        %1881 = vmatmul.mubr.bf16.gmra.mrb[0].mxu0 %v1025
        %v1882 = vpop.f32.mrb[0].mxu0
        %v1883 = vadd.f32 %v575, %v1882
        %v1884 = vpop.f32.mrb[0].mxu0
        %v1885 = vadd.f32 %v579, %v1884
        %v1886 = vpop.f32.mrb[0].mxu0
        %v1887 = vadd.f32 %v575, %v1886
        %v1888 = vpop.f32.mrb[0].mxu0
        %v1889 = vadd.f32 %v579, %v1888
        %1890 = vmatprep.mubr.bf16.mxu0 %v1033
        %1891 = vmatmul.mubr.bf16.gmra.mrb[0].mxu0 %v1032
        %v1892 = vpop.f32.mrb[0].mxu0
        %v1893 = vadd.f32 %v575, %v1892
        %v1894 = vpop.f32.mrb[0].mxu0
        %v1895 = vadd.f32 %v579, %v1894
        %v1896 = vpop.f32.mrb[0].mxu0
        %v1897 = vadd.f32 %v575, %v1896
        %v1898 = vpop.f32.mrb[0].mxu0
        %v1899 = vadd.f32 %v579, %v1898
        %1900 = vmatprep.mubr.bf16.mxu0 %v1040
        %1901 = vmatmul.mubr.bf16.gmra.mrb[0].mxu0 %v1039
        %v1902 = vpop.f32.mrb[0].mxu0
        %v1903 = vadd.f32 %v575, %v1902
        %v1904 = vpop.f32.mrb[0].mxu0
        %v1905 = vadd.f32 %v579, %v1904
        %v1906 = vpop.f32.mrb[0].mxu0
        %v1907 = vadd.f32 %v575, %v1906
        %v1908 = vpop.f32.mrb[0].mxu0
        %v1909 = vadd.f32 %v579, %v1908
        %1910 = vdwg.mxu0
        %1911 = vmatprep.subr.bf16.mxu0 %v1527
        %1912 = vmatpush1.bf16.msra.mxu0 %v1526
        %1913 = vmatprep.subr.bf16.mxu0 %v1529
        %1914 = vmatpush1.bf16.msra.mxu0 %v1528
        %1915 = vmatprep.subr.bf16.mxu0 %v1531
        %1916 = vmatpush1.bf16.msra.mxu0 %v1530
        %1917 = vmatprep.subr.bf16.mxu0 %v1533
        %1918 = vmatpush1.bf16.msra.mxu0 %v1532
        %1919 = vmatprep.subr.bf16.mxu0 %v1535
        %1920 = vmatpush1.bf16.msra.mxu0 %v1534
        %1921 = vmatprep.subr.bf16.mxu0 %v1537
        %1922 = vmatpush1.bf16.msra.mxu0 %v1536
        %1923 = vmatprep.subr.bf16.mxu0 %v1539
        %1924 = vmatpush1.bf16.msra.mxu0 %v1538
        %1925 = vmatprep.subr.bf16.mxu0 %v1541
        %1926 = vmatpush1.bf16.msra.mxu0 %v1540
        %1927 = vmatprep.subr.bf16.mxu0 %v1543
        %1928 = vmatpush1.bf16.msra.mxu0 %v1542
        %1929 = vmatprep.subr.bf16.mxu0 %v1545
        %1930 = vmatpush1.bf16.msra.mxu0 %v1544
        %1931 = vmatprep.subr.bf16.mxu0 %v1547
        %1932 = vmatpush1.bf16.msra.mxu0 %v1546
        %1933 = vmatprep.subr.bf16.mxu0 %v1549
        %1934 = vmatpush1.bf16.msra.mxu0 %v1548
        %1935 = vmatprep.subr.bf16.mxu0 %v1551
        %1936 = vmatpush1.bf16.msra.mxu0 %v1550
        %1937 = vmatprep.subr.bf16.mxu0 %v1553
        %1938 = vmatpush1.bf16.msra.mxu0 %v1552
        %1939 = vmatprep.subr.bf16.mxu0 %v1555
        %1940 = vmatpush1.bf16.msra.mxu0 %v1554
        %1941 = vmatprep.subr.bf16.mxu0 %v1557
        %1942 = vmatpush1.bf16.msra.mxu0 %v1556
        %1943 = vmatprep.mubr.bf16.mxu0 %v937
        %1944 = vmatmul.mubr.bf16.gmra.mrb[0].mxu0 %v936
        %v1945 = vpop.f32.mrb[0].mxu0
        %v1946 = vadd.f32 %v1753, %v1945
        %v1947 = vpop.f32.mrb[0].mxu0
        %v1948 = vadd.f32 %v1755, %v1947
        %v1949 = vpop.f32.mrb[0].mxu0
        %v1950 = vadd.f32 %v1757, %v1949
        %v1951 = vpop.f32.mrb[0].mxu0
        %v1952 = vadd.f32 %v1759, %v1951
        %1953 = vmatprep.mubr.bf16.mxu0 %v944
        %1954 = vmatmul.mubr.bf16.gmra.mrb[0].mxu0 %v943
        %v1955 = vpop.f32.mrb[0].mxu0
        %v1956 = vadd.f32 %v1763, %v1955
        %v1957 = vpop.f32.mrb[0].mxu0
        %v1958 = vadd.f32 %v1765, %v1957
        %v1959 = vpop.f32.mrb[0].mxu0
        %v1960 = vadd.f32 %v1767, %v1959
        %v1961 = vpop.f32.mrb[0].mxu0
        %v1962 = vadd.f32 %v1769, %v1961
        %1963 = vmatprep.mubr.bf16.mxu0 %v951
        %1964 = vmatmul.mubr.bf16.gmra.mrb[0].mxu0 %v950
        %v1965 = vpop.f32.mrb[0].mxu0
        %v1966 = vadd.f32 %v1773, %v1965
        %v1967 = vpop.f32.mrb[0].mxu0
        %v1968 = vadd.f32 %v1775, %v1967
        %v1969 = vpop.f32.mrb[0].mxu0
        %v1970 = vadd.f32 %v1777, %v1969
        %v1971 = vpop.f32.mrb[0].mxu0
        %v1972 = vadd.f32 %v1779, %v1971
        %1973 = vmatprep.mubr.bf16.mxu0 %v958
        %1974 = vmatmul.mubr.bf16.gmra.mrb[0].mxu0 %v957
        %v1975 = vpop.f32.mrb[0].mxu0
        %v1976 = vadd.f32 %v1783, %v1975
        %v1977 = vpop.f32.mrb[0].mxu0
        %v1978 = vadd.f32 %v1785, %v1977
        %v1979 = vpop.f32.mrb[0].mxu0
        %v1980 = vadd.f32 %v1787, %v1979
        %v1981 = vpop.f32.mrb[0].mxu0
        %v1982 = vadd.f32 %v1789, %v1981
        %1983 = vmatprep.mubr.bf16.mxu0 %v965
        %1984 = vmatmul.mubr.bf16.gmra.mrb[0].mxu0 %v964
        %v1985 = vpop.f32.mrb[0].mxu0
        %v1986 = vadd.f32 %v1793, %v1985
        %v1987 = vpop.f32.mrb[0].mxu0
        %v1988 = vadd.f32 %v1795, %v1987
        %v1989 = vpop.f32.mrb[0].mxu0
        %v1990 = vadd.f32 %v1797, %v1989
        %v1991 = vpop.f32.mrb[0].mxu0
        %v1992 = vadd.f32 %v1799, %v1991
        %1993 = vmatprep.mubr.bf16.mxu0 %v972
        %1994 = vmatmul.mubr.bf16.gmra.mrb[0].mxu0 %v971
        %v1995 = vpop.f32.mrb[0].mxu0
        %v1996 = vadd.f32 %v1803, %v1995
        %v1997 = vpop.f32.mrb[0].mxu0
        %v1998 = vadd.f32 %v1805, %v1997
        %v1999 = vpop.f32.mrb[0].mxu0
        %v2000 = vadd.f32 %v1807, %v1999
        %v2001 = vpop.f32.mrb[0].mxu0
        %v2002 = vadd.f32 %v1809, %v2001
        %2003 = vmatprep.mubr.bf16.mxu0 %v979
        %2004 = vmatmul.mubr.bf16.gmra.mrb[0].mxu0 %v978
        %v2005 = vpop.f32.mrb[0].mxu0
        %v2006 = vadd.f32 %v1813, %v2005
        %v2007 = vpop.f32.mrb[0].mxu0
        %v2008 = vadd.f32 %v1815, %v2007
        %v2009 = vpop.f32.mrb[0].mxu0
        %v2010 = vadd.f32 %v1817, %v2009
        %v2011 = vpop.f32.mrb[0].mxu0
        %v2012 = vadd.f32 %v1819, %v2011
        %2013 = vmatprep.mubr.bf16.mxu0 %v986
        %2014 = vmatmul.mubr.bf16.gmra.mrb[0].mxu0 %v985
        %v2015 = vpop.f32.mrb[0].mxu0
        %v2016 = vadd.f32 %v1823, %v2015
        %v2017 = vpop.f32.mrb[0].mxu0
        %v2018 = vadd.f32 %v1825, %v2017
        %v2019 = vpop.f32.mrb[0].mxu0
        %v2020 = vadd.f32 %v1827, %v2019
        %v2021 = vpop.f32.mrb[0].mxu0
        %v2022 = vadd.f32 %v1829, %v2021
        %2023 = vmatprep.mubr.bf16.mxu0 %v993
        %2024 = vmatmul.mubr.bf16.gmra.mrb[0].mxu0 %v992
        %v2025 = vpop.f32.mrb[0].mxu0
        %v2026 = vadd.f32 %v1833, %v2025
        %v2027 = vpop.f32.mrb[0].mxu0
        %v2028 = vadd.f32 %v1835, %v2027
        %v2029 = vpop.f32.mrb[0].mxu0
        %v2030 = vadd.f32 %v1837, %v2029
        %v2031 = vpop.f32.mrb[0].mxu0
        %v2032 = vadd.f32 %v1839, %v2031
        %2033 = vmatprep.mubr.bf16.mxu0 %v1000
        %2034 = vmatmul.mubr.bf16.gmra.mrb[0].mxu0 %v999
        %v2035 = vpop.f32.mrb[0].mxu0
        %v2036 = vadd.f32 %v1843, %v2035
        %v2037 = vpop.f32.mrb[0].mxu0
        %v2038 = vadd.f32 %v1845, %v2037
        %v2039 = vpop.f32.mrb[0].mxu0
        %v2040 = vadd.f32 %v1847, %v2039
        %v2041 = vpop.f32.mrb[0].mxu0
        %v2042 = vadd.f32 %v1849, %v2041
        %2043 = vmatprep.mubr.bf16.mxu0 %v1007
        %2044 = vmatmul.mubr.bf16.gmra.mrb[0].mxu0 %v1006
        %v2045 = vpop.f32.mrb[0].mxu0
        %v2046 = vadd.f32 %v1853, %v2045
        %v2047 = vpop.f32.mrb[0].mxu0
        %v2048 = vadd.f32 %v1855, %v2047
        %v2049 = vpop.f32.mrb[0].mxu0
        %v2050 = vadd.f32 %v1857, %v2049
        %v2051 = vpop.f32.mrb[0].mxu0
        %v2052 = vadd.f32 %v1859, %v2051
        %2053 = vmatprep.mubr.bf16.mxu0 %v1014
        %2054 = vmatmul.mubr.bf16.gmra.mrb[0].mxu0 %v1013
        %v2055 = vpop.f32.mrb[0].mxu0
        %v2056 = vadd.f32 %v1863, %v2055
        %v2057 = vpop.f32.mrb[0].mxu0
        %v2058 = vadd.f32 %v1865, %v2057
        %v2059 = vpop.f32.mrb[0].mxu0
        %v2060 = vadd.f32 %v1867, %v2059
        %v2061 = vpop.f32.mrb[0].mxu0
        %v2062 = vadd.f32 %v1869, %v2061
        %2063 = vmatprep.mubr.bf16.mxu0 %v1021
        %2064 = vmatmul.mubr.bf16.gmra.mrb[0].mxu0 %v1020
        %v2065 = vpop.f32.mrb[0].mxu0
        %v2066 = vadd.f32 %v1873, %v2065
        %v2067 = vpop.f32.mrb[0].mxu0
        %v2068 = vadd.f32 %v1875, %v2067
        %v2069 = vpop.f32.mrb[0].mxu0
        %v2070 = vadd.f32 %v1877, %v2069
        %v2071 = vpop.f32.mrb[0].mxu0
        %v2072 = vadd.f32 %v1879, %v2071
        %2073 = vmatprep.mubr.bf16.mxu0 %v1028
        %2074 = vmatmul.mubr.bf16.gmra.mrb[0].mxu0 %v1027
        %v2075 = vpop.f32.mrb[0].mxu0
        %v2076 = vadd.f32 %v1883, %v2075
        %v2077 = vpop.f32.mrb[0].mxu0
        %v2078 = vadd.f32 %v1885, %v2077
        %v2079 = vpop.f32.mrb[0].mxu0
        %v2080 = vadd.f32 %v1887, %v2079
        %v2081 = vpop.f32.mrb[0].mxu0
        %v2082 = vadd.f32 %v1889, %v2081
        %2083 = vmatprep.mubr.bf16.mxu0 %v1035
        %2084 = vmatmul.mubr.bf16.gmra.mrb[0].mxu0 %v1034
        %v2085 = vpop.f32.mrb[0].mxu0
        %v2086 = vadd.f32 %v1893, %v2085
        %v2087 = vpop.f32.mrb[0].mxu0
        %v2088 = vadd.f32 %v1895, %v2087
        %v2089 = vpop.f32.mrb[0].mxu0
        %v2090 = vadd.f32 %v1897, %v2089
        %v2091 = vpop.f32.mrb[0].mxu0
        %v2092 = vadd.f32 %v1899, %v2091
        %2093 = vmatprep.mubr.bf16.mxu0 %v1042
        %2094 = vmatmul.mubr.bf16.gmra.mrb[0].mxu0 %v1041
        %v2095 = vpop.f32.mrb[0].mxu0
        %v2096 = vadd.f32 %v1903, %v2095
        %v2097 = vpop.f32.mrb[0].mxu0
        %v2098 = vadd.f32 %v1905, %v2097
        %v2099 = vpop.f32.mrb[0].mxu0
        %v2100 = vadd.f32 %v1907, %v2099
        %v2101 = vpop.f32.mrb[0].mxu0
        %v2102 = vadd.f32 %v1909, %v2101
        %2103 = vdwg.mxu0
        %2104 = vmatprep.subr.bf16.mxu0 %v1559
        %2105 = vmatpush1.bf16.msra.mxu0 %v1558
        %2106 = vmatprep.subr.bf16.mxu0 %v1561
        %2107 = vmatpush1.bf16.msra.mxu0 %v1560
        %2108 = vmatprep.subr.bf16.mxu0 %v1563
        %2109 = vmatpush1.bf16.msra.mxu0 %v1562
        %2110 = vmatprep.subr.bf16.mxu0 %v1565
        %2111 = vmatpush1.bf16.msra.mxu0 %v1564
        %2112 = vmatprep.subr.bf16.mxu0 %v1567
        %2113 = vmatpush1.bf16.msra.mxu0 %v1566
        %2114 = vmatprep.subr.bf16.mxu0 %v1569
        %2115 = vmatpush1.bf16.msra.mxu0 %v1568
        %2116 = vmatprep.subr.bf16.mxu0 %v1571
        %2117 = vmatpush1.bf16.msra.mxu0 %v1570
        %2118 = vmatprep.subr.bf16.mxu0 %v1573
        %2119 = vmatpush1.bf16.msra.mxu0 %v1572
        %2120 = vmatprep.subr.bf16.mxu0 %v1575
        %2121 = vmatpush1.bf16.msra.mxu0 %v1574
        %2122 = vmatprep.subr.bf16.mxu0 %v1577
        %2123 = vmatpush1.bf16.msra.mxu0 %v1576
        %2124 = vmatprep.subr.bf16.mxu0 %v1579
        %2125 = vmatpush1.bf16.msra.mxu0 %v1578
        %2126 = vmatprep.subr.bf16.mxu0 %v1581
        %2127 = vmatpush1.bf16.msra.mxu0 %v1580
        %2128 = vmatprep.subr.bf16.mxu0 %v1583
        %2129 = vmatpush1.bf16.msra.mxu0 %v1582
        %2130 = vmatprep.subr.bf16.mxu0 %v1585
        %2131 = vmatpush1.bf16.msra.mxu0 %v1584
        %2132 = vmatprep.subr.bf16.mxu0 %v1587
        %2133 = vmatpush1.bf16.msra.mxu0 %v1586
        %2134 = vmatprep.subr.bf16.mxu0 %v1589
        %2135 = vmatpush1.bf16.msra.mxu0 %v1588
        %2136 = vmatprep.mubr.bf16.mxu0 %v939
        %2137 = vmatmul.mubr.bf16.gmra.mrb[0].mxu0 %v938
        %v2138 = vpop.f32.mrb[0].mxu0
        %v2139 = vadd.f32 %v1946, %v2138
        %v2140 = vpop.f32.mrb[0].mxu0
        %v2141 = vadd.f32 %v1948, %v2140
        %v2142 = vpop.f32.mrb[0].mxu0
        %v2143 = vadd.f32 %v1950, %v2142
        %v2144 = vpop.f32.mrb[0].mxu0
        %v2145 = vadd.f32 %v1952, %v2144
        %2146 = vmatprep.mubr.bf16.mxu0 %v946
        %2147 = vmatmul.mubr.bf16.gmra.mrb[0].mxu0 %v945
        %v2148 = vpop.f32.mrb[0].mxu0
        %v2149 = vadd.f32 %v1956, %v2148
        %v2150 = vpop.f32.mrb[0].mxu0
        %v2151 = vadd.f32 %v1958, %v2150
        %v2152 = vpop.f32.mrb[0].mxu0
        %v2153 = vadd.f32 %v1960, %v2152
        %v2154 = vpop.f32.mrb[0].mxu0
        %v2155 = vadd.f32 %v1962, %v2154
        %2156 = vmatprep.mubr.bf16.mxu0 %v953
        %2157 = vmatmul.mubr.bf16.gmra.mrb[0].mxu0 %v952
        %v2158 = vpop.f32.mrb[0].mxu0
        %v2159 = vadd.f32 %v1966, %v2158
        %v2160 = vpop.f32.mrb[0].mxu0
        %v2161 = vadd.f32 %v1968, %v2160
        %v2162 = vpop.f32.mrb[0].mxu0
        %v2163 = vadd.f32 %v1970, %v2162
        %v2164 = vpop.f32.mrb[0].mxu0
        %v2165 = vadd.f32 %v1972, %v2164
        %2166 = vmatprep.mubr.bf16.mxu0 %v960
        %2167 = vmatmul.mubr.bf16.gmra.mrb[0].mxu0 %v959
        %v2168 = vpop.f32.mrb[0].mxu0
        %v2169 = vadd.f32 %v1976, %v2168
        %v2170 = vpop.f32.mrb[0].mxu0
        %v2171 = vadd.f32 %v1978, %v2170
        %v2172 = vpop.f32.mrb[0].mxu0
        %v2173 = vadd.f32 %v1980, %v2172
        %v2174 = vpop.f32.mrb[0].mxu0
        %v2175 = vadd.f32 %v1982, %v2174
        %2176 = vmatprep.mubr.bf16.mxu0 %v967
        %2177 = vmatmul.mubr.bf16.gmra.mrb[0].mxu0 %v966
        %v2178 = vpop.f32.mrb[0].mxu0
        %v2179 = vadd.f32 %v1986, %v2178
        %v2180 = vpop.f32.mrb[0].mxu0
        %v2181 = vadd.f32 %v1988, %v2180
        %v2182 = vpop.f32.mrb[0].mxu0
        %v2183 = vadd.f32 %v1990, %v2182
        %v2184 = vpop.f32.mrb[0].mxu0
        %v2185 = vadd.f32 %v1992, %v2184
        %2186 = vmatprep.mubr.bf16.mxu0 %v974
        %2187 = vmatmul.mubr.bf16.gmra.mrb[0].mxu0 %v973
        %v2188 = vpop.f32.mrb[0].mxu0
        %v2189 = vadd.f32 %v1996, %v2188
        %v2190 = vpop.f32.mrb[0].mxu0
        %v2191 = vadd.f32 %v1998, %v2190
        %v2192 = vpop.f32.mrb[0].mxu0
        %v2193 = vadd.f32 %v2000, %v2192
        %v2194 = vpop.f32.mrb[0].mxu0
        %v2195 = vadd.f32 %v2002, %v2194
        %2196 = vmatprep.mubr.bf16.mxu0 %v981
        %2197 = vmatmul.mubr.bf16.gmra.mrb[0].mxu0 %v980
        %v2198 = vpop.f32.mrb[0].mxu0
        %v2199 = vadd.f32 %v2006, %v2198
        %v2200 = vpop.f32.mrb[0].mxu0
        %v2201 = vadd.f32 %v2008, %v2200
        %v2202 = vpop.f32.mrb[0].mxu0
        %v2203 = vadd.f32 %v2010, %v2202
        %v2204 = vpop.f32.mrb[0].mxu0
        %v2205 = vadd.f32 %v2012, %v2204
        %2206 = vmatprep.mubr.bf16.mxu0 %v988
        %2207 = vmatmul.mubr.bf16.gmra.mrb[0].mxu0 %v987
        %v2208 = vpop.f32.mrb[0].mxu0
        %v2209 = vadd.f32 %v2016, %v2208
        %v2210 = vpop.f32.mrb[0].mxu0
        %v2211 = vadd.f32 %v2018, %v2210
        %v2212 = vpop.f32.mrb[0].mxu0
        %v2213 = vadd.f32 %v2020, %v2212
        %v2214 = vpop.f32.mrb[0].mxu0
        %v2215 = vadd.f32 %v2022, %v2214
        %2216 = vmatprep.mubr.bf16.mxu0 %v995
        %2217 = vmatmul.mubr.bf16.gmra.mrb[0].mxu0 %v994
        %v2218 = vpop.f32.mrb[0].mxu0
        %v2219 = vadd.f32 %v2026, %v2218
        %v2220 = vpop.f32.mrb[0].mxu0
        %v2221 = vadd.f32 %v2028, %v2220
        %v2222 = vpop.f32.mrb[0].mxu0
        %v2223 = vadd.f32 %v2030, %v2222
        %v2224 = vpop.f32.mrb[0].mxu0
        %v2225 = vadd.f32 %v2032, %v2224
        %2226 = vmatprep.mubr.bf16.mxu0 %v1002
        %2227 = vmatmul.mubr.bf16.gmra.mrb[0].mxu0 %v1001
        %v2228 = vpop.f32.mrb[0].mxu0
        %v2229 = vadd.f32 %v2036, %v2228
        %v2230 = vpop.f32.mrb[0].mxu0
        %v2231 = vadd.f32 %v2038, %v2230
        %v2232 = vpop.f32.mrb[0].mxu0
        %v2233 = vadd.f32 %v2040, %v2232
        %v2234 = vpop.f32.mrb[0].mxu0
        %v2235 = vadd.f32 %v2042, %v2234
        %2236 = vmatprep.mubr.bf16.mxu0 %v1009
        %2237 = vmatmul.mubr.bf16.gmra.mrb[0].mxu0 %v1008
        %v2238 = vpop.f32.mrb[0].mxu0
        %v2239 = vadd.f32 %v2046, %v2238
        %v2240 = vpop.f32.mrb[0].mxu0
        %v2241 = vadd.f32 %v2048, %v2240
        %v2242 = vpop.f32.mrb[0].mxu0
        %v2243 = vadd.f32 %v2050, %v2242
        %v2244 = vpop.f32.mrb[0].mxu0
        %v2245 = vadd.f32 %v2052, %v2244
        %2246 = vmatprep.mubr.bf16.mxu0 %v1016
        %2247 = vmatmul.mubr.bf16.gmra.mrb[0].mxu0 %v1015
        %v2248 = vpop.f32.mrb[0].mxu0
        %v2249 = vadd.f32 %v2056, %v2248
        %v2250 = vpop.f32.mrb[0].mxu0
        %v2251 = vadd.f32 %v2058, %v2250
        %v2252 = vpop.f32.mrb[0].mxu0
        %v2253 = vadd.f32 %v2060, %v2252
        %v2254 = vpop.f32.mrb[0].mxu0
        %v2255 = vadd.f32 %v2062, %v2254
        %2256 = vmatprep.mubr.bf16.mxu0 %v1023
        %2257 = vmatmul.mubr.bf16.gmra.mrb[0].mxu0 %v1022
        %v2258 = vpop.f32.mrb[0].mxu0
        %v2259 = vadd.f32 %v2066, %v2258
        %v2260 = vpop.f32.mrb[0].mxu0
        %v2261 = vadd.f32 %v2068, %v2260
        %v2262 = vpop.f32.mrb[0].mxu0
        %v2263 = vadd.f32 %v2070, %v2262
        %v2264 = vpop.f32.mrb[0].mxu0
        %v2265 = vadd.f32 %v2072, %v2264
        %2266 = vmatprep.mubr.bf16.mxu0 %v1030
        %2267 = vmatmul.mubr.bf16.gmra.mrb[0].mxu0 %v1029
        %v2268 = vpop.f32.mrb[0].mxu0
        %v2269 = vadd.f32 %v2076, %v2268
        %v2270 = vpop.f32.mrb[0].mxu0
        %v2271 = vadd.f32 %v2078, %v2270
        %v2272 = vpop.f32.mrb[0].mxu0
        %v2273 = vadd.f32 %v2080, %v2272
        %v2274 = vpop.f32.mrb[0].mxu0
        %v2275 = vadd.f32 %v2082, %v2274
        %2276 = vmatprep.mubr.bf16.mxu0 %v1037
        %2277 = vmatmul.mubr.bf16.gmra.mrb[0].mxu0 %v1036
        %v2278 = vpop.f32.mrb[0].mxu0
        %v2279 = vadd.f32 %v2086, %v2278
        %v2280 = vpop.f32.mrb[0].mxu0
        %v2281 = vadd.f32 %v2088, %v2280
        %v2282 = vpop.f32.mrb[0].mxu0
        %v2283 = vadd.f32 %v2090, %v2282
        %v2284 = vpop.f32.mrb[0].mxu0
        %v2285 = vadd.f32 %v2092, %v2284
        %2286 = vmatprep.mubr.bf16.mxu0 %v1044
        %2287 = vmatmul.mubr.bf16.gmra.mrb[0].mxu0 %v1043
        %v2288 = vpop.f32.mrb[0].mxu0
        %v2289 = vadd.f32 %v2096, %v2288
        %v2290 = vpop.f32.mrb[0].mxu0
        %v2291 = vadd.f32 %v2098, %v2290
        %v2292 = vpop.f32.mrb[0].mxu0
        %v2293 = vadd.f32 %v2100, %v2292
        %v2294 = vpop.f32.mrb[0].mxu0
        %v2295 = vadd.f32 %v2102, %v2294
        %2296 = vdwg.mxu0
        %2297 = vmatprep.subr.bf16.mxu0 %v1591
        %2298 = vmatpush1.bf16.msra.mxu0 %v1590
        %2299 = vmatprep.subr.bf16.mxu0 %v1593
        %2300 = vmatpush1.bf16.msra.mxu0 %v1592
        %2301 = vmatprep.subr.bf16.mxu0 %v1595
        %2302 = vmatpush1.bf16.msra.mxu0 %v1594
        %2303 = vmatprep.subr.bf16.mxu0 %v1597
        %2304 = vmatpush1.bf16.msra.mxu0 %v1596
        %2305 = vmatprep.subr.bf16.mxu0 %v1599
        %2306 = vmatpush1.bf16.msra.mxu0 %v1598
        %2307 = vmatprep.subr.bf16.mxu0 %v1601
        %2308 = vmatpush1.bf16.msra.mxu0 %v1600
        %2309 = vmatprep.subr.bf16.mxu0 %v1603
        %2310 = vmatpush1.bf16.msra.mxu0 %v1602
        %2311 = vmatprep.subr.bf16.mxu0 %v1605
        %2312 = vmatpush1.bf16.msra.mxu0 %v1604
        %2313 = vmatprep.subr.bf16.mxu0 0
        %2314 = vmatpush1.bf16.msra.mxu0 0
        %2315 = vmatprep.subr.bf16.mxu0 0
        %2316 = vmatpush1.bf16.msra.mxu0 0
        %2317 = vmatprep.subr.bf16.mxu0 0
        %2318 = vmatpush1.bf16.msra.mxu0 0
        %2319 = vmatprep.subr.bf16.mxu0 0
        %2320 = vmatpush1.bf16.msra.mxu0 0
        %2321 = vmatprep.subr.bf16.mxu0 0
        %2322 = vmatpush1.bf16.msra.mxu0 0
        %2323 = vmatprep.subr.bf16.mxu0 0
        %2324 = vmatpush1.bf16.msra.mxu0 0
        %2325 = vmatprep.subr.bf16.mxu0 0
        %2326 = vmatpush1.bf16.msra.mxu0 0
        %2327 = vmatprep.subr.bf16.mxu0 0
        %2328 = vmatpush1.bf16.msra.mxu0 0
        %2329 = vmatprep.mubr.bf16.mxu0 0
        %2330 = vmatmul.mubr.bf16.gmra.mrb[0].mxu0 %v940
        %v2331 = vpop.f32.mrb[0].mxu0
        %v2332 = vadd.f32 %v2139, %v2331
        %v2333 = vpop.f32.mrb[0].mxu0
        %v2334 = vadd.f32 %v2141, %v2333
        %v2335 = vpop.f32.mrb[0].mxu0
        %v2336 = vadd.f32 %v2143, %v2335
        %v2337 = vpop.f32.mrb[0].mxu0
        %v2338 = vadd.f32 %v2145, %v2337
        %2339 = vmatprep.mubr.bf16.mxu0 0
        %2340 = vmatmul.mubr.bf16.gmra.mrb[0].mxu0 %v947
        %v2341 = vpop.f32.mrb[0].mxu0
        %v2342 = vadd.f32 %v2149, %v2341
        %v2343 = vpop.f32.mrb[0].mxu0
        %v2344 = vadd.f32 %v2151, %v2343
        %v2345 = vpop.f32.mrb[0].mxu0
        %v2346 = vadd.f32 %v2153, %v2345
        %v2347 = vpop.f32.mrb[0].mxu0
        %v2348 = vadd.f32 %v2155, %v2347
        %2349 = vmatprep.mubr.bf16.mxu0 0
        %2350 = vmatmul.mubr.bf16.gmra.mrb[0].mxu0 %v954
        %v2351 = vpop.f32.mrb[0].mxu0
        %v2352 = vadd.f32 %v2159, %v2351
        %v2353 = vpop.f32.mrb[0].mxu0
        %v2354 = vadd.f32 %v2161, %v2353
        %v2355 = vpop.f32.mrb[0].mxu0
        %v2356 = vadd.f32 %v2163, %v2355
        %v2357 = vpop.f32.mrb[0].mxu0
        %v2358 = vadd.f32 %v2165, %v2357
        %2359 = vmatprep.mubr.bf16.mxu0 0
        %2360 = vmatmul.mubr.bf16.gmra.mrb[0].mxu0 %v961
        %v2361 = vpop.f32.mrb[0].mxu0
        %v2362 = vadd.f32 %v2169, %v2361
        %v2363 = vpop.f32.mrb[0].mxu0
        %v2364 = vadd.f32 %v2171, %v2363
        %v2365 = vpop.f32.mrb[0].mxu0
        %v2366 = vadd.f32 %v2173, %v2365
        %v2367 = vpop.f32.mrb[0].mxu0
        %v2368 = vadd.f32 %v2175, %v2367
        %2369 = vmatprep.mubr.bf16.mxu0 0
        %2370 = vmatmul.mubr.bf16.gmra.mrb[0].mxu0 %v968
        %v2371 = vpop.f32.mrb[0].mxu0
        %v2372 = vadd.f32 %v2179, %v2371
        %v2373 = vpop.f32.mrb[0].mxu0
        %v2374 = vadd.f32 %v2181, %v2373
        %v2375 = vpop.f32.mrb[0].mxu0
        %v2376 = vadd.f32 %v2183, %v2375
        %v2377 = vpop.f32.mrb[0].mxu0
        %v2378 = vadd.f32 %v2185, %v2377
        %2379 = vmatprep.mubr.bf16.mxu0 0
        %2380 = vmatmul.mubr.bf16.gmra.mrb[0].mxu0 %v975
        %v2381 = vpop.f32.mrb[0].mxu0
        %v2382 = vadd.f32 %v2189, %v2381
        %v2383 = vpop.f32.mrb[0].mxu0
        %v2384 = vadd.f32 %v2191, %v2383
        %v2385 = vpop.f32.mrb[0].mxu0
        %v2386 = vadd.f32 %v2193, %v2385
        %v2387 = vpop.f32.mrb[0].mxu0
        %v2388 = vadd.f32 %v2195, %v2387
        %2389 = vmatprep.mubr.bf16.mxu0 0
        %2390 = vmatmul.mubr.bf16.gmra.mrb[0].mxu0 %v982
        %v2391 = vpop.f32.mrb[0].mxu0
        %v2392 = vadd.f32 %v2199, %v2391
        %v2393 = vpop.f32.mrb[0].mxu0
        %v2394 = vadd.f32 %v2201, %v2393
        %v2395 = vpop.f32.mrb[0].mxu0
        %v2396 = vadd.f32 %v2203, %v2395
        %v2397 = vpop.f32.mrb[0].mxu0
        %v2398 = vadd.f32 %v2205, %v2397
        %2399 = vmatprep.mubr.bf16.mxu0 0
        %2400 = vmatmul.mubr.bf16.gmra.mrb[0].mxu0 %v989
        %v2401 = vpop.f32.mrb[0].mxu0
        %v2402 = vadd.f32 %v2209, %v2401
        %v2403 = vpop.f32.mrb[0].mxu0
        %v2404 = vadd.f32 %v2211, %v2403
        %v2405 = vpop.f32.mrb[0].mxu0
        %v2406 = vadd.f32 %v2213, %v2405
        %v2407 = vpop.f32.mrb[0].mxu0
        %v2408 = vadd.f32 %v2215, %v2407
        %2409 = vmatprep.mubr.bf16.mxu0 0
        %2410 = vmatmul.mubr.bf16.gmra.mrb[0].mxu0 %v996
        %v2411 = vpop.f32.mrb[0].mxu0
        %v2412 = vadd.f32 %v2219, %v2411
        %v2413 = vpop.f32.mrb[0].mxu0
        %v2414 = vadd.f32 %v2221, %v2413
        %v2415 = vpop.f32.mrb[0].mxu0
        %v2416 = vadd.f32 %v2223, %v2415
        %v2417 = vpop.f32.mrb[0].mxu0
        %v2418 = vadd.f32 %v2225, %v2417
        %2419 = vmatprep.mubr.bf16.mxu0 0
        %2420 = vmatmul.mubr.bf16.gmra.mrb[0].mxu0 %v1003
        %v2421 = vpop.f32.mrb[0].mxu0
        %v2422 = vadd.f32 %v2229, %v2421
        %v2423 = vpop.f32.mrb[0].mxu0
        %v2424 = vadd.f32 %v2231, %v2423
        %v2425 = vpop.f32.mrb[0].mxu0
        %v2426 = vadd.f32 %v2233, %v2425
        %v2427 = vpop.f32.mrb[0].mxu0
        %v2428 = vadd.f32 %v2235, %v2427
        %2429 = vmatprep.mubr.bf16.mxu0 0
        %2430 = vmatmul.mubr.bf16.gmra.mrb[0].mxu0 %v1010
        %v2431 = vpop.f32.mrb[0].mxu0
        %v2432 = vadd.f32 %v2239, %v2431
        %v2433 = vpop.f32.mrb[0].mxu0
        %v2434 = vadd.f32 %v2241, %v2433
        %v2435 = vpop.f32.mrb[0].mxu0
        %v2436 = vadd.f32 %v2243, %v2435
        %v2437 = vpop.f32.mrb[0].mxu0
        %v2438 = vadd.f32 %v2245, %v2437
        %2439 = vmatprep.mubr.bf16.mxu0 0
        %2440 = vmatmul.mubr.bf16.gmra.mrb[0].mxu0 %v1017
        %v2441 = vpop.f32.mrb[0].mxu0
        %v2442 = vadd.f32 %v2249, %v2441
        %v2443 = vpop.f32.mrb[0].mxu0
        %v2444 = vadd.f32 %v2251, %v2443
        %v2445 = vpop.f32.mrb[0].mxu0
        %v2446 = vadd.f32 %v2253, %v2445
        %v2447 = vpop.f32.mrb[0].mxu0
        %v2448 = vadd.f32 %v2255, %v2447
        %2449 = vmatprep.mubr.bf16.mxu0 0
        %2450 = vmatmul.mubr.bf16.gmra.mrb[0].mxu0 %v1024
        %v2451 = vpop.f32.mrb[0].mxu0
        %v2452 = vadd.f32 %v2259, %v2451
        %v2453 = vpop.f32.mrb[0].mxu0
        %v2454 = vadd.f32 %v2261, %v2453
        %v2455 = vpop.f32.mrb[0].mxu0
        %v2456 = vadd.f32 %v2263, %v2455
        %v2457 = vpop.f32.mrb[0].mxu0
        %v2458 = vadd.f32 %v2265, %v2457
        %2459 = vmatprep.mubr.bf16.mxu0 0
        %2460 = vmatmul.mubr.bf16.gmra.mrb[0].mxu0 %v1031
        %v2461 = vpop.f32.mrb[0].mxu0
        %v2462 = vadd.f32 %v2269, %v2461
        %v2463 = vpop.f32.mrb[0].mxu0
        %v2464 = vadd.f32 %v2271, %v2463
        %v2465 = vpop.f32.mrb[0].mxu0
        %v2466 = vadd.f32 %v2273, %v2465
        %v2467 = vpop.f32.mrb[0].mxu0
        %v2468 = vadd.f32 %v2275, %v2467
        %2469 = vmatprep.mubr.bf16.mxu0 0
        %2470 = vmatmul.mubr.bf16.gmra.mrb[0].mxu0 %v1038
        %v2471 = vpop.f32.mrb[0].mxu0
        %v2472 = vadd.f32 %v2279, %v2471
        %v2473 = vpop.f32.mrb[0].mxu0
        %v2474 = vadd.f32 %v2281, %v2473
        %v2475 = vpop.f32.mrb[0].mxu0
        %v2476 = vadd.f32 %v2283, %v2475
        %v2477 = vpop.f32.mrb[0].mxu0
        %v2478 = vadd.f32 %v2285, %v2477
        %2479 = vmatprep.mubr.bf16.mxu0 0
        %2480 = vmatmul.mubr.bf16.gmra.mrb[0].mxu0 %v1045
        %v2481 = vpop.f32.mrb[0].mxu0
        %v2482 = vadd.f32 %v2289, %v2481
        %v2483 = vpop.f32.mrb[0].mxu0
        %v2484 = vadd.f32 %v2291, %v2483
        %v2485 = vpop.f32.mrb[0].mxu0
        %v2486 = vadd.f32 %v2293, %v2485
        %v2487 = vpop.f32.mrb[0].mxu0
        %v2488 = vadd.f32 %v2295, %v2487
        %2489 = vdwg.mxu0
        %vm2490 = vcmp.gt.f32.partialorder %v2332, 0.0
        %vm2491 = vcmp.gt.f32.partialorder %v2334, 0.0
        %vm2492 = vcmp.gt.f32.partialorder %v2336, 0.0
        %vm2493 = vcmp.gt.f32.partialorder %v2338, 0.0
        %vm2494 = vcmp.gt.f32.partialorder %v2342, 0.0
        %vm2495 = vcmp.gt.f32.partialorder %v2344, 0.0
        %vm2496 = vcmp.gt.f32.partialorder %v2346, 0.0
        %vm2497 = vcmp.gt.f32.partialorder %v2348, 0.0
        %vm2498 = vcmp.gt.f32.partialorder %v2352, 0.0
        %vm2499 = vcmp.gt.f32.partialorder %v2354, 0.0
        %vm2500 = vcmp.gt.f32.partialorder %v2356, 0.0
        %vm2501 = vcmp.gt.f32.partialorder %v2358, 0.0
        %vm2502 = vcmp.gt.f32.partialorder %v2362, 0.0
        %vm2503 = vcmp.gt.f32.partialorder %v2364, 0.0
        %vm2504 = vcmp.gt.f32.partialorder %v2366, 0.0
        %vm2505 = vcmp.gt.f32.partialorder %v2368, 0.0
        %vm2506 = vcmp.gt.f32.partialorder %v2372, 0.0
        %vm2507 = vcmp.gt.f32.partialorder %v2374, 0.0
        %vm2508 = vcmp.gt.f32.partialorder %v2376, 0.0
        %vm2509 = vcmp.gt.f32.partialorder %v2378, 0.0
        %vm2510 = vcmp.gt.f32.partialorder %v2382, 0.0
        %vm2511 = vcmp.gt.f32.partialorder %v2384, 0.0
        %vm2512 = vcmp.gt.f32.partialorder %v2386, 0.0
        %vm2513 = vcmp.gt.f32.partialorder %v2388, 0.0
        %vm2514 = vcmp.gt.f32.partialorder %v2392, 0.0
        %vm2515 = vcmp.gt.f32.partialorder %v2394, 0.0
        %vm2516 = vcmp.gt.f32.partialorder %v2396, 0.0
        %vm2517 = vcmp.gt.f32.partialorder %v2398, 0.0
        %vm2518 = vcmp.gt.f32.partialorder %v2402, 0.0
        %vm2519 = vcmp.gt.f32.partialorder %v2404, 0.0
        %vm2520 = vcmp.gt.f32.partialorder %v2406, 0.0
        %vm2521 = vcmp.gt.f32.partialorder %v2408, 0.0
        %vm2522 = vcmp.gt.f32.partialorder %v2412, 0.0
        %vm2523 = vcmp.gt.f32.partialorder %v2414, 0.0
        %vm2524 = vcmp.gt.f32.partialorder %v2416, 0.0
        %vm2525 = vcmp.gt.f32.partialorder %v2418, 0.0
        %vm2526 = vcmp.gt.f32.partialorder %v2422, 0.0
        %vm2527 = vcmp.gt.f32.partialorder %v2424, 0.0
        %vm2528 = vcmp.gt.f32.partialorder %v2426, 0.0
        %vm2529 = vcmp.gt.f32.partialorder %v2428, 0.0
        %vm2530 = vcmp.gt.f32.partialorder %v2432, 0.0
        %vm2531 = vcmp.gt.f32.partialorder %v2434, 0.0
        %vm2532 = vcmp.gt.f32.partialorder %v2436, 0.0
        %vm2533 = vcmp.gt.f32.partialorder %v2438, 0.0
        %vm2534 = vcmp.gt.f32.partialorder %v2442, 0.0
        %vm2535 = vcmp.gt.f32.partialorder %v2444, 0.0
        %vm2536 = vcmp.gt.f32.partialorder %v2446, 0.0
        %vm2537 = vcmp.gt.f32.partialorder %v2448, 0.0
        %vm2538 = vcmp.gt.f32.partialorder %v2452, 0.0
        %vm2539 = vcmp.gt.f32.partialorder %v2454, 0.0
        %vm2540 = vcmp.gt.f32.partialorder %v2456, 0.0
        %vm2541 = vcmp.gt.f32.partialorder %v2458, 0.0
        %vm2542 = vcmp.gt.f32.partialorder %v2462, 0.0
        %vm2543 = vcmp.gt.f32.partialorder %v2464, 0.0
        %vm2544 = vcmp.gt.f32.partialorder %v2466, 0.0
        %vm2545 = vcmp.gt.f32.partialorder %v2468, 0.0
        %vm2546 = vcmp.gt.f32.partialorder %v2472, 0.0
        %vm2547 = vcmp.gt.f32.partialorder %v2474, 0.0
        %vm2548 = vcmp.gt.f32.partialorder %v2476, 0.0
        %vm2549 = vcmp.gt.f32.partialorder %v2478, 0.0
        %vm2550 = vcmp.gt.f32.partialorder %v2482, 0.0
        %vm2551 = vcmp.gt.f32.partialorder %v2484, 0.0
        %vm2552 = vcmp.gt.f32.partialorder %v2486, 0.0
        %vm2553 = vcmp.gt.f32.partialorder %v2488, 0.0
        %v2554 = vmul.f32 %v2332, 0.02
        %v2555 = vmul.f32 %v2334, 0.02
        %v2556 = vmul.f32 %v2336, 0.02
        %v2557 = vmul.f32 %v2338, 0.02
        %v2558 = vmul.f32 %v2342, 0.02
        %v2559 = vmul.f32 %v2344, 0.02
        %v2560 = vmul.f32 %v2346, 0.02
        %v2561 = vmul.f32 %v2348, 0.02
        %v2562 = vmul.f32 %v2352, 0.02
        %v2563 = vmul.f32 %v2354, 0.02
        %v2564 = vmul.f32 %v2356, 0.02
        %v2565 = vmul.f32 %v2358, 0.02
        %v2566 = vmul.f32 %v2362, 0.02
        %v2567 = vmul.f32 %v2364, 0.02
        %v2568 = vmul.f32 %v2366, 0.02
        %v2569 = vmul.f32 %v2368, 0.02
        %v2570 = vmul.f32 %v2372, 0.02
        %v2571 = vmul.f32 %v2374, 0.02
        %v2572 = vmul.f32 %v2376, 0.02
        %v2573 = vmul.f32 %v2378, 0.02
        %v2574 = vmul.f32 %v2382, 0.02
        %v2575 = vmul.f32 %v2384, 0.02
        %v2576 = vmul.f32 %v2386, 0.02
        %v2577 = vmul.f32 %v2388, 0.02
        %v2578 = vmul.f32 %v2392, 0.02
        %v2579 = vmul.f32 %v2394, 0.02
        %v2580 = vmul.f32 %v2396, 0.02
        %v2581 = vmul.f32 %v2398, 0.02
        %v2582 = vmul.f32 %v2402, 0.02
        %v2583 = vmul.f32 %v2404, 0.02
        %v2584 = vmul.f32 %v2406, 0.02
        %v2585 = vmul.f32 %v2408, 0.02
        %v2586 = vmul.f32 %v2412, 0.02
        %v2587 = vmul.f32 %v2414, 0.02
        %v2588 = vmul.f32 %v2416, 0.02
        %v2589 = vmul.f32 %v2418, 0.02
        %v2590 = vmul.f32 %v2422, 0.02
        %v2591 = vmul.f32 %v2424, 0.02
        %v2592 = vmul.f32 %v2426, 0.02
        %v2593 = vmul.f32 %v2428, 0.02
        %v2594 = vmul.f32 %v2432, 0.02
        %v2595 = vmul.f32 %v2434, 0.02
        %v2596 = vmul.f32 %v2436, 0.02
        %v2597 = vmul.f32 %v2438, 0.02
        %v2598 = vmul.f32 %v2442, 0.02
        %v2599 = vmul.f32 %v2444, 0.02
        %v2600 = vmul.f32 %v2446, 0.02
        %v2601 = vmul.f32 %v2448, 0.02
        %v2602 = vmul.f32 %v2452, 0.02
        %v2603 = vmul.f32 %v2454, 0.02
        %v2604 = vmul.f32 %v2456, 0.02
        %v2605 = vmul.f32 %v2458, 0.02
        %v2606 = vmul.f32 %v2462, 0.02
        %v2607 = vmul.f32 %v2464, 0.02
        %v2608 = vmul.f32 %v2466, 0.02
        %v2609 = vmul.f32 %v2468, 0.02
        %v2610 = vmul.f32 %v2472, 0.02
        %v2611 = vmul.f32 %v2474, 0.02
        %v2612 = vmul.f32 %v2476, 0.02
        %v2613 = vmul.f32 %v2478, 0.02
        %v2614 = vmul.f32 %v2482, 0.02
        %v2615 = vmul.f32 %v2484, 0.02
        %v2616 = vmul.f32 %v2486, 0.02
        %v2617 = vmul.f32 %v2488, 0.02
        %v2618 = vsel %vm2490, %v2332, %v2554
        %v2619 = vsel %vm2491, %v2334, %v2555
        %v2620 = vsel %vm2492, %v2336, %v2556
        %v2621 = vsel %vm2493, %v2338, %v2557
        %v2622 = vsel %vm2494, %v2342, %v2558
        %v2623 = vsel %vm2495, %v2344, %v2559
        %v2624 = vsel %vm2496, %v2346, %v2560
        %v2625 = vsel %vm2497, %v2348, %v2561
        %v2626 = vsel %vm2498, %v2352, %v2562
        %v2627 = vsel %vm2499, %v2354, %v2563
        %v2628 = vsel %vm2500, %v2356, %v2564
        %v2629 = vsel %vm2501, %v2358, %v2565
        %v2630 = vsel %vm2502, %v2362, %v2566
        %v2631 = vsel %vm2503, %v2364, %v2567
        %v2632 = vsel %vm2504, %v2366, %v2568
        %v2633 = vsel %vm2505, %v2368, %v2569
        %v2634 = vsel %vm2506, %v2372, %v2570
        %v2635 = vsel %vm2507, %v2374, %v2571
        %v2636 = vsel %vm2508, %v2376, %v2572
        %v2637 = vsel %vm2509, %v2378, %v2573
        %v2638 = vsel %vm2510, %v2382, %v2574
        %v2639 = vsel %vm2511, %v2384, %v2575
        %v2640 = vsel %vm2512, %v2386, %v2576
        %v2641 = vsel %vm2513, %v2388, %v2577
        %v2642 = vsel %vm2514, %v2392, %v2578
        %v2643 = vsel %vm2515, %v2394, %v2579
        %v2644 = vsel %vm2516, %v2396, %v2580
        %v2645 = vsel %vm2517, %v2398, %v2581
        %v2646 = vsel %vm2518, %v2402, %v2582
        %v2647 = vsel %vm2519, %v2404, %v2583
        %v2648 = vsel %vm2520, %v2406, %v2584
        %v2649 = vsel %vm2521, %v2408, %v2585
        %v2650 = vsel %vm2522, %v2412, %v2586
        %v2651 = vsel %vm2523, %v2414, %v2587
        %v2652 = vsel %vm2524, %v2416, %v2588
        %v2653 = vsel %vm2525, %v2418, %v2589
        %v2654 = vsel %vm2526, %v2422, %v2590
        %v2655 = vsel %vm2527, %v2424, %v2591
        %v2656 = vsel %vm2528, %v2426, %v2592
        %v2657 = vsel %vm2529, %v2428, %v2593
        %v2658 = vsel %vm2530, %v2432, %v2594
        %v2659 = vsel %vm2531, %v2434, %v2595
        %v2660 = vsel %vm2532, %v2436, %v2596
        %v2661 = vsel %vm2533, %v2438, %v2597
        %v2662 = vsel %vm2534, %v2442, %v2598
        %v2663 = vsel %vm2535, %v2444, %v2599
        %v2664 = vsel %vm2536, %v2446, %v2600
        %v2665 = vsel %vm2537, %v2448, %v2601
        %v2666 = vsel %vm2538, %v2452, %v2602
        %v2667 = vsel %vm2539, %v2454, %v2603
        %v2668 = vsel %vm2540, %v2456, %v2604
        %v2669 = vsel %vm2541, %v2458, %v2605
        %v2670 = vsel %vm2542, %v2462, %v2606
        %v2671 = vsel %vm2543, %v2464, %v2607
        %v2672 = vsel %vm2544, %v2466, %v2608
        %v2673 = vsel %vm2545, %v2468, %v2609
        %v2674 = vsel %vm2546, %v2472, %v2610
        %v2675 = vsel %vm2547, %v2474, %v2611
        %v2676 = vsel %vm2548, %v2476, %v2612
        %v2677 = vsel %vm2549, %v2478, %v2613
        %v2678 = vsel %vm2550, %v2482, %v2614
        %v2679 = vsel %vm2551, %v2484, %v2615
        %v2680 = vsel %vm2552, %v2486, %v2616
        %v2681 = vsel %vm2553, %v2488, %v2617
        %v2682 = vadd.f32 %v2618, %v2619
        %2683 = vadd.xlane.f32.xlu0 %v2682
        %v2684 = vpop.xlane.xlu0 %2683
        %v2685 = vadd.f32 %v2620, %v2621
        %2686 = vadd.xlane.f32.xlu0 %v2685
        %v2687 = vpop.xlane.xlu0 %2686
        %v2688 = vadd.f32 %v2622, %v2623
        %2689 = vadd.xlane.f32.xlu0 %v2688
        %v2690 = vpop.xlane.xlu0 %2689
        %v2691 = vadd.f32 %v2624, %v2625
        %2692 = vadd.xlane.f32.xlu0 %v2691
        %v2693 = vpop.xlane.xlu0 %2692
        %v2694 = vadd.f32 %v2626, %v2627
        %2695 = vadd.xlane.f32.xlu0 %v2694
        %v2696 = vpop.xlane.xlu0 %2695
        %v2697 = vadd.f32 %v2628, %v2629
        %2698 = vadd.xlane.f32.xlu0 %v2697
        %v2699 = vpop.xlane.xlu0 %2698
        %v2700 = vadd.f32 %v2630, %v2631
        %2701 = vadd.xlane.f32.xlu0 %v2700
        %v2702 = vpop.xlane.xlu0 %2701
        %v2703 = vadd.f32 %v2632, %v2633
        %2704 = vadd.xlane.f32.xlu0 %v2703
        %v2705 = vpop.xlane.xlu0 %2704
        %v2706 = vadd.f32 %v2634, %v2635
        %2707 = vadd.xlane.f32.xlu0 %v2706
        %v2708 = vpop.xlane.xlu0 %2707
        %v2709 = vadd.f32 %v2636, %v2637
        %2710 = vadd.xlane.f32.xlu0 %v2709
        %v2711 = vpop.xlane.xlu0 %2710
        %v2712 = vadd.f32 %v2638, %v2639
        %2713 = vadd.xlane.f32.xlu0 %v2712
        %v2714 = vpop.xlane.xlu0 %2713
        %v2715 = vadd.f32 %v2640, %v2641
        %2716 = vadd.xlane.f32.xlu0 %v2715
        %v2717 = vpop.xlane.xlu0 %2716
        %v2718 = vadd.f32 %v2642, %v2643
        %2719 = vadd.xlane.f32.xlu0 %v2718
        %v2720 = vpop.xlane.xlu0 %2719
        %v2721 = vadd.f32 %v2644, %v2645
        %2722 = vadd.xlane.f32.xlu0 %v2721
        %v2723 = vpop.xlane.xlu0 %2722
        %v2724 = vadd.f32 %v2646, %v2647
        %2725 = vadd.xlane.f32.xlu0 %v2724
        %v2726 = vpop.xlane.xlu0 %2725
        %v2727 = vadd.f32 %v2648, %v2649
        %2728 = vadd.xlane.f32.xlu0 %v2727
        %v2729 = vpop.xlane.xlu0 %2728
        %v2730 = vadd.f32 %v2650, %v2651
        %2731 = vadd.xlane.f32.xlu0 %v2730
        %v2732 = vpop.xlane.xlu0 %2731
        %v2733 = vadd.f32 %v2652, %v2653
        %2734 = vadd.xlane.f32.xlu0 %v2733
        %v2735 = vpop.xlane.xlu0 %2734
        %v2736 = vadd.f32 %v2654, %v2655
        %2737 = vadd.xlane.f32.xlu0 %v2736
        %v2738 = vpop.xlane.xlu0 %2737
        %v2739 = vadd.f32 %v2656, %v2657
        %2740 = vadd.xlane.f32.xlu0 %v2739
        %v2741 = vpop.xlane.xlu0 %2740
        %v2742 = vadd.f32 %v2658, %v2659
        %2743 = vadd.xlane.f32.xlu0 %v2742
        %v2744 = vpop.xlane.xlu0 %2743
        %v2745 = vadd.f32 %v2660, %v2661
        %2746 = vadd.xlane.f32.xlu0 %v2745
        %v2747 = vpop.xlane.xlu0 %2746
        %v2748 = vadd.f32 %v2662, %v2663
        %2749 = vadd.xlane.f32.xlu0 %v2748
        %v2750 = vpop.xlane.xlu0 %2749
        %v2751 = vadd.f32 %v2664, %v2665
        %2752 = vadd.xlane.f32.xlu0 %v2751
        %v2753 = vpop.xlane.xlu0 %2752
        %v2754 = vadd.f32 %v2666, %v2667
        %2755 = vadd.xlane.f32.xlu0 %v2754
        %v2756 = vpop.xlane.xlu0 %2755
        %v2757 = vadd.f32 %v2668, %v2669
        %2758 = vadd.xlane.f32.xlu0 %v2757
        %v2759 = vpop.xlane.xlu0 %2758
        %v2760 = vadd.f32 %v2670, %v2671
        %2761 = vadd.xlane.f32.xlu0 %v2760
        %v2762 = vpop.xlane.xlu0 %2761
        %v2763 = vadd.f32 %v2672, %v2673
        %2764 = vadd.xlane.f32.xlu0 %v2763
        %v2765 = vpop.xlane.xlu0 %2764
        %v2766 = vadd.f32 %v2674, %v2675
        %2767 = vadd.xlane.f32.xlu0 %v2766
        %v2768 = vpop.xlane.xlu0 %2767
        %v2769 = vadd.f32 %v2676, %v2677
        %2770 = vadd.xlane.f32.xlu0 %v2769
        %v2771 = vpop.xlane.xlu0 %2770
        %v2772 = vadd.f32 %v2678, %v2679
        %2773 = vadd.xlane.f32.xlu0 %v2772
        %v2774 = vpop.xlane.xlu0 %2773
        %v2775 = vadd.f32 %v2680, %v2681
        %2776 = vadd.xlane.f32.xlu0 %v2775
        %v2777 = vpop.xlane.xlu0 %2776
        %v2778 = vmul.f32 %v2618, %v2618
        %v2779 = vmul.f32 %v2619, %v2619
        %v2780 = vmul.f32 %v2620, %v2620
        %v2781 = vmul.f32 %v2621, %v2621
        %v2782 = vmul.f32 %v2622, %v2622
        %v2783 = vmul.f32 %v2623, %v2623
        %v2784 = vmul.f32 %v2624, %v2624
        %v2785 = vmul.f32 %v2625, %v2625
        %v2786 = vmul.f32 %v2626, %v2626
        %v2787 = vmul.f32 %v2627, %v2627
        %v2788 = vmul.f32 %v2628, %v2628
        %v2789 = vmul.f32 %v2629, %v2629
        %v2790 = vmul.f32 %v2630, %v2630
        %v2791 = vmul.f32 %v2631, %v2631
        %v2792 = vmul.f32 %v2632, %v2632
        %v2793 = vmul.f32 %v2633, %v2633
        %v2794 = vmul.f32 %v2634, %v2634
        %v2795 = vmul.f32 %v2635, %v2635
        %v2796 = vmul.f32 %v2636, %v2636
        %v2797 = vmul.f32 %v2637, %v2637
        %v2798 = vmul.f32 %v2638, %v2638
        %v2799 = vmul.f32 %v2639, %v2639
        %v2800 = vmul.f32 %v2640, %v2640
        %v2801 = vmul.f32 %v2641, %v2641
        %v2802 = vmul.f32 %v2642, %v2642
        %v2803 = vmul.f32 %v2643, %v2643
        %v2804 = vmul.f32 %v2644, %v2644
        %v2805 = vmul.f32 %v2645, %v2645
        %v2806 = vmul.f32 %v2646, %v2646
        %v2807 = vmul.f32 %v2647, %v2647
        %v2808 = vmul.f32 %v2648, %v2648
        %v2809 = vmul.f32 %v2649, %v2649
        %v2810 = vmul.f32 %v2650, %v2650
        %v2811 = vmul.f32 %v2651, %v2651
        %v2812 = vmul.f32 %v2652, %v2652
        %v2813 = vmul.f32 %v2653, %v2653
        %v2814 = vmul.f32 %v2654, %v2654
        %v2815 = vmul.f32 %v2655, %v2655
        %v2816 = vmul.f32 %v2656, %v2656
        %v2817 = vmul.f32 %v2657, %v2657
        %v2818 = vmul.f32 %v2658, %v2658
        %v2819 = vmul.f32 %v2659, %v2659
        %v2820 = vmul.f32 %v2660, %v2660
        %v2821 = vmul.f32 %v2661, %v2661
        %v2822 = vmul.f32 %v2662, %v2662
        %v2823 = vmul.f32 %v2663, %v2663
        %v2824 = vmul.f32 %v2664, %v2664
        %v2825 = vmul.f32 %v2665, %v2665
        %v2826 = vmul.f32 %v2666, %v2666
        %v2827 = vmul.f32 %v2667, %v2667
        %v2828 = vmul.f32 %v2668, %v2668
        %v2829 = vmul.f32 %v2669, %v2669
        %v2830 = vmul.f32 %v2670, %v2670
        %v2831 = vmul.f32 %v2671, %v2671
        %v2832 = vmul.f32 %v2672, %v2672
        %v2833 = vmul.f32 %v2673, %v2673
        %v2834 = vmul.f32 %v2674, %v2674
        %v2835 = vmul.f32 %v2675, %v2675
        %v2836 = vmul.f32 %v2676, %v2676
        %v2837 = vmul.f32 %v2677, %v2677
        %v2838 = vmul.f32 %v2678, %v2678
        %v2839 = vmul.f32 %v2679, %v2679
        %v2840 = vmul.f32 %v2680, %v2680
        %v2841 = vmul.f32 %v2681, %v2681
        %v2842 = vadd.f32 %v2778, %v2779
        %2843 = vadd.xlane.f32.xlu0 %v2842
        %v2844 = vpop.xlane.xlu0 %2843
        %v2845 = vadd.f32 %v2780, %v2781
        %2846 = vadd.xlane.f32.xlu0 %v2845
        %v2847 = vpop.xlane.xlu0 %2846
        %v2848 = vadd.f32 %v2782, %v2783
        %2849 = vadd.xlane.f32.xlu0 %v2848
        %v2850 = vpop.xlane.xlu0 %2849
        %v2851 = vadd.f32 %v2784, %v2785
        %2852 = vadd.xlane.f32.xlu0 %v2851
        %v2853 = vpop.xlane.xlu0 %2852
        %v2854 = vadd.f32 %v2786, %v2787
        %2855 = vadd.xlane.f32.xlu0 %v2854
        %v2856 = vpop.xlane.xlu0 %2855
        %v2857 = vadd.f32 %v2788, %v2789
        %2858 = vadd.xlane.f32.xlu0 %v2857
        %v2859 = vpop.xlane.xlu0 %2858
        %v2860 = vadd.f32 %v2790, %v2791
        %2861 = vadd.xlane.f32.xlu0 %v2860
        %v2862 = vpop.xlane.xlu0 %2861
        %v2863 = vadd.f32 %v2792, %v2793
        %2864 = vadd.xlane.f32.xlu0 %v2863
        %v2865 = vpop.xlane.xlu0 %2864
        %v2866 = vadd.f32 %v2794, %v2795
        %2867 = vadd.xlane.f32.xlu0 %v2866
        %v2868 = vpop.xlane.xlu0 %2867
        %v2869 = vadd.f32 %v2796, %v2797
        %2870 = vadd.xlane.f32.xlu0 %v2869
        %v2871 = vpop.xlane.xlu0 %2870
        %v2872 = vadd.f32 %v2798, %v2799
        %2873 = vadd.xlane.f32.xlu0 %v2872
        %v2874 = vpop.xlane.xlu0 %2873
        %v2875 = vadd.f32 %v2800, %v2801
        %2876 = vadd.xlane.f32.xlu0 %v2875
        %v2877 = vpop.xlane.xlu0 %2876
        %v2878 = vadd.f32 %v2802, %v2803
        %2879 = vadd.xlane.f32.xlu0 %v2878
        %v2880 = vpop.xlane.xlu0 %2879
        %v2881 = vadd.f32 %v2804, %v2805
        %2882 = vadd.xlane.f32.xlu0 %v2881
        %v2883 = vpop.xlane.xlu0 %2882
        %v2884 = vadd.f32 %v2806, %v2807
        %2885 = vadd.xlane.f32.xlu0 %v2884
        %v2886 = vpop.xlane.xlu0 %2885
        %v2887 = vadd.f32 %v2808, %v2809
        %2888 = vadd.xlane.f32.xlu0 %v2887
        %v2889 = vpop.xlane.xlu0 %2888
        %v2890 = vadd.f32 %v2810, %v2811
        %2891 = vadd.xlane.f32.xlu0 %v2890
        %v2892 = vpop.xlane.xlu0 %2891
        %v2893 = vadd.f32 %v2812, %v2813
        %2894 = vadd.xlane.f32.xlu0 %v2893
        %v2895 = vpop.xlane.xlu0 %2894
        %v2896 = vadd.f32 %v2814, %v2815
        %2897 = vadd.xlane.f32.xlu0 %v2896
        %v2898 = vpop.xlane.xlu0 %2897
        %v2899 = vadd.f32 %v2816, %v2817
        %2900 = vadd.xlane.f32.xlu0 %v2899
        %v2901 = vpop.xlane.xlu0 %2900
        %v2902 = vadd.f32 %v2818, %v2819
        %2903 = vadd.xlane.f32.xlu0 %v2902
        %v2904 = vpop.xlane.xlu0 %2903
        %v2905 = vadd.f32 %v2820, %v2821
        %2906 = vadd.xlane.f32.xlu0 %v2905
        %v2907 = vpop.xlane.xlu0 %2906
        %v2908 = vadd.f32 %v2822, %v2823
        %2909 = vadd.xlane.f32.xlu0 %v2908
        %v2910 = vpop.xlane.xlu0 %2909
        %v2911 = vadd.f32 %v2824, %v2825
        %2912 = vadd.xlane.f32.xlu0 %v2911
        %v2913 = vpop.xlane.xlu0 %2912
        %v2914 = vadd.f32 %v2826, %v2827
        %2915 = vadd.xlane.f32.xlu0 %v2914
        %v2916 = vpop.xlane.xlu0 %2915
        %v2917 = vadd.f32 %v2828, %v2829
        %2918 = vadd.xlane.f32.xlu0 %v2917
        %v2919 = vpop.xlane.xlu0 %2918
        %v2920 = vadd.f32 %v2830, %v2831
        %2921 = vadd.xlane.f32.xlu0 %v2920
        %v2922 = vpop.xlane.xlu0 %2921
        %v2923 = vadd.f32 %v2832, %v2833
        %2924 = vadd.xlane.f32.xlu0 %v2923
        %v2925 = vpop.xlane.xlu0 %2924
        %v2926 = vadd.f32 %v2834, %v2835
        %2927 = vadd.xlane.f32.xlu0 %v2926
        %v2928 = vpop.xlane.xlu0 %2927
        %v2929 = vadd.f32 %v2836, %v2837
        %2930 = vadd.xlane.f32.xlu0 %v2929
        %v2931 = vpop.xlane.xlu0 %2930
        %v2932 = vadd.f32 %v2838, %v2839
        %2933 = vadd.xlane.f32.xlu0 %v2932
        %v2934 = vpop.xlane.xlu0 %2933
        %v2935 = vadd.f32 %v2840, %v2841
        %2936 = vadd.xlane.f32.xlu0 %v2935
        %v2937 = vpop.xlane.xlu0 %2936
        %v2938 = vmul.f32 %v2684, 0.005
        %v2939 = vmul.f32 %v2687, 0.005
        %v2940 = vmul.f32 %v2690, 0.005
        %v2941 = vmul.f32 %v2693, 0.005
        %v2942 = vmul.f32 %v2696, 0.005
        %v2943 = vmul.f32 %v2699, 0.005
        %v2944 = vmul.f32 %v2702, 0.005
        %v2945 = vmul.f32 %v2705, 0.005
        %v2946 = vmul.f32 %v2708, 0.005
        %v2947 = vmul.f32 %v2711, 0.005
        %v2948 = vmul.f32 %v2714, 0.005
        %v2949 = vmul.f32 %v2717, 0.005
        %v2950 = vmul.f32 %v2720, 0.005
        %v2951 = vmul.f32 %v2723, 0.005
        %v2952 = vmul.f32 %v2726, 0.005
        %v2953 = vmul.f32 %v2729, 0.005
        %v2954 = vmul.f32 %v2732, 0.005
        %v2955 = vmul.f32 %v2735, 0.005
        %v2956 = vmul.f32 %v2738, 0.005
        %v2957 = vmul.f32 %v2741, 0.005
        %v2958 = vmul.f32 %v2744, 0.005
        %v2959 = vmul.f32 %v2747, 0.005
        %v2960 = vmul.f32 %v2750, 0.005
        %v2961 = vmul.f32 %v2753, 0.005
        %v2962 = vmul.f32 %v2756, 0.005
        %v2963 = vmul.f32 %v2759, 0.005
        %v2964 = vmul.f32 %v2762, 0.005
        %v2965 = vmul.f32 %v2765, 0.005
        %v2966 = vmul.f32 %v2768, 0.005
        %v2967 = vmul.f32 %v2771, 0.005
        %v2968 = vmul.f32 %v2774, 0.005
        %v2969 = vmul.f32 %v2777, 0.005
        %v2970 = vmul.f32 %v2844, 0.005
        %v2971 = vmul.f32 %v2847, 0.005
        %v2972 = vmul.f32 %v2850, 0.005
        %v2973 = vmul.f32 %v2853, 0.005
        %v2974 = vmul.f32 %v2856, 0.005
        %v2975 = vmul.f32 %v2859, 0.005
        %v2976 = vmul.f32 %v2862, 0.005
        %v2977 = vmul.f32 %v2865, 0.005
        %v2978 = vmul.f32 %v2868, 0.005
        %v2979 = vmul.f32 %v2871, 0.005
        %v2980 = vmul.f32 %v2874, 0.005
        %v2981 = vmul.f32 %v2877, 0.005
        %v2982 = vmul.f32 %v2880, 0.005
        %v2983 = vmul.f32 %v2883, 0.005
        %v2984 = vmul.f32 %v2886, 0.005
        %v2985 = vmul.f32 %v2889, 0.005
        %v2986 = vmul.f32 %v2892, 0.005
        %v2987 = vmul.f32 %v2895, 0.005
        %v2988 = vmul.f32 %v2898, 0.005
        %v2989 = vmul.f32 %v2901, 0.005
        %v2990 = vmul.f32 %v2904, 0.005
        %v2991 = vmul.f32 %v2907, 0.005
        %v2992 = vmul.f32 %v2910, 0.005
        %v2993 = vmul.f32 %v2913, 0.005
        %v2994 = vmul.f32 %v2916, 0.005
        %v2995 = vmul.f32 %v2919, 0.005
        %v2996 = vmul.f32 %v2922, 0.005
        %v2997 = vmul.f32 %v2925, 0.005
        %v2998 = vmul.f32 %v2928, 0.005
        %v2999 = vmul.f32 %v2931, 0.005
        %v3000 = vmul.f32 %v2934, 0.005
        %v3001 = vmul.f32 %v2937, 0.005
        %v3002 = vmul.f32 %v2938, %v2938
        %v3003 = vmul.f32 %v2939, %v2939
        %v3004 = vmul.f32 %v2940, %v2940
        %v3005 = vmul.f32 %v2941, %v2941
        %v3006 = vmul.f32 %v2942, %v2942
        %v3007 = vmul.f32 %v2943, %v2943
        %v3008 = vmul.f32 %v2944, %v2944
        %v3009 = vmul.f32 %v2945, %v2945
        %v3010 = vmul.f32 %v2946, %v2946
        %v3011 = vmul.f32 %v2947, %v2947
        %v3012 = vmul.f32 %v2948, %v2948
        %v3013 = vmul.f32 %v2949, %v2949
        %v3014 = vmul.f32 %v2950, %v2950
        %v3015 = vmul.f32 %v2951, %v2951
        %v3016 = vmul.f32 %v2952, %v2952
        %v3017 = vmul.f32 %v2953, %v2953
        %v3018 = vmul.f32 %v2954, %v2954
        %v3019 = vmul.f32 %v2955, %v2955
        %v3020 = vmul.f32 %v2956, %v2956
        %v3021 = vmul.f32 %v2957, %v2957
        %v3022 = vmul.f32 %v2958, %v2958
        %v3023 = vmul.f32 %v2959, %v2959
        %v3024 = vmul.f32 %v2960, %v2960
        %v3025 = vmul.f32 %v2961, %v2961
        %v3026 = vmul.f32 %v2962, %v2962
        %v3027 = vmul.f32 %v2963, %v2963
        %v3028 = vmul.f32 %v2964, %v2964
        %v3029 = vmul.f32 %v2965, %v2965
        %v3030 = vmul.f32 %v2966, %v2966
        %v3031 = vmul.f32 %v2967, %v2967
        %v3032 = vmul.f32 %v2968, %v2968
        %v3033 = vmul.f32 %v2969, %v2969
        %v3034 = vsub.f32 %v2970, %v3002
        %v3035 = vsub.f32 %v2971, %v3003
        %v3036 = vsub.f32 %v2972, %v3004
        %v3037 = vsub.f32 %v2973, %v3005
        %v3038 = vsub.f32 %v2974, %v3006
        %v3039 = vsub.f32 %v2975, %v3007
        %v3040 = vsub.f32 %v2976, %v3008
        %v3041 = vsub.f32 %v2977, %v3009
        %v3042 = vsub.f32 %v2978, %v3010
        %v3043 = vsub.f32 %v2979, %v3011
        %v3044 = vsub.f32 %v2980, %v3012
        %v3045 = vsub.f32 %v2981, %v3013
        %v3046 = vsub.f32 %v2982, %v3014
        %v3047 = vsub.f32 %v2983, %v3015
        %v3048 = vsub.f32 %v2984, %v3016
        %v3049 = vsub.f32 %v2985, %v3017
        %v3050 = vsub.f32 %v2986, %v3018
        %v3051 = vsub.f32 %v2987, %v3019
        %v3052 = vsub.f32 %v2988, %v3020
        %v3053 = vsub.f32 %v2989, %v3021
        %v3054 = vsub.f32 %v2990, %v3022
        %v3055 = vsub.f32 %v2991, %v3023
        %v3056 = vsub.f32 %v2992, %v3024
        %v3057 = vsub.f32 %v2993, %v3025
        %v3058 = vsub.f32 %v2994, %v3026
        %v3059 = vsub.f32 %v2995, %v3027
        %v3060 = vsub.f32 %v2996, %v3028
        %v3061 = vsub.f32 %v2997, %v3029
        %v3062 = vsub.f32 %v2998, %v3030
        %v3063 = vsub.f32 %v2999, %v3031
        %v3064 = vsub.f32 %v3000, %v3032
        %v3065 = vsub.f32 %v3001, %v3033
        %v3066 = vmax.f32 %v3034, 0.0
        %v3067 = vmax.f32 %v3035, 0.0
        %v3068 = vmax.f32 %v3036, 0.0
        %v3069 = vmax.f32 %v3037, 0.0
        %v3070 = vmax.f32 %v3038, 0.0
        %v3071 = vmax.f32 %v3039, 0.0
        %v3072 = vmax.f32 %v3040, 0.0
        %v3073 = vmax.f32 %v3041, 0.0
        %v3074 = vmax.f32 %v3042, 0.0
        %v3075 = vmax.f32 %v3043, 0.0
        %v3076 = vmax.f32 %v3044, 0.0
        %v3077 = vmax.f32 %v3045, 0.0
        %v3078 = vmax.f32 %v3046, 0.0
        %v3079 = vmax.f32 %v3047, 0.0
        %v3080 = vmax.f32 %v3048, 0.0
        %v3081 = vmax.f32 %v3049, 0.0
        %v3082 = vmax.f32 %v3050, 0.0
        %v3083 = vmax.f32 %v3051, 0.0
        %v3084 = vmax.f32 %v3052, 0.0
        %v3085 = vmax.f32 %v3053, 0.0
        %v3086 = vmax.f32 %v3054, 0.0
        %v3087 = vmax.f32 %v3055, 0.0
        %v3088 = vmax.f32 %v3056, 0.0
        %v3089 = vmax.f32 %v3057, 0.0
        %v3090 = vmax.f32 %v3058, 0.0
        %v3091 = vmax.f32 %v3059, 0.0
        %v3092 = vmax.f32 %v3060, 0.0
        %v3093 = vmax.f32 %v3061, 0.0
        %v3094 = vmax.f32 %v3062, 0.0
        %v3095 = vmax.f32 %v3063, 0.0
        %v3096 = vmax.f32 %v3064, 0.0
        %v3097 = vmax.f32 %v3065, 0.0
        %v3098 = vsub.f32 %v2618, %v2938
        %v3099 = vsub.f32 %v2619, %v2938
        %v3100 = vsub.f32 %v2620, %v2939
        %v3101 = vsub.f32 %v2621, %v2939
        %v3102 = vsub.f32 %v2622, %v2940
        %v3103 = vsub.f32 %v2623, %v2940
        %v3104 = vsub.f32 %v2624, %v2941
        %v3105 = vsub.f32 %v2625, %v2941
        %v3106 = vsub.f32 %v2626, %v2942
        %v3107 = vsub.f32 %v2627, %v2942
        %v3108 = vsub.f32 %v2628, %v2943
        %v3109 = vsub.f32 %v2629, %v2943
        %v3110 = vsub.f32 %v2630, %v2944
        %v3111 = vsub.f32 %v2631, %v2944
        %v3112 = vsub.f32 %v2632, %v2945
        %v3113 = vsub.f32 %v2633, %v2945
        %v3114 = vsub.f32 %v2634, %v2946
        %v3115 = vsub.f32 %v2635, %v2946
        %v3116 = vsub.f32 %v2636, %v2947
        %v3117 = vsub.f32 %v2637, %v2947
        %v3118 = vsub.f32 %v2638, %v2948
        %v3119 = vsub.f32 %v2639, %v2948
        %v3120 = vsub.f32 %v2640, %v2949
        %v3121 = vsub.f32 %v2641, %v2949
        %v3122 = vsub.f32 %v2642, %v2950
        %v3123 = vsub.f32 %v2643, %v2950
        %v3124 = vsub.f32 %v2644, %v2951
        %v3125 = vsub.f32 %v2645, %v2951
        %v3126 = vsub.f32 %v2646, %v2952
        %v3127 = vsub.f32 %v2647, %v2952
        %v3128 = vsub.f32 %v2648, %v2953
        %v3129 = vsub.f32 %v2649, %v2953
        %v3130 = vsub.f32 %v2650, %v2954
        %v3131 = vsub.f32 %v2651, %v2954
        %v3132 = vsub.f32 %v2652, %v2955
        %v3133 = vsub.f32 %v2653, %v2955
        %v3134 = vsub.f32 %v2654, %v2956
        %v3135 = vsub.f32 %v2655, %v2956
        %v3136 = vsub.f32 %v2656, %v2957
        %v3137 = vsub.f32 %v2657, %v2957
        %v3138 = vsub.f32 %v2658, %v2958
        %v3139 = vsub.f32 %v2659, %v2958
        %v3140 = vsub.f32 %v2660, %v2959
        %v3141 = vsub.f32 %v2661, %v2959
        %v3142 = vsub.f32 %v2662, %v2960
        %v3143 = vsub.f32 %v2663, %v2960
        %v3144 = vsub.f32 %v2664, %v2961
        %v3145 = vsub.f32 %v2665, %v2961
        %v3146 = vsub.f32 %v2666, %v2962
        %v3147 = vsub.f32 %v2667, %v2962
        %v3148 = vsub.f32 %v2668, %v2963
        %v3149 = vsub.f32 %v2669, %v2963
        %v3150 = vsub.f32 %v2670, %v2964
        %v3151 = vsub.f32 %v2671, %v2964
        %v3152 = vsub.f32 %v2672, %v2965
        %v3153 = vsub.f32 %v2673, %v2965
        %v3154 = vsub.f32 %v2674, %v2966
        %v3155 = vsub.f32 %v2675, %v2966
        %v3156 = vsub.f32 %v2676, %v2967
        %v3157 = vsub.f32 %v2677, %v2967
        %v3158 = vsub.f32 %v2678, %v2968
        %v3159 = vsub.f32 %v2679, %v2968
        %v3160 = vsub.f32 %v2680, %v2969
        %v3161 = vsub.f32 %v2681, %v2969
        %v3162 = vadd.f32 %v3066, 1e-05
        %v3163 = vadd.f32 %v3067, 1e-05
        %v3164 = vadd.f32 %v3068, 1e-05
        %v3165 = vadd.f32 %v3069, 1e-05
        %v3166 = vadd.f32 %v3070, 1e-05
        %v3167 = vadd.f32 %v3071, 1e-05
        %v3168 = vadd.f32 %v3072, 1e-05
        %v3169 = vadd.f32 %v3073, 1e-05
        %v3170 = vadd.f32 %v3074, 1e-05
        %v3171 = vadd.f32 %v3075, 1e-05
        %v3172 = vadd.f32 %v3076, 1e-05
        %v3173 = vadd.f32 %v3077, 1e-05
        %v3174 = vadd.f32 %v3078, 1e-05
        %v3175 = vadd.f32 %v3079, 1e-05
        %v3176 = vadd.f32 %v3080, 1e-05
        %v3177 = vadd.f32 %v3081, 1e-05
        %v3178 = vadd.f32 %v3082, 1e-05
        %v3179 = vadd.f32 %v3083, 1e-05
        %v3180 = vadd.f32 %v3084, 1e-05
        %v3181 = vadd.f32 %v3085, 1e-05
        %v3182 = vadd.f32 %v3086, 1e-05
        %v3183 = vadd.f32 %v3087, 1e-05
        %v3184 = vadd.f32 %v3088, 1e-05
        %v3185 = vadd.f32 %v3089, 1e-05
        %v3186 = vadd.f32 %v3090, 1e-05
        %v3187 = vadd.f32 %v3091, 1e-05
        %v3188 = vadd.f32 %v3092, 1e-05
        %v3189 = vadd.f32 %v3093, 1e-05
        %v3190 = vadd.f32 %v3094, 1e-05
        %v3191 = vadd.f32 %v3095, 1e-05
        %v3192 = vadd.f32 %v3096, 1e-05
        %v3193 = vadd.f32 %v3097, 1e-05
        %v3194 = vrsqrt.pop %v3162
        %v3195 = vrsqrt.pop %v3163
        %v3196 = vrsqrt.pop %v3164
        %v3197 = vrsqrt.pop %v3165
        %v3198 = vrsqrt.pop %v3166
        %v3199 = vrsqrt.pop %v3167
        %v3200 = vrsqrt.pop %v3168
        %v3201 = vrsqrt.pop %v3169
        %v3202 = vrsqrt.pop %v3170
        %v3203 = vrsqrt.pop %v3171
        %v3204 = vrsqrt.pop %v3172
        %v3205 = vrsqrt.pop %v3173
        %v3206 = vrsqrt.pop %v3174
        %v3207 = vrsqrt.pop %v3175
        %v3208 = vrsqrt.pop %v3176
        %v3209 = vrsqrt.pop %v3177
        %v3210 = vrsqrt.pop %v3178
        %v3211 = vrsqrt.pop %v3179
        %v3212 = vrsqrt.pop %v3180
        %v3213 = vrsqrt.pop %v3181
        %v3214 = vrsqrt.pop %v3182
        %v3215 = vrsqrt.pop %v3183
        %v3216 = vrsqrt.pop %v3184
        %v3217 = vrsqrt.pop %v3185
        %v3218 = vrsqrt.pop %v3186
        %v3219 = vrsqrt.pop %v3187
        %v3220 = vrsqrt.pop %v3188
        %v3221 = vrsqrt.pop %v3189
        %v3222 = vrsqrt.pop %v3190
        %v3223 = vrsqrt.pop %v3191
        %v3224 = vrsqrt.pop %v3192
        %v3225 = vrsqrt.pop %v3193
        %v3226 = vmul.f32 %v3098, %v3194
        %v3227 = vmul.f32 %v3099, %v3194
        %v3228 = vmul.f32 %v3100, %v3195
        %v3229 = vmul.f32 %v3101, %v3195
        %v3230 = vmul.f32 %v3102, %v3196
        %v3231 = vmul.f32 %v3103, %v3196
        %v3232 = vmul.f32 %v3104, %v3197
        %v3233 = vmul.f32 %v3105, %v3197
        %v3234 = vmul.f32 %v3106, %v3198
        %v3235 = vmul.f32 %v3107, %v3198
        %v3236 = vmul.f32 %v3108, %v3199
        %v3237 = vmul.f32 %v3109, %v3199
        %v3238 = vmul.f32 %v3110, %v3200
        %v3239 = vmul.f32 %v3111, %v3200
        %v3240 = vmul.f32 %v3112, %v3201
        %v3241 = vmul.f32 %v3113, %v3201
        %v3242 = vmul.f32 %v3114, %v3202
        %v3243 = vmul.f32 %v3115, %v3202
        %v3244 = vmul.f32 %v3116, %v3203
        %v3245 = vmul.f32 %v3117, %v3203
        %v3246 = vmul.f32 %v3118, %v3204
        %v3247 = vmul.f32 %v3119, %v3204
        %v3248 = vmul.f32 %v3120, %v3205
        %v3249 = vmul.f32 %v3121, %v3205
        %v3250 = vmul.f32 %v3122, %v3206
        %v3251 = vmul.f32 %v3123, %v3206
        %v3252 = vmul.f32 %v3124, %v3207
        %v3253 = vmul.f32 %v3125, %v3207
        %v3254 = vmul.f32 %v3126, %v3208
        %v3255 = vmul.f32 %v3127, %v3208
        %v3256 = vmul.f32 %v3128, %v3209
        %v3257 = vmul.f32 %v3129, %v3209
        %v3258 = vmul.f32 %v3130, %v3210
        %v3259 = vmul.f32 %v3131, %v3210
        %v3260 = vmul.f32 %v3132, %v3211
        %v3261 = vmul.f32 %v3133, %v3211
        %v3262 = vmul.f32 %v3134, %v3212
        %v3263 = vmul.f32 %v3135, %v3212
        %v3264 = vmul.f32 %v3136, %v3213
        %v3265 = vmul.f32 %v3137, %v3213
        %v3266 = vmul.f32 %v3138, %v3214
        %v3267 = vmul.f32 %v3139, %v3214
        %v3268 = vmul.f32 %v3140, %v3215
        %v3269 = vmul.f32 %v3141, %v3215
        %v3270 = vmul.f32 %v3142, %v3216
        %v3271 = vmul.f32 %v3143, %v3216
        %v3272 = vmul.f32 %v3144, %v3217
        %v3273 = vmul.f32 %v3145, %v3217
        %v3274 = vmul.f32 %v3146, %v3218
        %v3275 = vmul.f32 %v3147, %v3218
        %v3276 = vmul.f32 %v3148, %v3219
        %v3277 = vmul.f32 %v3149, %v3219
        %v3278 = vmul.f32 %v3150, %v3220
        %v3279 = vmul.f32 %v3151, %v3220
        %v3280 = vmul.f32 %v3152, %v3221
        %v3281 = vmul.f32 %v3153, %v3221
        %v3282 = vmul.f32 %v3154, %v3222
        %v3283 = vmul.f32 %v3155, %v3222
        %v3284 = vmul.f32 %v3156, %v3223
        %v3285 = vmul.f32 %v3157, %v3223
        %v3286 = vmul.f32 %v3158, %v3224
        %v3287 = vmul.f32 %v3159, %v3224
        %v3288 = vmul.f32 %v3160, %v3225
        %v3289 = vmul.f32 %v3161, %v3225
        %v3290 = vld [vmem:[%s3] sm:$0x3]
        %v3292 = vlaneseq
        %v3293 = vshrl.u32 %v3292, 7
        %v3294 = vsub.s32 0, %v3293
        %v3295 = vrot.slane %v3290, %v3294
        %v3296 = vlaneseq
        %v3297 = vshrl.u32 %v3296, 7
        %v3298 = vsub.s32 1, %v3297
        %v3299 = vrot.slane %v3290, %v3298
        %v3302 = vmul.f32 %v3226, %v3295
        %v3303 = vmul.f32 %v3227, %v3299
        %v3304 = vmul.f32 %v3228, %v3295
        %v3305 = vmul.f32 %v3229, %v3299
        %v3306 = vmul.f32 %v3230, %v3295
        %v3307 = vmul.f32 %v3231, %v3299
        %v3308 = vmul.f32 %v3232, %v3295
        %v3309 = vmul.f32 %v3233, %v3299
        %v3310 = vmul.f32 %v3234, %v3295
        %v3311 = vmul.f32 %v3235, %v3299
        %v3312 = vmul.f32 %v3236, %v3295
        %v3313 = vmul.f32 %v3237, %v3299
        %v3314 = vmul.f32 %v3238, %v3295
        %v3315 = vmul.f32 %v3239, %v3299
        %v3316 = vmul.f32 %v3240, %v3295
        %v3317 = vmul.f32 %v3241, %v3299
        %v3318 = vmul.f32 %v3242, %v3295
        %v3319 = vmul.f32 %v3243, %v3299
        %v3320 = vmul.f32 %v3244, %v3295
        %v3321 = vmul.f32 %v3245, %v3299
        %v3322 = vmul.f32 %v3246, %v3295
        %v3323 = vmul.f32 %v3247, %v3299
        %v3324 = vmul.f32 %v3248, %v3295
        %v3325 = vmul.f32 %v3249, %v3299
        %v3326 = vmul.f32 %v3250, %v3295
        %v3327 = vmul.f32 %v3251, %v3299
        %v3328 = vmul.f32 %v3252, %v3295
        %v3329 = vmul.f32 %v3253, %v3299
        %v3330 = vmul.f32 %v3254, %v3295
        %v3331 = vmul.f32 %v3255, %v3299
        %v3332 = vmul.f32 %v3256, %v3295
        %v3333 = vmul.f32 %v3257, %v3299
        %v3334 = vmul.f32 %v3258, %v3295
        %v3335 = vmul.f32 %v3259, %v3299
        %v3336 = vmul.f32 %v3260, %v3295
        %v3337 = vmul.f32 %v3261, %v3299
        %v3338 = vmul.f32 %v3262, %v3295
        %v3339 = vmul.f32 %v3263, %v3299
        %v3340 = vmul.f32 %v3264, %v3295
        %v3341 = vmul.f32 %v3265, %v3299
        %v3342 = vmul.f32 %v3266, %v3295
        %v3343 = vmul.f32 %v3267, %v3299
        %v3344 = vmul.f32 %v3268, %v3295
        %v3345 = vmul.f32 %v3269, %v3299
        %v3346 = vmul.f32 %v3270, %v3295
        %v3347 = vmul.f32 %v3271, %v3299
        %v3348 = vmul.f32 %v3272, %v3295
        %v3349 = vmul.f32 %v3273, %v3299
        %v3350 = vmul.f32 %v3274, %v3295
        %v3351 = vmul.f32 %v3275, %v3299
        %v3352 = vmul.f32 %v3276, %v3295
        %v3353 = vmul.f32 %v3277, %v3299
        %v3354 = vmul.f32 %v3278, %v3295
        %v3355 = vmul.f32 %v3279, %v3299
        %v3356 = vmul.f32 %v3280, %v3295
        %v3357 = vmul.f32 %v3281, %v3299
        %v3358 = vmul.f32 %v3282, %v3295
        %v3359 = vmul.f32 %v3283, %v3299
        %v3360 = vmul.f32 %v3284, %v3295
        %v3361 = vmul.f32 %v3285, %v3299
        %v3362 = vmul.f32 %v3286, %v3295
        %v3363 = vmul.f32 %v3287, %v3299
        %v3364 = vmul.f32 %v3288, %v3295
        %v3365 = vmul.f32 %v3289, %v3299
        %v3366 = vld [vmem:[%s4] sm:$0x3]
        %v3368 = vlaneseq
        %v3369 = vshrl.u32 %v3368, 7
        %v3370 = vsub.s32 0, %v3369
        %v3371 = vrot.slane %v3366, %v3370
        %v3372 = vlaneseq
        %v3373 = vshrl.u32 %v3372, 7
        %v3374 = vsub.s32 1, %v3373
        %v3375 = vrot.slane %v3366, %v3374
        %v3378 = vadd.f32 %v3302, %v3371
        %v3379 = vadd.f32 %v3303, %v3375
        %v3380 = vadd.f32 %v3304, %v3371
        %v3381 = vadd.f32 %v3305, %v3375
        %v3382 = vadd.f32 %v3306, %v3371
        %v3383 = vadd.f32 %v3307, %v3375
        %v3384 = vadd.f32 %v3308, %v3371
        %v3385 = vadd.f32 %v3309, %v3375
        %v3386 = vadd.f32 %v3310, %v3371
        %v3387 = vadd.f32 %v3311, %v3375
        %v3388 = vadd.f32 %v3312, %v3371
        %v3389 = vadd.f32 %v3313, %v3375
        %v3390 = vadd.f32 %v3314, %v3371
        %v3391 = vadd.f32 %v3315, %v3375
        %v3392 = vadd.f32 %v3316, %v3371
        %v3393 = vadd.f32 %v3317, %v3375
        %v3394 = vadd.f32 %v3318, %v3371
        %v3395 = vadd.f32 %v3319, %v3375
        %v3396 = vadd.f32 %v3320, %v3371
        %v3397 = vadd.f32 %v3321, %v3375
        %v3398 = vadd.f32 %v3322, %v3371
        %v3399 = vadd.f32 %v3323, %v3375
        %v3400 = vadd.f32 %v3324, %v3371
        %v3401 = vadd.f32 %v3325, %v3375
        %v3402 = vadd.f32 %v3326, %v3371
        %v3403 = vadd.f32 %v3327, %v3375
        %v3404 = vadd.f32 %v3328, %v3371
        %v3405 = vadd.f32 %v3329, %v3375
        %v3406 = vadd.f32 %v3330, %v3371
        %v3407 = vadd.f32 %v3331, %v3375
        %v3408 = vadd.f32 %v3332, %v3371
        %v3409 = vadd.f32 %v3333, %v3375
        %v3410 = vadd.f32 %v3334, %v3371
        %v3411 = vadd.f32 %v3335, %v3375
        %v3412 = vadd.f32 %v3336, %v3371
        %v3413 = vadd.f32 %v3337, %v3375
        %v3414 = vadd.f32 %v3338, %v3371
        %v3415 = vadd.f32 %v3339, %v3375
        %v3416 = vadd.f32 %v3340, %v3371
        %v3417 = vadd.f32 %v3341, %v3375
        %v3418 = vadd.f32 %v3342, %v3371
        %v3419 = vadd.f32 %v3343, %v3375
        %v3420 = vadd.f32 %v3344, %v3371
        %v3421 = vadd.f32 %v3345, %v3375
        %v3422 = vadd.f32 %v3346, %v3371
        %v3423 = vadd.f32 %v3347, %v3375
        %v3424 = vadd.f32 %v3348, %v3371
        %v3425 = vadd.f32 %v3349, %v3375
        %v3426 = vadd.f32 %v3350, %v3371
        %v3427 = vadd.f32 %v3351, %v3375
        %v3428 = vadd.f32 %v3352, %v3371
        %v3429 = vadd.f32 %v3353, %v3375
        %v3430 = vadd.f32 %v3354, %v3371
        %v3431 = vadd.f32 %v3355, %v3375
        %v3432 = vadd.f32 %v3356, %v3371
        %v3433 = vadd.f32 %v3357, %v3375
        %v3434 = vadd.f32 %v3358, %v3371
        %v3435 = vadd.f32 %v3359, %v3375
        %v3436 = vadd.f32 %v3360, %v3371
        %v3437 = vadd.f32 %v3361, %v3375
        %v3438 = vadd.f32 %v3362, %v3371
        %v3439 = vadd.f32 %v3363, %v3375
        %v3440 = vadd.f32 %v3364, %v3371
        %v3441 = vadd.f32 %v3365, %v3375
        %v3442 = vpack.c.bf16 %v3380, %v3378
        %v3443 = vpack.c.bf16 %v3381, %v3379
        %v3444 = vpack.c.bf16 %v3384, %v3382
        %v3445 = vpack.c.bf16 %v3385, %v3383
        %v3446 = vpack.c.bf16 %v3388, %v3386
        %v3447 = vpack.c.bf16 %v3389, %v3387
        %v3448 = vpack.c.bf16 %v3392, %v3390
        %v3449 = vpack.c.bf16 %v3393, %v3391
        %v3450 = vpack.c.bf16 %v3396, %v3394
        %v3451 = vpack.c.bf16 %v3397, %v3395
        %v3452 = vpack.c.bf16 %v3400, %v3398
        %v3453 = vpack.c.bf16 %v3401, %v3399
        %v3454 = vpack.c.bf16 %v3404, %v3402
        %v3455 = vpack.c.bf16 %v3405, %v3403
        %v3456 = vpack.c.bf16 %v3408, %v3406
        %v3457 = vpack.c.bf16 %v3409, %v3407
        %v3458 = vpack.c.bf16 %v3412, %v3410
        %v3459 = vpack.c.bf16 %v3413, %v3411
        %v3460 = vpack.c.bf16 %v3416, %v3414
        %v3461 = vpack.c.bf16 %v3417, %v3415
        %v3462 = vpack.c.bf16 %v3420, %v3418
        %v3463 = vpack.c.bf16 %v3421, %v3419
        %v3464 = vpack.c.bf16 %v3424, %v3422
        %v3465 = vpack.c.bf16 %v3425, %v3423
        %v3466 = vpack.c.bf16 %v3428, %v3426
        %v3467 = vpack.c.bf16 %v3429, %v3427
        %v3468 = vpack.c.bf16 %v3432, %v3430
        %v3469 = vpack.c.bf16 %v3433, %v3431
        %v3470 = vpack.c.bf16 %v3436, %v3434
        %v3471 = vpack.c.bf16 %v3437, %v3435
        %v3472 = vpack.c.bf16 %v3440, %v3438
        %v3473 = vpack.c.bf16 %v3441, %v3439
        %v3474 = vld [vmem:[#allocation7] sm:$0xf]
        %v3475 = vld [vmem:[#allocation7 + $0x4] sm:$0xf]
        %v3476 = vld [vmem:[#allocation7 + $0x8] sm:$0xf]
        %v3477 = vld [vmem:[#allocation7 + $0xc] sm:$0xf]
        %v3478 = vld [vmem:[#allocation7 + $0x10] sm:$0xf]
        %v3479 = vld [vmem:[#allocation7 + $0x14] sm:$0xf]
        %v3480 = vld [vmem:[#allocation7 + $0x18] sm:$0xf]
        %v3481 = vld [vmem:[#allocation7 + $0x1c] sm:$0xf]
        %v3482 = vld [vmem:[#allocation7 + $0x20] sm:$0xf]
        %v3483 = vld [vmem:[#allocation7 + $0x24] sm:$0xf]
        %v3484 = vld [vmem:[#allocation7 + $0x28] sm:$0xf]
        %v3485 = vld [vmem:[#allocation7 + $0x2c] sm:$0xf]
        %v3486 = vld [vmem:[#allocation7 + $0x30] sm:$0xf]
        %v3487 = vld [vmem:[#allocation7 + $0x34] sm:$0xf]
        %v3488 = vld [vmem:[#allocation7 + $0x38] sm:$0xf]
        %v3489 = vld [vmem:[#allocation7 + $0x3c] sm:$0xf]
        %v3490 = vld [vmem:[#allocation7 + $0x40] sm:$0xf]
        %v3491 = vld [vmem:[#allocation7 + $0x44] sm:$0xf]
        %v3492 = vld [vmem:[#allocation7 + $0x48] sm:$0xf]
        %v3493 = vld [vmem:[#allocation7 + $0x4c] sm:$0xf]
        %v3494 = vld [vmem:[#allocation7 + $0x50] sm:$0xf]
        %v3495 = vld [vmem:[#allocation7 + $0x54] sm:$0xf]
        %v3496 = vld [vmem:[#allocation7 + $0x58] sm:$0xf]
        %v3497 = vld [vmem:[#allocation7 + $0x5c] sm:$0xf]
        %v3498 = vld [vmem:[#allocation7 + $0x60] sm:$0xf]
        %v3499 = vld [vmem:[#allocation7 + $0x64] sm:$0xf]
        %v3500 = vld [vmem:[#allocation7 + $0x68] sm:$0xf]
        %v3501 = vld [vmem:[#allocation7 + $0x6c] sm:$0xf]
        %v3502 = vld [vmem:[#allocation7 + $0x70] sm:$0xf]
        %v3503 = vld [vmem:[#allocation7 + $0x74] sm:$0xf]
        %v3504 = vld [vmem:[#allocation7 + $0x78] sm:$0xf]
        %v3505 = vld [vmem:[#allocation7 + $0x7c] sm:$0xf]
        %v3506 = vld [vmem:[%s6] sm:$0x1]
        %v3508 = vlaneseq
        %v3509 = vshrl.u32 %v3508, 7
        %v3510 = vsub.s32 0, %v3509
        %v3511 = vrot.slane %v3506, %v3510
        %v3545 = vunpack.c.l.b16 %v3474
        %v3546 = vunpack.c.l.b16 %v3475
        %v3547 = vunpack.c.l.b16 %v3476
        %v3548 = vunpack.c.l.b16 %v3477
        %v3549 = vunpack.c.l.b16 %v3478
        %v3550 = vunpack.c.l.b16 %v3479
        %v3551 = vunpack.c.l.b16 %v3480
        %v3552 = vunpack.c.l.b16 %v3481
        %v3553 = vunpack.c.l.b16 %v3482
        %v3554 = vunpack.c.l.b16 %v3483
        %v3555 = vunpack.c.l.b16 %v3484
        %v3556 = vunpack.c.l.b16 %v3485
        %v3557 = vunpack.c.l.b16 %v3486
        %v3558 = vunpack.c.l.b16 %v3487
        %v3559 = vunpack.c.l.b16 %v3488
        %v3560 = vunpack.c.l.b16 %v3489
        %v3561 = vunpack.c.l.b16 %v3490
        %v3562 = vunpack.c.l.b16 %v3491
        %v3563 = vunpack.c.l.b16 %v3492
        %v3564 = vunpack.c.l.b16 %v3493
        %v3565 = vunpack.c.l.b16 %v3494
        %v3566 = vunpack.c.l.b16 %v3495
        %v3567 = vunpack.c.l.b16 %v3496
        %v3568 = vunpack.c.l.b16 %v3497
        %v3569 = vunpack.c.l.b16 %v3498
        %v3570 = vunpack.c.l.b16 %v3499
        %v3571 = vunpack.c.l.b16 %v3500
        %v3572 = vunpack.c.l.b16 %v3501
        %v3573 = vunpack.c.l.b16 %v3502
        %v3574 = vunpack.c.l.b16 %v3503
        %v3575 = vunpack.c.l.b16 %v3504
        %v3576 = vunpack.c.l.b16 %v3505
        %v3577 = vpack.c.b16 %v3546, %v3545
        %v3578 = vpack.c.b16 %v3548, %v3547
        %v3579 = vpack.c.b16 %v3550, %v3549
        %v3580 = vpack.c.b16 %v3552, %v3551
        %v3581 = vpack.c.b16 %v3554, %v3553
        %v3582 = vpack.c.b16 %v3556, %v3555
        %v3583 = vpack.c.b16 %v3558, %v3557
        %v3584 = vpack.c.b16 %v3560, %v3559
        %v3585 = vpack.c.b16 %v3562, %v3561
        %v3586 = vpack.c.b16 %v3564, %v3563
        %v3587 = vpack.c.b16 %v3566, %v3565
        %v3588 = vpack.c.b16 %v3568, %v3567
        %v3589 = vpack.c.b16 %v3570, %v3569
        %v3590 = vpack.c.b16 %v3572, %v3571
        %v3591 = vpack.c.b16 %v3574, %v3573
        %v3592 = vpack.c.b16 %v3576, %v3575
        %3609 = vmatprep.subr.bf16.mxu0 0
        %3610 = vmatpush1.bf16.msra.mxu0 %v3577
        %3611 = vmatprep.subr.bf16.mxu0 0
        %3612 = vmatpush1.bf16.msra.mxu0 %v3578
        %3613 = vmatprep.subr.bf16.mxu0 0
        %3614 = vmatpush1.bf16.msra.mxu0 %v3579
        %3615 = vmatprep.subr.bf16.mxu0 0
        %3616 = vmatpush1.bf16.msra.mxu0 %v3580
        %3617 = vmatprep.subr.bf16.mxu0 0
        %3618 = vmatpush1.bf16.msra.mxu0 %v3581
        %3619 = vmatprep.subr.bf16.mxu0 0
        %3620 = vmatpush1.bf16.msra.mxu0 %v3582
        %3621 = vmatprep.subr.bf16.mxu0 0
        %3622 = vmatpush1.bf16.msra.mxu0 %v3583
        %3623 = vmatprep.subr.bf16.mxu0 0
        %3624 = vmatpush1.bf16.msra.mxu0 %v3584
        %3625 = vmatprep.subr.bf16.mxu0 0
        %3626 = vmatpush1.bf16.msra.mxu0 %v3585
        %3627 = vmatprep.subr.bf16.mxu0 0
        %3628 = vmatpush1.bf16.msra.mxu0 %v3586
        %3629 = vmatprep.subr.bf16.mxu0 0
        %3630 = vmatpush1.bf16.msra.mxu0 %v3587
        %3631 = vmatprep.subr.bf16.mxu0 0
        %3632 = vmatpush1.bf16.msra.mxu0 %v3588
        %3633 = vmatprep.subr.bf16.mxu0 0
        %3634 = vmatpush1.bf16.msra.mxu0 %v3589
        %3635 = vmatprep.subr.bf16.mxu0 0
        %3636 = vmatpush1.bf16.msra.mxu0 %v3590
        %3637 = vmatprep.subr.bf16.mxu0 0
        %3638 = vmatpush1.bf16.msra.mxu0 %v3591
        %3639 = vmatprep.subr.bf16.mxu0 0
        %3640 = vmatpush1.bf16.msra.mxu0 %v3592
        %3641 = vmatprep.mubr.bf16.mxu0 %v3443
        %3642 = vmatmul.mubr.bf16.gmra.mrb[0].mxu0 %v3442
        %v3643 = vpop.f32.mrb[0].mxu0
        %v3644 = vadd.f32 %v3511, %v3643
        %v3645 = vpop.f32.mrb[0].mxu0
        %v3646 = vpop.f32.mrb[0].mxu0
        %v3647 = vadd.f32 %v3511, %v3646
        %v3648 = vpop.f32.mrb[0].mxu0
        %3649 = vmatprep.mubr.bf16.mxu0 %v3445
        %3650 = vmatmul.mubr.bf16.gmra.mrb[0].mxu0 %v3444
        %v3651 = vpop.f32.mrb[0].mxu0
        %v3652 = vadd.f32 %v3511, %v3651
        %v3653 = vpop.f32.mrb[0].mxu0
        %v3654 = vpop.f32.mrb[0].mxu0
        %v3655 = vadd.f32 %v3511, %v3654
        %v3656 = vpop.f32.mrb[0].mxu0
        %3657 = vmatprep.mubr.bf16.mxu0 %v3447
        %3658 = vmatmul.mubr.bf16.gmra.mrb[0].mxu0 %v3446
        %v3659 = vpop.f32.mrb[0].mxu0
        %v3660 = vadd.f32 %v3511, %v3659
        %v3661 = vpop.f32.mrb[0].mxu0
        %v3662 = vpop.f32.mrb[0].mxu0
        %v3663 = vadd.f32 %v3511, %v3662
        %v3664 = vpop.f32.mrb[0].mxu0
        %3665 = vmatprep.mubr.bf16.mxu0 %v3449
        %3666 = vmatmul.mubr.bf16.gmra.mrb[0].mxu0 %v3448
        %v3667 = vpop.f32.mrb[0].mxu0
        %v3668 = vadd.f32 %v3511, %v3667
        %v3669 = vpop.f32.mrb[0].mxu0
        %v3670 = vpop.f32.mrb[0].mxu0
        %v3671 = vadd.f32 %v3511, %v3670
        %v3672 = vpop.f32.mrb[0].mxu0
        %3673 = vmatprep.mubr.bf16.mxu0 %v3451
        %3674 = vmatmul.mubr.bf16.gmra.mrb[0].mxu0 %v3450
        %v3675 = vpop.f32.mrb[0].mxu0
        %v3676 = vadd.f32 %v3511, %v3675
        %v3677 = vpop.f32.mrb[0].mxu0
        %v3678 = vpop.f32.mrb[0].mxu0
        %v3679 = vadd.f32 %v3511, %v3678
        %v3680 = vpop.f32.mrb[0].mxu0
        %3681 = vmatprep.mubr.bf16.mxu0 %v3453
        %3682 = vmatmul.mubr.bf16.gmra.mrb[0].mxu0 %v3452
        %v3683 = vpop.f32.mrb[0].mxu0
        %v3684 = vadd.f32 %v3511, %v3683
        %v3685 = vpop.f32.mrb[0].mxu0
        %v3686 = vpop.f32.mrb[0].mxu0
        %v3687 = vadd.f32 %v3511, %v3686
        %v3688 = vpop.f32.mrb[0].mxu0
        %3689 = vmatprep.mubr.bf16.mxu0 %v3455
        %3690 = vmatmul.mubr.bf16.gmra.mrb[0].mxu0 %v3454
        %v3691 = vpop.f32.mrb[0].mxu0
        %v3692 = vadd.f32 %v3511, %v3691
        %v3693 = vpop.f32.mrb[0].mxu0
        %v3694 = vpop.f32.mrb[0].mxu0
        %v3695 = vadd.f32 %v3511, %v3694
        %v3696 = vpop.f32.mrb[0].mxu0
        %3697 = vmatprep.mubr.bf16.mxu0 %v3457
        %3698 = vmatmul.mubr.bf16.gmra.mrb[0].mxu0 %v3456
        %v3699 = vpop.f32.mrb[0].mxu0
        %v3700 = vadd.f32 %v3511, %v3699
        %v3701 = vpop.f32.mrb[0].mxu0
        %v3702 = vpop.f32.mrb[0].mxu0
        %v3703 = vadd.f32 %v3511, %v3702
        %v3704 = vpop.f32.mrb[0].mxu0
        %3705 = vmatprep.mubr.bf16.mxu0 %v3459
        %3706 = vmatmul.mubr.bf16.gmra.mrb[0].mxu0 %v3458
        %v3707 = vpop.f32.mrb[0].mxu0
        %v3708 = vadd.f32 %v3511, %v3707
        %v3709 = vpop.f32.mrb[0].mxu0
        %v3710 = vpop.f32.mrb[0].mxu0
        %v3711 = vadd.f32 %v3511, %v3710
        %v3712 = vpop.f32.mrb[0].mxu0
        %3713 = vmatprep.mubr.bf16.mxu0 %v3461
        %3714 = vmatmul.mubr.bf16.gmra.mrb[0].mxu0 %v3460
        %v3715 = vpop.f32.mrb[0].mxu0
        %v3716 = vadd.f32 %v3511, %v3715
        %v3717 = vpop.f32.mrb[0].mxu0
        %v3718 = vpop.f32.mrb[0].mxu0
        %v3719 = vadd.f32 %v3511, %v3718
        %v3720 = vpop.f32.mrb[0].mxu0
        %3721 = vmatprep.mubr.bf16.mxu0 %v3463
        %3722 = vmatmul.mubr.bf16.gmra.mrb[0].mxu0 %v3462
        %v3723 = vpop.f32.mrb[0].mxu0
        %v3724 = vadd.f32 %v3511, %v3723
        %v3725 = vpop.f32.mrb[0].mxu0
        %v3726 = vpop.f32.mrb[0].mxu0
        %v3727 = vadd.f32 %v3511, %v3726
        %v3728 = vpop.f32.mrb[0].mxu0
        %3729 = vmatprep.mubr.bf16.mxu0 %v3465
        %3730 = vmatmul.mubr.bf16.gmra.mrb[0].mxu0 %v3464
        %v3731 = vpop.f32.mrb[0].mxu0
        %v3732 = vadd.f32 %v3511, %v3731
        %v3733 = vpop.f32.mrb[0].mxu0
        %v3734 = vpop.f32.mrb[0].mxu0
        %v3735 = vadd.f32 %v3511, %v3734
        %v3736 = vpop.f32.mrb[0].mxu0
        %3737 = vmatprep.mubr.bf16.mxu0 %v3467
        %3738 = vmatmul.mubr.bf16.gmra.mrb[0].mxu0 %v3466
        %v3739 = vpop.f32.mrb[0].mxu0
        %v3740 = vadd.f32 %v3511, %v3739
        %v3741 = vpop.f32.mrb[0].mxu0
        %v3742 = vpop.f32.mrb[0].mxu0
        %v3743 = vadd.f32 %v3511, %v3742
        %v3744 = vpop.f32.mrb[0].mxu0
        %3745 = vmatprep.mubr.bf16.mxu0 %v3469
        %3746 = vmatmul.mubr.bf16.gmra.mrb[0].mxu0 %v3468
        %v3747 = vpop.f32.mrb[0].mxu0
        %v3748 = vadd.f32 %v3511, %v3747
        %v3749 = vpop.f32.mrb[0].mxu0
        %v3750 = vpop.f32.mrb[0].mxu0
        %v3751 = vadd.f32 %v3511, %v3750
        %v3752 = vpop.f32.mrb[0].mxu0
        %3753 = vmatprep.mubr.bf16.mxu0 %v3471
        %3754 = vmatmul.mubr.bf16.gmra.mrb[0].mxu0 %v3470
        %v3755 = vpop.f32.mrb[0].mxu0
        %v3756 = vadd.f32 %v3511, %v3755
        %v3757 = vpop.f32.mrb[0].mxu0
        %v3758 = vpop.f32.mrb[0].mxu0
        %v3759 = vadd.f32 %v3511, %v3758
        %v3760 = vpop.f32.mrb[0].mxu0
        %3761 = vmatprep.mubr.bf16.mxu0 %v3473
        %3762 = vmatmul.mubr.bf16.gmra.mrb[0].mxu0 %v3472
        %v3763 = vpop.f32.mrb[0].mxu0
        %v3764 = vadd.f32 %v3511, %v3763
        %v3765 = vpop.f32.mrb[0].mxu0
        %v3766 = vpop.f32.mrb[0].mxu0
        %v3767 = vadd.f32 %v3511, %v3766
        %v3768 = vpop.f32.mrb[0].mxu0
        %3769 = vdwg.mxu0
        %v3770 = vxor.u32 %v3644, 2147483648
        %v3771 = vxor.u32 %v3647, 2147483648
        %v3772 = vxor.u32 %v3652, 2147483648
        %v3773 = vxor.u32 %v3655, 2147483648
        %v3774 = vxor.u32 %v3660, 2147483648
        %v3775 = vxor.u32 %v3663, 2147483648
        %v3776 = vxor.u32 %v3668, 2147483648
        %v3777 = vxor.u32 %v3671, 2147483648
        %v3778 = vxor.u32 %v3676, 2147483648
        %v3779 = vxor.u32 %v3679, 2147483648
        %v3780 = vxor.u32 %v3684, 2147483648
        %v3781 = vxor.u32 %v3687, 2147483648
        %v3782 = vxor.u32 %v3692, 2147483648
        %v3783 = vxor.u32 %v3695, 2147483648
        %v3784 = vxor.u32 %v3700, 2147483648
        %v3785 = vxor.u32 %v3703, 2147483648
        %v3786 = vxor.u32 %v3708, 2147483648
        %v3787 = vxor.u32 %v3711, 2147483648
        %v3788 = vxor.u32 %v3716, 2147483648
        %v3789 = vxor.u32 %v3719, 2147483648
        %v3790 = vxor.u32 %v3724, 2147483648
        %v3791 = vxor.u32 %v3727, 2147483648
        %v3792 = vxor.u32 %v3732, 2147483648
        %v3793 = vxor.u32 %v3735, 2147483648
        %v3794 = vxor.u32 %v3740, 2147483648
        %v3795 = vxor.u32 %v3743, 2147483648
        %v3796 = vxor.u32 %v3748, 2147483648
        %v3797 = vxor.u32 %v3751, 2147483648
        %v3798 = vxor.u32 %v3756, 2147483648
        %v3799 = vxor.u32 %v3759, 2147483648
        %v3800 = vxor.u32 %v3764, 2147483648
        %v3801 = vxor.u32 %v3767, 2147483648
        %v3802 = vmul.f32 %v3770, 1.442695
        %v3803 = vpow.pop %v3802
        %v3804 = vmul.f32 %v3771, 1.442695
        %v3805 = vpow.pop %v3804
        %v3806 = vmul.f32 %v3772, 1.442695
        %v3807 = vpow.pop %v3806
        %v3808 = vmul.f32 %v3773, 1.442695
        %v3809 = vpow.pop %v3808
        %v3810 = vmul.f32 %v3774, 1.442695
        %v3811 = vpow.pop %v3810
        %v3812 = vmul.f32 %v3775, 1.442695
        %v3813 = vpow.pop %v3812
        %v3814 = vmul.f32 %v3776, 1.442695
        %v3815 = vpow.pop %v3814
        %v3816 = vmul.f32 %v3777, 1.442695
        %v3817 = vpow.pop %v3816
        %v3818 = vmul.f32 %v3778, 1.442695
        %v3819 = vpow.pop %v3818
        %v3820 = vmul.f32 %v3779, 1.442695
        %v3821 = vpow.pop %v3820
        %v3822 = vmul.f32 %v3780, 1.442695
        %v3823 = vpow.pop %v3822
        %v3824 = vmul.f32 %v3781, 1.442695
        %v3825 = vpow.pop %v3824
        %v3826 = vmul.f32 %v3782, 1.442695
        %v3827 = vpow.pop %v3826
        %v3828 = vmul.f32 %v3783, 1.442695
        %v3829 = vpow.pop %v3828
        %v3830 = vmul.f32 %v3784, 1.442695
        %v3831 = vpow.pop %v3830
        %v3832 = vmul.f32 %v3785, 1.442695
        %v3833 = vpow.pop %v3832
        %v3834 = vmul.f32 %v3786, 1.442695
        %v3835 = vpow.pop %v3834
        %v3836 = vmul.f32 %v3787, 1.442695
        %v3837 = vpow.pop %v3836
        %v3838 = vmul.f32 %v3788, 1.442695
        %v3839 = vpow.pop %v3838
        %v3840 = vmul.f32 %v3789, 1.442695
        %v3841 = vpow.pop %v3840
        %v3842 = vmul.f32 %v3790, 1.442695
        %v3843 = vpow.pop %v3842
        %v3844 = vmul.f32 %v3791, 1.442695
        %v3845 = vpow.pop %v3844
        %v3846 = vmul.f32 %v3792, 1.442695
        %v3847 = vpow.pop %v3846
        %v3848 = vmul.f32 %v3793, 1.442695
        %v3849 = vpow.pop %v3848
        %v3850 = vmul.f32 %v3794, 1.442695
        %v3851 = vpow.pop %v3850
        %v3852 = vmul.f32 %v3795, 1.442695
        %v3853 = vpow.pop %v3852
        %v3854 = vmul.f32 %v3796, 1.442695
        %v3855 = vpow.pop %v3854
        %v3856 = vmul.f32 %v3797, 1.442695
        %v3857 = vpow.pop %v3856
        %v3858 = vmul.f32 %v3798, 1.442695
        %v3859 = vpow.pop %v3858
        %v3860 = vmul.f32 %v3799, 1.442695
        %v3861 = vpow.pop %v3860
        %v3862 = vmul.f32 %v3800, 1.442695
        %v3863 = vpow.pop %v3862
        %v3864 = vmul.f32 %v3801, 1.442695
        %v3865 = vpow.pop %v3864
        %v3866 = vadd.f32 %v3803, 1.0
        %v3867 = vadd.f32 %v3805, 1.0
        %v3868 = vadd.f32 %v3807, 1.0
        %v3869 = vadd.f32 %v3809, 1.0
        %v3870 = vadd.f32 %v3811, 1.0
        %v3871 = vadd.f32 %v3813, 1.0
        %v3872 = vadd.f32 %v3815, 1.0
        %v3873 = vadd.f32 %v3817, 1.0
        %v3874 = vadd.f32 %v3819, 1.0
        %v3875 = vadd.f32 %v3821, 1.0
        %v3876 = vadd.f32 %v3823, 1.0
        %v3877 = vadd.f32 %v3825, 1.0
        %v3878 = vadd.f32 %v3827, 1.0
        %v3879 = vadd.f32 %v3829, 1.0
        %v3880 = vadd.f32 %v3831, 1.0
        %v3881 = vadd.f32 %v3833, 1.0
        %v3882 = vadd.f32 %v3835, 1.0
        %v3883 = vadd.f32 %v3837, 1.0
        %v3884 = vadd.f32 %v3839, 1.0
        %v3885 = vadd.f32 %v3841, 1.0
        %v3886 = vadd.f32 %v3843, 1.0
        %v3887 = vadd.f32 %v3845, 1.0
        %v3888 = vadd.f32 %v3847, 1.0
        %v3889 = vadd.f32 %v3849, 1.0
        %v3890 = vadd.f32 %v3851, 1.0
        %v3891 = vadd.f32 %v3853, 1.0
        %v3892 = vadd.f32 %v3855, 1.0
        %v3893 = vadd.f32 %v3857, 1.0
        %v3894 = vadd.f32 %v3859, 1.0
        %v3895 = vadd.f32 %v3861, 1.0
        %v3896 = vadd.f32 %v3863, 1.0
        %v3897 = vadd.f32 %v3865, 1.0
        %v3898 = vrcp.pop %v3866
        %v3899 = vmul.f32 1.0, %v3898
        %v3900 = vrcp.pop %v3867
        %v3901 = vmul.f32 1.0, %v3900
        %v3902 = vrcp.pop %v3868
        %v3903 = vmul.f32 1.0, %v3902
        %v3904 = vrcp.pop %v3869
        %v3905 = vmul.f32 1.0, %v3904
        %v3906 = vrcp.pop %v3870
        %v3907 = vmul.f32 1.0, %v3906
        %v3908 = vrcp.pop %v3871
        %v3909 = vmul.f32 1.0, %v3908
        %v3910 = vrcp.pop %v3872
        %v3911 = vmul.f32 1.0, %v3910
        %v3912 = vrcp.pop %v3873
        %v3913 = vmul.f32 1.0, %v3912
        %v3914 = vrcp.pop %v3874
        %v3915 = vmul.f32 1.0, %v3914
        %v3916 = vrcp.pop %v3875
        %v3917 = vmul.f32 1.0, %v3916
        %v3918 = vrcp.pop %v3876
        %v3919 = vmul.f32 1.0, %v3918
        %v3920 = vrcp.pop %v3877
        %v3921 = vmul.f32 1.0, %v3920
        %v3922 = vrcp.pop %v3878
        %v3923 = vmul.f32 1.0, %v3922
        %v3924 = vrcp.pop %v3879
        %v3925 = vmul.f32 1.0, %v3924
        %v3926 = vrcp.pop %v3880
        %v3927 = vmul.f32 1.0, %v3926
        %v3928 = vrcp.pop %v3881
        %v3929 = vmul.f32 1.0, %v3928
        %v3930 = vrcp.pop %v3882
        %v3931 = vmul.f32 1.0, %v3930
        %v3932 = vrcp.pop %v3883
        %v3933 = vmul.f32 1.0, %v3932
        %v3934 = vrcp.pop %v3884
        %v3935 = vmul.f32 1.0, %v3934
        %v3936 = vrcp.pop %v3885
        %v3937 = vmul.f32 1.0, %v3936
        %v3938 = vrcp.pop %v3886
        %v3939 = vmul.f32 1.0, %v3938
        %v3940 = vrcp.pop %v3887
        %v3941 = vmul.f32 1.0, %v3940
        %v3942 = vrcp.pop %v3888
        %v3943 = vmul.f32 1.0, %v3942
        %v3944 = vrcp.pop %v3889
        %v3945 = vmul.f32 1.0, %v3944
        %v3946 = vrcp.pop %v3890
        %v3947 = vmul.f32 1.0, %v3946
        %v3948 = vrcp.pop %v3891
        %v3949 = vmul.f32 1.0, %v3948
        %v3950 = vrcp.pop %v3892
        %v3951 = vmul.f32 1.0, %v3950
        %v3952 = vrcp.pop %v3893
        %v3953 = vmul.f32 1.0, %v3952
        %v3954 = vrcp.pop %v3894
        %v3955 = vmul.f32 1.0, %v3954
        %v3956 = vrcp.pop %v3895
        %v3957 = vmul.f32 1.0, %v3956
        %v3958 = vrcp.pop %v3896
        %v3959 = vmul.f32 1.0, %v3958
        %v3960 = vrcp.pop %v3897
        %v3961 = vmul.f32 1.0, %v3960
        %3962 = vst [vmem:[%s326] sm:$0xff] %v3899
        %3963 = vst [vmem:[%s326 + $0x8] sm:$0xff] %v3901
        %3964 = vst [vmem:[%s326 + $0x10] sm:$0xff] %v3903
        %3965 = vst [vmem:[%s326 + $0x18] sm:$0xff] %v3905
        %3966 = vst [vmem:[%s326 + $0x20] sm:$0xff] %v3907
        %3967 = vst [vmem:[%s326 + $0x28] sm:$0xff] %v3909
        %3968 = vst [vmem:[%s326 + $0x30] sm:$0xff] %v3911
        %3969 = vst [vmem:[%s326 + $0x38] sm:$0xff] %v3913
        %3970 = vst [vmem:[%s326 + $0x40] sm:$0xff] %v3915
        %3971 = vst [vmem:[%s326 + $0x48] sm:$0xff] %v3917
        %3972 = vst [vmem:[%s326 + $0x50] sm:$0xff] %v3919
        %3973 = vst [vmem:[%s326 + $0x58] sm:$0xff] %v3921
        %3974 = vst [vmem:[%s326 + $0x60] sm:$0xff] %v3923
        %3975 = vst [vmem:[%s326 + $0x68] sm:$0xff] %v3925
        %3976 = vst [vmem:[%s326 + $0x70] sm:$0xff] %v3927
        %3977 = vst [vmem:[%s326 + $0x78] sm:$0xff] %v3929
        %3978 = vst [vmem:[%s326 + $0x80] sm:$0xff] %v3931
        %3979 = vst [vmem:[%s326 + $0x88] sm:$0xff] %v3933
        %3980 = vst [vmem:[%s326 + $0x90] sm:$0xff] %v3935
        %3981 = vst [vmem:[%s326 + $0x98] sm:$0xff] %v3937
        %3982 = vst [vmem:[%s326 + $0xa0] sm:$0xff] %v3939
        %3983 = vst [vmem:[%s326 + $0xa8] sm:$0xff] %v3941
        %3984 = vst [vmem:[%s326 + $0xb0] sm:$0xff] %v3943
        %3985 = vst [vmem:[%s326 + $0xb8] sm:$0xff] %v3945
        %3986 = vst [vmem:[%s326 + $0xc0] sm:$0xff] %v3947
        %3987 = vst [vmem:[%s326 + $0xc8] sm:$0xff] %v3949
        %3988 = vst [vmem:[%s326 + $0xd0] sm:$0xff] %v3951
        %3989 = vst [vmem:[%s326 + $0xd8] sm:$0xff] %v3953
        %3990 = vst [vmem:[%s326 + $0xe0] sm:$0xff] %v3955
        %3991 = vst [vmem:[%s326 + $0xe8] sm:$0xff] %v3957
        %3992 = vst [vmem:[%s326 + $0xf0] sm:$0xff] %v3959
        %3993 = vst [vmem:[%s326 + $0xf8] sm:$0xff] %v3961
        %s3994 = sand.u32 %s185, 1
        %s3995 = scalar_lea.sflag [#allocation4], %s3994
        %s3996 = sand.u32 %s185, 1
        %s3997 = smul.addr %s3996, 256
        %s3998 = scalar_lea.vmem [#allocation8], %s3997
        // Predicated region
        $region61: #{tpu_custom_call.1} parent=47 // pred_check
          %p3999 = pneg %p195
        $region62: #{tpu_custom_call.1} parent=47 // pred_check_branch
          %4001 = sbr.rel (%p3999) target = $region64
        $region63: #{tpu_custom_call.1} parent=47 // pred_region
          %s4002 = smul.u32 32, %s25
          %s4004 = ssub.s32 4096, 4096
          %4005 = vsyncadd %s3995, %s4004
          %s4006 = smul.addr %s4002, 128
          %s4007 = scalar_lea.hbm %s7, %s4006
          %s4008 = sshll.u32 %s3998, 4
          %s4009 = int_to_ptr.vmem [resolvable:$true] %s4008
          %4014 = dma.vmem_to_hbm [thread:$0]  %s4009, 4096, %s4007, %s3995, 128, 128, 8
        $region64: #{tpu_custom_call.1} parent=47 // pred_fallthru
          _
      $region48: #{tpu_custom_call.1} parent=5 // pred_fallthru
        _
      %p4015 = scmp.le.s32.totalorder 2, %s20
      // Predicated region
      $region65: #{tpu_custom_call.1} parent=5 // pred_check
        %p4016 = pneg %p4015
      $region66: #{tpu_custom_call.1} parent=5 // pred_check_branch
        %4018 = sbr.rel (%p4016) target = $region68
      $region67: #{tpu_custom_call.1} parent=5 // pred_region
        %s4019 = ssub.s32 %s20, 2
        // Predicated region
        $region69: #{tpu_custom_call.1} parent=67 // pred_check
          %p4020 = pneg %p201
        $region70: #{tpu_custom_call.1} parent=67 // pred_check_branch
          %4022 = sbr.rel (%p4020) target = $region72
        $region71: #{tpu_custom_call.1} parent=67 // pred_region
          %s4023 = sand.u32 %s186, 1
          %s4024 = scalar_lea.sflag [#allocation4], %s4023
          %s4025 = sand.u32 %s186, 1
          %s4026 = smul.addr %s4025, 256
          %s4027 = scalar_lea.vmem [#allocation8], %s4026
          %4028 = dma.done %s4024, 4096
        $region72: #{tpu_custom_call.1} parent=67 // pred_fallthru
          _
      $region68: #{tpu_custom_call.1} parent=5 // pred_fallthru
        _
    $region6: #{tpu_custom_call.1} parent=1 // loop_footer
      %s24 = sadd.s32 1, %s20
    $region7: #{tpu_custom_call.1} parent=1 // loop_footer_branch
      %19 = sbr.rel target = $region3
    $region8: #{tpu_custom_call.1} parent=1 // loop_exit
      _
    %4029 = vsyncpa [#allocation3], 1
    %s4030 = scalar_lea.sflag [#allocation3], 1
    %4031 = vsyncpa %s4030, 1
    %4032 = vsyncpa [#allocation6], 1
    %4033 = vsyncpa [#allocation4], 1
    %s4034 = scalar_lea.sflag [#allocation4], 1
    %4035 = vsyncpa %s4034, 1

</llo_original>
